<compile_context>
chip_gen: v6e
topology: v6e:2x2x1
jax: 0.10.0
libtpu: 0.0.40
codegen_flags: <defaults>
</compile_context>

<pallas_src>
import jax
import jax.numpy as jnp
from jax.experimental import pallas as pl
from jax.experimental.pallas import tpu as pltpu

EPS = 1e-5


def _round_up(n, m):
    return ((n + m - 1) // m) * m


def _generation_config():
    """Returns (max_batch_tile, vmem_limit_bytes, want_multi_core) per TPU gen."""
    vmem_cap = 128 * 1024 * 1024
    try:
        info = pltpu.get_tpu_info()
        cap = getattr(info, "vmem_capacity_bytes", None)
        if cap:
            vmem_cap = int(cap)
    except Exception:
        pass
    if vmem_cap <= 64 * 1024 * 1024:
        # v7x: 64 MiB VMEM per TensorCore, 2 TCs/chip -> smaller tile, >=2 steps.
        return 1024, 44 * 1024 * 1024, True
    # v5e / v6e: 128 MiB VMEM, 1 TensorCore.
    return 2048, 64 * 1024 * 1024, False


def _choose_batch_tile(B, max_tile, want_multi_core):
    TB = min(max_tile, _round_up(B, 8))
    # On v7x make sure the parallel grid has >= 2 steps so both TCs get work.
    if want_multi_core and TB >= B and B >= 16:
        TB = _round_up(-(-B // 2), 8)
    return TB


# --------------------------------------------------------------------------
# Batch-tiled MLP kernel.  BN is pre-folded into (w1, b1) by the wrapper, the
# large weights arrive in bf16 (f32 accumulation on the MXU), and the output
# is lane-dense (padded to a multiple of 128 columns).
# --------------------------------------------------------------------------
def mlp_kernel(x_ref, w1_ref, b1_ref, w2_ref, b2_ref,
               w3_ref, b3_ref, w4_ref, b4_ref, o_ref):
    # fc1: 4 -> 8, ReLU (tiny, stays f32; BN folded into w1/b1).
    h1 = jnp.maximum(
        jnp.dot(x_ref[...], w1_ref[...], preferred_element_type=jnp.float32)
        + b1_ref[...], 0.0)
    # fc2: 8 -> 512, ReLU (bf16 operands, f32 accumulation).
    h2 = jnp.maximum(
        jnp.dot(h1.astype(jnp.bfloat16), w2_ref[...],
                preferred_element_type=jnp.float32) + b2_ref[...], 0.0)
    # fc3: 512 -> 1024, ReLU.
    h3 = jnp.maximum(
        jnp.dot(h2.astype(jnp.bfloat16), w3_ref[...],
                preferred_element_type=jnp.float32) + b3_ref[...], 0.0)
    # fc4: 1024 -> padded output (no activation).
    o_ref[...] = (jnp.dot(h3.astype(jnp.bfloat16), w4_ref[...],
                          preferred_element_type=jnp.float32)
                  + b4_ref[...]).astype(o_ref.dtype)


def _build_mlp_call(TB, Bp, out_pad, vmem_limit, single_buffer_weights):
    def resident(shape):
        # Weights/biases: constant index_map -> DMA'd once, stay resident.
        if single_buffer_weights:
            return pl.BlockSpec(shape, lambda i: (0, 0),
                                pipeline_mode=pl.Buffered(1))
        return pl.BlockSpec(shape, lambda i: (0, 0))

    flops = 2 * Bp * (4 * 8 + 8 * 512 + 512 * 1024 + 1024 * out_pad)
    bytes_accessed = (
        Bp * 4 * 4                                      # x
        + (8 * 512 + 512 * 1024 + 1024 * out_pad) * 2   # bf16 weights
        + (4 * 8 + 8 + 512 + 1024 + out_pad) * 4        # f32 fc1 + biases
        + Bp * out_pad * 4)                             # output

    return pl.pallas_call(
        mlp_kernel,
        out_shape=jax.ShapeDtypeStruct((Bp, out_pad), jnp.float32),
        grid=(Bp // TB,),
        in_specs=[
            pl.BlockSpec((TB, 4), lambda i: (i, 0)),    # x (batch-tiled)
            resident((4, 8)),                           # fc1 w (BN folded)
            resident((1, 8)),                           # fc1 b (BN folded)
            resident((8, 512)),                         # fc2 w (bf16)
            resident((1, 512)),                         # fc2 b
            resident((512, 1024)),                      # fc3 w (bf16)
            resident((1, 1024)),                        # fc3 b
            resident((1024, out_pad)),                  # fc4 w (bf16, padded)
            resident((1, out_pad)),                     # fc4 b (padded)
        ],
        out_specs=pl.BlockSpec((TB, out_pad), lambda i: (i, 0)),
        compiler_params=pltpu.CompilerParams(
            dimension_semantics=("parallel",),
            vmem_limit_bytes=vmem_limit),
        cost_estimate=pl.CostEstimate(
            flops=flops, transcendentals=0, bytes_accessed=bytes_accessed),
    )


def net_forward(x, params, *, batch_tile=None):
    """Full forward pass of `Net` on TPU via Pallas."""
    (gamma, beta, w1, b1, w2, b2, w3, b3, w4, b4) = params
    B = x.shape[0]
    out_size = w4.shape[1]

    max_tile, vmem_limit, want_multi_core = _generation_config()
    if batch_tile is not None:
        max_tile = batch_tile

    # --- BatchNorm (training mode) over the un-padded batch, folded into fc1.
    #     Two-pass (subtract-mean-first) biased variance for numerical safety.
    mean = jnp.mean(x, axis=0, keepdims=True)                       # (1, 4)
    var = jnp.mean(jnp.square(x - mean), axis=0, keepdims=True)     # (1, 4)
    scale = gamma * jax.lax.rsqrt(var + EPS)
    shift = beta - mean * scale
    w1f = scale.reshape(4, 1) * w1                                  # (4, 8)
    b1f = b1 + shift @ w1                                           # (1, 8)

    # --- weight prep: bf16 for the big matmuls, lane-dense padded fc4 ---
    out_pad = _round_up(out_size, 128)
    w2b = w2.astype(jnp.bfloat16)
    w3b = w3.astype(jnp.bfloat16)
    w4p = jnp.zeros((w4.shape[0], out_pad), jnp.float32).at[:, :out_size].set(w4)
    w4b = w4p.astype(jnp.bfloat16)
    b4p = jnp.zeros((1, out_pad), jnp.float32).at[:, :out_size].set(b4)

    # --- batch tiling (pad B to a multiple of the tile; BN stats already use
    #     the un-padded batch, so padded rows never affect numerics) ---
    TB = _choose_batch_tile(B, max_tile, want_multi_core)
    Bp = _round_up(B, TB)
    x_p = x if Bp == B else jnp.zeros((Bp, x.shape[1]), x.dtype).at[:B].set(x)

    args = (x_p, w1f, b1f, w2b, b2, w3b, b3, w4b, b4p)
    try:
        out_p = _build_mlp_call(TB, Bp, out_pad, vmem_limit, True)(*args)
    except Exception:
        # Fallback for JAX builds that reject single-buffered resident operands.
        out_p = _build_mlp_call(TB, Bp, out_pad, vmem_limit, False)(*args)

    return out_p[:B, :out_size]


# --------------------------------------------------------------------------
# Parameter init (PyTorch-like uniform fan-in scaling); Linear weights stored
# pre-transposed as (in_features, out_features) so the kernel does x @ W + b.
# --------------------------------------------------------------------------
def init_params(key, output_size):
    dims = [(4, 8), (8, 512), (512, 1024), (1024, output_size)]
    params = [jnp.ones((1, 4), jnp.float32),     # gamma
              jnp.zeros((1, 4), jnp.float32)]    # beta
    for (fan_in, fan_out) in dims:
        key, kw, kb = jax.random.split(key, 3)
        bound = 1.0 / jnp.sqrt(fan_in)
        params.append(jax.random.uniform(kw, (fan_in, fan_out), jnp.float32, -bound, bound))
        params.append(jax.random.uniform(kb, (1, fan_out), jnp.float32, -bound, bound))
    return tuple(params)


# --------------------------------------------------------------------------
# Plain-JAX reference matching the kernel's dtype choices (bf16 weights for
# fc2/fc3/fc4, f32 accumulation) and the same BN-into-fc1 fold, for tight
# correctness checking.
# --------------------------------------------------------------------------
def reference_forward(x, params):
    (gamma, beta, w1, b1, w2, b2, w3, b3, w4, b4) = params
    mean = jnp.mean(x, axis=0, keepdims=True)
    var = jnp.mean(jnp.square(x - mean), axis=0, keepdims=True)
    scale = gamma * jax.lax.rsqrt(var + EPS)
    shift = beta - mean * scale
    w1f = scale.reshape(4, 1) * w1
    b1f = b1 + shift @ w1
    h = jnp.maximum(x @ w1f + b1f, 0.0)
    h = jnp.maximum(jnp.dot(h.astype(jnp.bfloat16), w2.astype(jnp.bfloat16),
                            preferred_element_type=jnp.float32) + b2, 0.0)
    h = jnp.maximum(jnp.dot(h.astype(jnp.bfloat16), w3.astype(jnp.bfloat16),
                            preferred_element_type=jnp.float32) + b3, 0.0)
    return jnp.dot(h.astype(jnp.bfloat16), w4.astype(jnp.bfloat16),
                   preferred_element_type=jnp.float32) + b4


if __name__ == "__main__":
    OUTPUT_SIZE = 32

    key = jax.random.PRNGKey(0)
    key, kx = jax.random.split(key)
    params = init_params(key, OUTPUT_SIZE)

    # --- small primary check (single batch tile) ---
    B = 8
    x = jax.random.normal(kx, (B, 4), jnp.float32)
    out = jax.block_until_ready(net_forward(x, params))
    ref = reference_forward(x, params)
    assert out.shape == (B, OUTPUT_SIZE)
    assert jnp.allclose(out, ref, atol=1e-3, rtol=1e-3)

    # --- secondary check exercising batch tiling + padding ---
    key, kx2 = jax.random.split(key)
    B2 = 260
    x2 = jax.random.normal(kx2, (B2, 4), jnp.float32)
    out2 = jax.block_until_ready(net_forward(x2, params))
    ref2 = reference_forward(x2, params)
    assert out2.shape == (B2, OUTPUT_SIZE)
    assert jnp.allclose(out2, ref2, atol=1e-3, rtol=1e-3)

    print("KERNEL_OK")
</pallas_src>

<mosaic_0001>
module attributes {stable_mosaic.version = 11 : i64} {
  func.func @mlp_kernel(%arg0: i32, %arg1: memref<8x4xf32, #tpu.memory_space<vmem>>, %arg2: memref<4x8xf32, #tpu.memory_space<vmem>>, %arg3: memref<1x8xf32, #tpu.memory_space<vmem>>, %arg4: memref<8x512xbf16, #tpu.memory_space<vmem>>, %arg5: memref<1x512xf32, #tpu.memory_space<vmem>>, %arg6: memref<512x1024xbf16, #tpu.memory_space<vmem>>, %arg7: memref<1x1024xf32, #tpu.memory_space<vmem>>, %arg8: memref<1024x128xbf16, #tpu.memory_space<vmem>>, %arg9: memref<1x128xf32, #tpu.memory_space<vmem>>, %arg10: memref<8x128xf32, #tpu.memory_space<vmem>>) attributes {dimension_semantics = [#tpu.dimension_semantics<parallel>], iteration_bounds = array<i64: 1>, scalar_prefetch = 0 : i64, scratch_operands = 0 : i64, tpu.core_type = #tpu.core_type<tc>, window_params = [{transform_indices = @transform_0, window_bounds = array<i64: 8, 4>}, {pipeline_mode = #tpu.pipeline_mode<synchronous>, transform_indices = @transform_1, window_bounds = array<i64: 4, 8>}, {pipeline_mode = #tpu.pipeline_mode<synchronous>, transform_indices = @transform_2, window_bounds = array<i64: 1, 8>}, {pipeline_mode = #tpu.pipeline_mode<synchronous>, transform_indices = @transform_3, window_bounds = array<i64: 8, 512>}, {pipeline_mode = #tpu.pipeline_mode<synchronous>, transform_indices = @transform_4, window_bounds = array<i64: 1, 512>}, {pipeline_mode = #tpu.pipeline_mode<synchronous>, transform_indices = @transform_5, window_bounds = array<i64: 512, 1024>}, {pipeline_mode = #tpu.pipeline_mode<synchronous>, transform_indices = @transform_6, window_bounds = array<i64: 1, 1024>}, {pipeline_mode = #tpu.pipeline_mode<synchronous>, transform_indices = @transform_7, window_bounds = array<i64: 1024, 128>}, {pipeline_mode = #tpu.pipeline_mode<synchronous>, transform_indices = @transform_8, window_bounds = array<i64: 1, 128>}, {transform_indices = @transform_9, window_bounds = array<i64: 8, 128>}]} {
    %c0 = arith.constant 0 : index
    %c0_0 = arith.constant 0 : index
    %0 = vector.load %arg1[%c0, %c0_0] : memref<8x4xf32, #tpu.memory_space<vmem>>, vector<8x4xf32>
    %c0_1 = arith.constant 0 : index
    %c0_2 = arith.constant 0 : index
    %1 = vector.load %arg2[%c0_1, %c0_2] : memref<4x8xf32, #tpu.memory_space<vmem>>, vector<4x8xf32>
    %cst = arith.constant dense<0.000000e+00> : vector<8x8xf32>
    %2 = tpu.matmul %0, %1, %cst {dimension_numbers = #tpu.dot_dimension_numbers<[1], [0], [0], [1], [0, 0, 1, 1], [], []>} : vector<8x4xf32>, vector<4x8xf32>, vector<8x8xf32> -> vector<8x8xf32>
    %c0_3 = arith.constant 0 : index
    %c0_4 = arith.constant 0 : index
    %3 = vector.load %arg3[%c0_3, %c0_4] : memref<1x8xf32, #tpu.memory_space<vmem>>, vector<1x8xf32>
    %4 = vector.broadcast %3 : vector<1x8xf32> to vector<8x8xf32>
    %5 = arith.addf %2, %4 : vector<8x8xf32>
    %cst_5 = arith.constant 0.000000e+00 : f32
    %6 = vector.broadcast %cst_5 : f32 to vector<8x8xf32>
    %7 = arith.maximumf %5, %6 : vector<8x8xf32>
    %8 = arith.truncf %7 : vector<8x8xf32> to vector<8x8xbf16>
    %c0_6 = arith.constant 0 : index
    %c0_7 = arith.constant 0 : index
    %9 = vector.load %arg4[%c0_6, %c0_7] : memref<8x512xbf16, #tpu.memory_space<vmem>>, vector<8x512xbf16>
    %cst_8 = arith.constant dense<0.000000e+00> : vector<8x512xf32>
    %10 = tpu.matmul %8, %9, %cst_8 {dimension_numbers = #tpu.dot_dimension_numbers<[1], [0], [0], [1], [0, 0, 1, 1], [], []>} : vector<8x8xbf16>, vector<8x512xbf16>, vector<8x512xf32> -> vector<8x512xf32>
    %c0_9 = arith.constant 0 : index
    %c0_10 = arith.constant 0 : index
    %11 = vector.load %arg5[%c0_9, %c0_10] : memref<1x512xf32, #tpu.memory_space<vmem>>, vector<1x512xf32>
    %12 = vector.broadcast %11 : vector<1x512xf32> to vector<8x512xf32>
    %13 = arith.addf %10, %12 : vector<8x512xf32>
    %cst_11 = arith.constant 0.000000e+00 : f32
    %14 = vector.broadcast %cst_11 : f32 to vector<8x512xf32>
    %15 = arith.maximumf %13, %14 : vector<8x512xf32>
    %16 = arith.truncf %15 : vector<8x512xf32> to vector<8x512xbf16>
    %c0_12 = arith.constant 0 : index
    %c0_13 = arith.constant 0 : index
    %17 = vector.load %arg6[%c0_12, %c0_13] : memref<512x1024xbf16, #tpu.memory_space<vmem>>, vector<512x1024xbf16>
    %cst_14 = arith.constant dense<0.000000e+00> : vector<8x1024xf32>
    %18 = tpu.matmul %16, %17, %cst_14 {dimension_numbers = #tpu.dot_dimension_numbers<[1], [0], [0], [1], [0, 0, 1, 1], [], []>} : vector<8x512xbf16>, vector<512x1024xbf16>, vector<8x1024xf32> -> vector<8x1024xf32>
    %c0_15 = arith.constant 0 : index
    %c0_16 = arith.constant 0 : index
    %19 = vector.load %arg7[%c0_15, %c0_16] : memref<1x1024xf32, #tpu.memory_space<vmem>>, vector<1x1024xf32>
    %20 = vector.broadcast %19 : vector<1x1024xf32> to vector<8x1024xf32>
    %21 = arith.addf %18, %20 : vector<8x1024xf32>
    %cst_17 = arith.constant 0.000000e+00 : f32
    %22 = vector.broadcast %cst_17 : f32 to vector<8x1024xf32>
    %23 = arith.maximumf %21, %22 : vector<8x1024xf32>
    %24 = arith.truncf %23 : vector<8x1024xf32> to vector<8x1024xbf16>
    %c0_18 = arith.constant 0 : index
    %c0_19 = arith.constant 0 : index
    %25 = vector.load %arg8[%c0_18, %c0_19] : memref<1024x128xbf16, #tpu.memory_space<vmem>>, vector<1024x128xbf16>
    %cst_20 = arith.constant dense<0.000000e+00> : vector<8x128xf32>
    %26 = tpu.matmul %24, %25, %cst_20 {dimension_numbers = #tpu.dot_dimension_numbers<[1], [0], [0], [1], [0, 0, 1, 1], [], []>} : vector<8x1024xbf16>, vector<1024x128xbf16>, vector<8x128xf32> -> vector<8x128xf32>
    %c0_21 = arith.constant 0 : index
    %c0_22 = arith.constant 0 : index
    %27 = vector.load %arg9[%c0_21, %c0_22] : memref<1x128xf32, #tpu.memory_space<vmem>>, vector<1x128xf32>
    %28 = vector.broadcast %27 : vector<1x128xf32> to vector<8x128xf32>
    %29 = arith.addf %26, %28 : vector<8x128xf32>
    %c0_23 = arith.constant 0 : index
    %c0_24 = arith.constant 0 : index
    %30 = vector.load %arg10[%c0_23, %c0_24] : memref<8x128xf32, #tpu.memory_space<vmem>>, vector<8x128xf32>
    tpu.vector_store %arg10[%c0_23, %c0_24], %29 {strides = array<i32>} : memref<8x128xf32, #tpu.memory_space<vmem>>, vector<8x128xf32>,
    return
  }
  func.func @transform_0(%arg0: i32) -> (i32, i32) {
    %c0_i32 = arith.constant 0 : i32
    %c0_i32_0 = arith.constant 0 : i32
    return %arg0, %c0_i32 : i32, i32
  }
  func.func @transform_1(%arg0: i32) -> (i32, i32) {
    %c0_i32 = arith.constant 0 : i32
    %c0_i32_0 = arith.constant 0 : i32
    %c0_i32_1 = arith.constant 0 : i32
    return %c0_i32, %c0_i32_0 : i32, i32
  }
  func.func @transform_2(%arg0: i32) -> (i32, i32) {
    %c0_i32 = arith.constant 0 : i32
    %c0_i32_0 = arith.constant 0 : i32
    %c0_i32_1 = arith.constant 0 : i32
    return %c0_i32, %c0_i32_0 : i32, i32
  }
  func.func @transform_3(%arg0: i32) -> (i32, i32) {
    %c0_i32 = arith.constant 0 : i32
    %c0_i32_0 = arith.constant 0 : i32
    %c0_i32_1 = arith.constant 0 : i32
    return %c0_i32, %c0_i32_0 : i32, i32
  }
  func.func @transform_4(%arg0: i32) -> (i32, i32) {
    %c0_i32 = arith.constant 0 : i32
    %c0_i32_0 = arith.constant 0 : i32
    %c0_i32_1 = arith.constant 0 : i32
    return %c0_i32, %c0_i32_0 : i32, i32
  }
  func.func @transform_5(%arg0: i32) -> (i32, i32) {
    %c0_i32 = arith.constant 0 : i32
    %c0_i32_0 = arith.constant 0 : i32
    %c0_i32_1 = arith.constant 0 : i32
    return %c0_i32, %c0_i32_0 : i32, i32
  }
  func.func @transform_6(%arg0: i32) -> (i32, i32) {
    %c0_i32 = arith.constant 0 : i32
    %c0_i32_0 = arith.constant 0 : i32
    %c0_i32_1 = arith.constant 0 : i32
    return %c0_i32, %c0_i32_0 : i32, i32
  }
  func.func @transform_7(%arg0: i32) -> (i32, i32) {
    %c0_i32 = arith.constant 0 : i32
    %c0_i32_0 = arith.constant 0 : i32
    %c0_i32_1 = arith.constant 0 : i32
    return %c0_i32, %c0_i32_0 : i32, i32
  }
  func.func @transform_8(%arg0: i32) -> (i32, i32) {
    %c0_i32 = arith.constant 0 : i32
    %c0_i32_0 = arith.constant 0 : i32
    %c0_i32_1 = arith.constant 0 : i32
    return %c0_i32, %c0_i32_0 : i32, i32
  }
  func.func @transform_9(%arg0: i32) -> (i32, i32) {
    %c0_i32 = arith.constant 0 : i32
    %c0_i32_0 = arith.constant 0 : i32
    return %arg0, %c0_i32 : i32, i32
  }
}

module attributes {stable_mosaic.version = 11 : i64} {
  func.func @mlp_kernel(%arg0: i32, %arg1: memref<8x4xf32, #tpu.memory_space<vmem>>, %arg2: memref<4x8xf32, #tpu.memory_space<vmem>>, %arg3: memref<1x8xf32, #tpu.memory_space<vmem>>, %arg4: memref<8x512xbf16, #tpu.memory_space<vmem>>, %arg5: memref<1x512xf32, #tpu.memory_space<vmem>>, %arg6: memref<512x1024xbf16, #tpu.memory_space<vmem>>, %arg7: memref<1x1024xf32, #tpu.memory_space<vmem>>, %arg8: memref<1024x128xbf16, #tpu.memory_space<vmem>>, %arg9: memref<1x128xf32, #tpu.memory_space<vmem>>, %arg10: memref<8x128xf32, #tpu.memory_space<vmem>>) attributes {dimension_semantics = [#tpu.dimension_semantics<parallel>], iteration_bounds = array<i64: 1>, scalar_prefetch = 0 : i64, scratch_operands = 0 : i64, tpu.core_type = #tpu.core_type<tc>, window_params = [{transform_indices = @transform_0, window_bounds = array<i64: 8, 4>}, {pipeline_mode = #tpu.pipeline_mode<synchronous>, transform_indices = @transform_1, window_bounds = array<i64: 4, 8>}, {pipeline_mode = #tpu.pipeline_mode<synchronous>, transform_indices = @transform_2, window_bounds = array<i64: 1, 8>}, {pipeline_mode = #tpu.pipeline_mode<synchronous>, transform_indices = @transform_3, window_bounds = array<i64: 8, 512>}, {pipeline_mode = #tpu.pipeline_mode<synchronous>, transform_indices = @transform_4, window_bounds = array<i64: 1, 512>}, {pipeline_mode = #tpu.pipeline_mode<synchronous>, transform_indices = @transform_5, window_bounds = array<i64: 512, 1024>}, {pipeline_mode = #tpu.pipeline_mode<synchronous>, transform_indices = @transform_6, window_bounds = array<i64: 1, 1024>}, {pipeline_mode = #tpu.pipeline_mode<synchronous>, transform_indices = @transform_7, window_bounds = array<i64: 1024, 128>}, {pipeline_mode = #tpu.pipeline_mode<synchronous>, transform_indices = @transform_8, window_bounds = array<i64: 1, 128>}, {transform_indices = @transform_9, window_bounds = array<i64: 8, 128>}]} {
    %c0 = arith.constant 0 : index
    %c0_0 = arith.constant 0 : index
    %0 = vector.load %arg1[%c0, %c0_0] : memref<8x4xf32, #tpu.memory_space<vmem>>, vector<8x4xf32>
    %c0_1 = arith.constant 0 : index
    %c0_2 = arith.constant 0 : index
    %1 = vector.load %arg2[%c0_1, %c0_2] : memref<4x8xf32, #tpu.memory_space<vmem>>, vector<4x8xf32>
    %cst = arith.constant dense<0.000000e+00> : vector<8x8xf32>
    %2 = tpu.matmul %0, %1, %cst {dimension_numbers = #tpu.dot_dimension_numbers<[1], [0], [0], [1], [0, 0, 1, 1], [], []>} : vector<8x4xf32>, vector<4x8xf32>, vector<8x8xf32> -> vector<8x8xf32>
    %c0_3 = arith.constant 0 : index
    %c0_4 = arith.constant 0 : index
    %3 = vector.load %arg3[%c0_3, %c0_4] : memref<1x8xf32, #tpu.memory_space<vmem>>, vector<1x8xf32>
    %4 = vector.broadcast %3 : vector<1x8xf32> to vector<8x8xf32>
    %5 = arith.addf %2, %4 : vector<8x8xf32>
    %cst_5 = arith.constant 0.000000e+00 : f32
    %6 = vector.broadcast %cst_5 : f32 to vector<8x8xf32>
    %7 = arith.maximumf %5, %6 : vector<8x8xf32>
    %8 = arith.truncf %7 : vector<8x8xf32> to vector<8x8xbf16>
    %c0_6 = arith.constant 0 : index
    %c0_7 = arith.constant 0 : index
    %9 = vector.load %arg4[%c0_6, %c0_7] : memref<8x512xbf16, #tpu.memory_space<vmem>>, vector<8x512xbf16>
    %cst_8 = arith.constant dense<0.000000e+00> : vector<8x512xf32>
    %10 = tpu.matmul %8, %9, %cst_8 {dimension_numbers = #tpu.dot_dimension_numbers<[1], [0], [0], [1], [0, 0, 1, 1], [], []>} : vector<8x8xbf16>, vector<8x512xbf16>, vector<8x512xf32> -> vector<8x512xf32>
    %c0_9 = arith.constant 0 : index
    %c0_10 = arith.constant 0 : index
    %11 = vector.load %arg5[%c0_9, %c0_10] : memref<1x512xf32, #tpu.memory_space<vmem>>, vector<1x512xf32>
    %12 = vector.broadcast %11 : vector<1x512xf32> to vector<8x512xf32>
    %13 = arith.addf %10, %12 : vector<8x512xf32>
    %cst_11 = arith.constant 0.000000e+00 : f32
    %14 = vector.broadcast %cst_11 : f32 to vector<8x512xf32>
    %15 = arith.maximumf %13, %14 : vector<8x512xf32>
    %16 = arith.truncf %15 : vector<8x512xf32> to vector<8x512xbf16>
    %c0_12 = arith.constant 0 : index
    %c0_13 = arith.constant 0 : index
    %17 = vector.load %arg6[%c0_12, %c0_13] : memref<512x1024xbf16, #tpu.memory_space<vmem>>, vector<512x1024xbf16>
    %cst_14 = arith.constant dense<0.000000e+00> : vector<8x1024xf32>
    %18 = tpu.matmul %16, %17, %cst_14 {dimension_numbers = #tpu.dot_dimension_numbers<[1], [0], [0], [1], [0, 0, 1, 1], [], []>} : vector<8x512xbf16>, vector<512x1024xbf16>, vector<8x1024xf32> -> vector<8x1024xf32>
    %c0_15 = arith.constant 0 : index
    %c0_16 = arith.constant 0 : index
    %19 = vector.load %arg7[%c0_15, %c0_16] : memref<1x1024xf32, #tpu.memory_space<vmem>>, vector<1x1024xf32>
    %20 = vector.broadcast %19 : vector<1x1024xf32> to vector<8x1024xf32>
    %21 = arith.addf %18, %20 : vector<8x1024xf32>
    %cst_17 = arith.constant 0.000000e+00 : f32
    %22 = vector.broadcast %cst_17 : f32 to vector<8x1024xf32>
    %23 = arith.maximumf %21, %22 : vector<8x1024xf32>
    %24 = arith.truncf %23 : vector<8x1024xf32> to vector<8x1024xbf16>
    %c0_18 = arith.constant 0 : index
    %c0_19 = arith.constant 0 : index
    %25 = vector.load %arg8[%c0_18, %c0_19] : memref<1024x128xbf16, #tpu.memory_space<vmem>>, vector<1024x128xbf16>
    %cst_20 = arith.constant dense<0.000000e+00> : vector<8x128xf32>
    %26 = tpu.matmul %24, %25, %cst_20 {dimension_numbers = #tpu.dot_dimension_numbers<[1], [0], [0], [1], [0, 0, 1, 1], [], []>} : vector<8x1024xbf16>, vector<1024x128xbf16>, vector<8x128xf32> -> vector<8x128xf32>
    %c0_21 = arith.constant 0 : index
    %c0_22 = arith.constant 0 : index
    %27 = vector.load %arg9[%c0_21, %c0_22] : memref<1x128xf32, #tpu.memory_space<vmem>>, vector<1x128xf32>
    %28 = vector.broadcast %27 : vector<1x128xf32> to vector<8x128xf32>
    %29 = arith.addf %26, %28 : vector<8x128xf32>
    %c0_23 = arith.constant 0 : index
    %c0_24 = arith.constant 0 : index
    %30 = vector.load %arg10[%c0_23, %c0_24] : memref<8x128xf32, #tpu.memory_space<vmem>>, vector<8x128xf32>
    tpu.vector_store %arg10[%c0_23, %c0_24], %29 {strides = array<i32>} : memref<8x128xf32, #tpu.memory_space<vmem>>, vector<8x128xf32>,
    return
  }
  func.func @transform_0(%arg0: i32) -> (i32, i32) {
    %c0_i32 = arith.constant 0 : i32
    %c0_i32_0 = arith.constant 0 : i32
    return %arg0, %c0_i32 : i32, i32
  }
  func.func @transform_1(%arg0: i32) -> (i32, i32) {
    %c0_i32 = arith.constant 0 : i32
    %c0_i32_0 = arith.constant 0 : i32
    %c0_i32_1 = arith.constant 0 : i32
    return %c0_i32, %c0_i32_0 : i32, i32
  }
  func.func @transform_2(%arg0: i32) -> (i32, i32) {
    %c0_i32 = arith.constant 0 : i32
    %c0_i32_0 = arith.constant 0 : i32
    %c0_i32_1 = arith.constant 0 : i32
    return %c0_i32, %c0_i32_0 : i32, i32
  }
  func.func @transform_3(%arg0: i32) -> (i32, i32) {
    %c0_i32 = arith.constant 0 : i32
    %c0_i32_0 = arith.constant 0 : i32
    %c0_i32_1 = arith.constant 0 : i32
    return %c0_i32, %c0_i32_0 : i32, i32
  }
  func.func @transform_4(%arg0: i32) -> (i32, i32) {
    %c0_i32 = arith.constant 0 : i32
    %c0_i32_0 = arith.constant 0 : i32
    %c0_i32_1 = arith.constant 0 : i32
    return %c0_i32, %c0_i32_0 : i32, i32
  }
  func.func @transform_5(%arg0: i32) -> (i32, i32) {
    %c0_i32 = arith.constant 0 : i32
    %c0_i32_0 = arith.constant 0 : i32
    %c0_i32_1 = arith.constant 0 : i32
    return %c0_i32, %c0_i32_0 : i32, i32
  }
  func.func @transform_6(%arg0: i32) -> (i32, i32) {
    %c0_i32 = arith.constant 0 : i32
    %c0_i32_0 = arith.constant 0 : i32
    %c0_i32_1 = arith.constant 0 : i32
    return %c0_i32, %c0_i32_0 : i32, i32
  }
  func.func @transform_7(%arg0: i32) -> (i32, i32) {
    %c0_i32 = arith.constant 0 : i32
    %c0_i32_0 = arith.constant 0 : i32
    %c0_i32_1 = arith.constant 0 : i32
    return %c0_i32, %c0_i32_0 : i32, i32
  }
  func.func @transform_8(%arg0: i32) -> (i32, i32) {
    %c0_i32 = arith.constant 0 : i32
    %c0_i32_0 = arith.constant 0 : i32
    %c0_i32_1 = arith.constant 0 : i32
    return %c0_i32, %c0_i32_0 : i32, i32
  }
  func.func @transform_9(%arg0: i32) -> (i32, i32) {
    %c0_i32 = arith.constant 0 : i32
    %c0_i32_0 = arith.constant 0 : i32
    return %arg0, %c0_i32 : i32, i32
  }
}

</mosaic_0001>

<llo_original>
// kernel: tpu_custom_call.1
$region0: #{tpu_custom_call.1}
  #allocation0 [shape = 'u32[]', space=smem, size = 0x4, offset = 0x4, fixed_abs, tag = 'smem constant byte address 0x4 - core index']
  #allocation1 [shape = 'u32[144,128]{1,0:T(1,128)}', space=vmem, size = 0x12000, scoped, tag = 'internal scratch']
  %s0 = inlined_call_operand.vmem [shape: f32[8,4], index: 0, kind: input, shape index: {}]
  %s1 = inlined_call_operand.hbm [shape: f32[4,8], index: 1, kind: input, shape index: {}]
  %s2 = inlined_call_operand.vmem [shape: f32[1,8], index: 2, kind: input, shape index: {}]
  %s3 = inlined_call_operand.vmem [shape: bf16[8,512], index: 3, kind: input, shape index: {}]
  %s4 = inlined_call_operand.hbm [shape: f32[1,512], index: 4, kind: input, shape index: {}]
  %s5 = inlined_call_operand.hbm [shape: bf16[512,1024], index: 5, kind: input, shape index: {}]
  %s6 = inlined_call_operand.hbm [shape: f32[1,1024], index: 6, kind: input, shape index: {}]
  %s7 = inlined_call_operand.hbm [shape: bf16[1024,128], index: 7, kind: input, shape index: {}]
  %s8 = inlined_call_operand.vmem [shape: f32[1,128], index: 8, kind: input, shape index: {}]
  %s9 = inlined_call_operand.hbm [shape: f32[8,128], index: 9, kind: output, shape index: {}]
  %s10 = sld [smem:[#allocation0]]
  $region66: #{tpu_custom_call.1} parent=0
    _
  %s12 = ssub.s32 1, %s10
  %s13 = scalar_select 0, %s12, %s10
  $region1: #{tpu_custom_call.1} parent=0
    #allocation2 [shape = 'u8[2048]{0}', space=vmem, size = 0x800, scoped, tag = 'input window, operand 1, single buffered']
    #allocation3 [shape = 's32[1]{0}', space=sflag, size = 0x4, scoped, tag = 'scoped memory for tpu_custom_call.1']
    #allocation4 [shape = 's32[1]{0}', space=sflag, size = 0x4, scoped, tag = 'scoped memory for tpu_custom_call.1']
    #allocation5 [shape = 'u8[2048]{0}', space=vmem, size = 0x800, scoped, tag = 'input window, operand 4, single buffered']
    #allocation6 [shape = 's32[1]{0}', space=sflag, size = 0x4, scoped, tag = 'scoped memory for tpu_custom_call.1']
    #allocation7 [shape = 'u8[1048576]{0}', space=vmem, size = 0x100000, scoped, tag = 'input window, operand 5, single buffered']
    #allocation8 [shape = 'u8[4096]{0}', space=vmem, size = 0x1000, scoped, tag = 'input window, operand 6, single buffered']
    #allocation9 [shape = 's32[1]{0}', space=sflag, size = 0x4, scoped, tag = 'scoped memory for tpu_custom_call.1']
    #allocation10 [shape = 'u8[262144]{0}', space=vmem, size = 0x40000, scoped, tag = 'input window, operand 7, single buffered']
    #allocation11 [shape = 'u8[4096]{0}', space=vmem, size = 0x1000, scoped, tag = 'output window, operand 0, single buffered']
    %14 = vsyncpa [#allocation3], 0
    %15 = vsyncpa [#allocation6], 0
    %16 = vsyncpa [#allocation9], 0
    %17 = vsyncpa [#allocation4], 0
    // Predicated region
    $region2: #{tpu_custom_call.1} parent=1 // pred_check
      _
    $region3: #{tpu_custom_call.1} parent=1 // pred_check_branch
      %19 = sbr.rel (0) target = $region5
    $region4: #{tpu_custom_call.1} parent=1 // pred_region
      _
    $region5: #{tpu_custom_call.1} parent=1 // pred_fallthru
      _
    // Predicated region
    $region6: #{tpu_custom_call.1} parent=1 // pred_check
      _
    $region7: #{tpu_custom_call.1} parent=1 // pred_check_branch
      %21 = sbr.rel (0) target = $region9
    $region8: #{tpu_custom_call.1} parent=1 // pred_region
      %s23 = ssub.s32 64, 64
      %24 = vsyncadd [#allocation3], %s23
      %s26 = sshll.u32 [#allocation2], 4
      %s27 = int_to_ptr.vmem [resolvable:$true] %s26
      %29 = dma.hbm_to_vmem [thread:$0]  %s1, 64, %s27, [#allocation3]
    $region9: #{tpu_custom_call.1} parent=1 // pred_fallthru
      _
    // Predicated region
    $region10: #{tpu_custom_call.1} parent=1 // pred_check
      _
    $region11: #{tpu_custom_call.1} parent=1 // pred_check_branch
      %31 = sbr.rel (0) target = $region13
    $region12: #{tpu_custom_call.1} parent=1 // pred_region
      _
    $region13: #{tpu_custom_call.1} parent=1 // pred_fallthru
      _
    // Predicated region
    $region14: #{tpu_custom_call.1} parent=1 // pred_check
      _
    $region15: #{tpu_custom_call.1} parent=1 // pred_check_branch
      %33 = sbr.rel (0) target = $region17
    $region16: #{tpu_custom_call.1} parent=1 // pred_region
      _
    $region17: #{tpu_custom_call.1} parent=1 // pred_fallthru
      _
    // Predicated region
    $region18: #{tpu_custom_call.1} parent=1 // pred_check
      _
    $region19: #{tpu_custom_call.1} parent=1 // pred_check_branch
      %35 = sbr.rel (0) target = $region21
    $region20: #{tpu_custom_call.1} parent=1 // pred_region
      %s37 = ssub.s32 64, 64
      %38 = vsyncadd [#allocation6], %s37
      %s40 = sshll.u32 [#allocation5], 4
      %s41 = int_to_ptr.vmem [resolvable:$true] %s40
      %43 = dma.hbm_to_vmem [thread:$0]  %s4, 64, %s41, [#allocation6]
    $region21: #{tpu_custom_call.1} parent=1 // pred_fallthru
      _
    // Predicated region
    $region22: #{tpu_custom_call.1} parent=1 // pred_check
      _
    $region23: #{tpu_custom_call.1} parent=1 // pred_check_branch
      %45 = sbr.rel (0) target = $region25
    $region24: #{tpu_custom_call.1} parent=1 // pred_region
      %s47 = ssub.s32 32768, 32768
      %48 = vsyncadd [#allocation6], %s47
      %s49 = sshll.u32 [#allocation7], 4
      %s50 = int_to_ptr.vmem [resolvable:$true] %s49
      %55 = dma.hbm_to_vmem [thread:$0]  %s5, 32768, %s50, [#allocation6], 512, 512, 32
    $region25: #{tpu_custom_call.1} parent=1 // pred_fallthru
      _
    // Predicated region
    $region26: #{tpu_custom_call.1} parent=1 // pred_check
      _
    $region27: #{tpu_custom_call.1} parent=1 // pred_check_branch
      %57 = sbr.rel (0) target = $region29
    $region28: #{tpu_custom_call.1} parent=1 // pred_region
      %s59 = ssub.s32 128, 128
      %60 = vsyncadd [#allocation9], %s59
      %s62 = sshll.u32 [#allocation8], 4
      %s63 = int_to_ptr.vmem [resolvable:$true] %s62
      %65 = dma.hbm_to_vmem [thread:$0]  %s6, 128, %s63, [#allocation9]
    $region29: #{tpu_custom_call.1} parent=1 // pred_fallthru
      _
    // Predicated region
    $region30: #{tpu_custom_call.1} parent=1 // pred_check
      _
    $region31: #{tpu_custom_call.1} parent=1 // pred_check_branch
      %67 = sbr.rel (0) target = $region33
    $region32: #{tpu_custom_call.1} parent=1 // pred_region
      %s69 = ssub.s32 8192, 8192
      %70 = vsyncadd [#allocation9], %s69
      %s71 = sshll.u32 [#allocation10], 4
      %s72 = int_to_ptr.vmem [resolvable:$true] %s71
      %77 = dma.hbm_to_vmem [thread:$0]  %s7, 8192, %s72, [#allocation9], 64, 64, 4
    $region33: #{tpu_custom_call.1} parent=1 // pred_fallthru
      _
    // Predicated region
    $region34: #{tpu_custom_call.1} parent=1 // pred_check
      _
    $region35: #{tpu_custom_call.1} parent=1 // pred_check_branch
      %79 = sbr.rel (0) target = $region37
    $region36: #{tpu_custom_call.1} parent=1 // pred_region
      _
    $region37: #{tpu_custom_call.1} parent=1 // pred_fallthru
      _
    // Predicated region
    $region38: #{tpu_custom_call.1} parent=1 // pred_check
      _
    $region39: #{tpu_custom_call.1} parent=1 // pred_check_branch
      %81 = sbr.rel (0) target = $region41
    $region40: #{tpu_custom_call.1} parent=1 // pred_region
      %82 = dma.done [#allocation3], 64
    $region41: #{tpu_custom_call.1} parent=1 // pred_fallthru
      _
    // Predicated region
    $region42: #{tpu_custom_call.1} parent=1 // pred_check
      _
    $region43: #{tpu_custom_call.1} parent=1 // pred_check_branch
      %84 = sbr.rel (0) target = $region45
    $region44: #{tpu_custom_call.1} parent=1 // pred_region
      %85 = dma.done [#allocation6], 64
    $region45: #{tpu_custom_call.1} parent=1 // pred_fallthru
      _
    // Predicated region
    $region46: #{tpu_custom_call.1} parent=1 // pred_check
      _
    $region47: #{tpu_custom_call.1} parent=1 // pred_check_branch
      %87 = sbr.rel (0) target = $region49
    $region48: #{tpu_custom_call.1} parent=1 // pred_region
      %88 = dma.done [#allocation6], 32768
    $region49: #{tpu_custom_call.1} parent=1 // pred_fallthru
      _
    // Predicated region
    $region50: #{tpu_custom_call.1} parent=1 // pred_check
      _
    $region51: #{tpu_custom_call.1} parent=1 // pred_check_branch
      %90 = sbr.rel (0) target = $region53
    $region52: #{tpu_custom_call.1} parent=1 // pred_region
      %91 = dma.done [#allocation9], 128
    $region53: #{tpu_custom_call.1} parent=1 // pred_fallthru
      _
    // Predicated region
    $region54: #{tpu_custom_call.1} parent=1 // pred_check
      _
    $region55: #{tpu_custom_call.1} parent=1 // pred_check_branch
      %93 = sbr.rel (0) target = $region57
    $region56: #{tpu_custom_call.1} parent=1 // pred_region
      %94 = dma.done [#allocation9], 8192
    $region57: #{tpu_custom_call.1} parent=1 // pred_fallthru
      _
    %v96 = vld [vmem:[%s0] sm:$0xff]
    %v97 = vld [vmem:[#allocation2] sm:$0xf]
    %v98 = vld [vmem:[%s2] sm:$0x1]
    %v100 = vlaneseq
    %v101 = vshrl.u32 %v100, 7
    %v102 = vsub.s32 0, %v101
    %v103 = vrot.slane %v98, %v102
    %vm105 = vcmask 31744
    %v107 = vsel %vm105, %v96, 0
    %vm109 = vcmask 1043456
    %v111 = vsel %vm109, %v97, 0
    %113 = vmatprep.subr.mxu0 0.0
    %114 = vmatpush1.msra.mxu0 0.0
    %115 = vmatprep.subr.mxu0 0.0
    %116 = vmatpush1.msra.mxu0 0.0
    %117 = vmatprep.subr.mxu0 0.0
    %118 = vmatpush1.msra.mxu0 0.0
    %119 = vmatprep.subr.mxu0 0.0
    %120 = vmatpush1.msra.mxu0 0.0
    %121 = vmatprep.subr.mxu0 0.0
    %122 = vmatpush1.msra.mxu0 0.0
    %123 = vmatprep.subr.mxu0 0.0
    %124 = vmatpush1.msra.mxu0 0.0
    %125 = vmatprep.subr.mxu0 0.0
    %126 = vmatpush1.msra.mxu0 0.0
    %127 = vmatprep.subr.mxu0 0.0
    %128 = vmatpush1.msra.mxu0 0.0
    %129 = vmatprep.subr.mxu0 0.0
    %130 = vmatpush1.msra.mxu0 0.0
    %131 = vmatprep.subr.mxu0 0.0
    %132 = vmatpush1.msra.mxu0 0.0
    %133 = vmatprep.subr.mxu0 0.0
    %134 = vmatpush1.msra.mxu0 0.0
    %135 = vmatprep.subr.mxu0 0.0
    %136 = vmatpush1.msra.mxu0 0.0
    %137 = vmatprep.subr.mxu0 0.0
    %138 = vmatpush1.msra.mxu0 0.0
    %139 = vmatprep.subr.mxu0 0.0
    %140 = vmatpush1.msra.mxu0 0.0
    %141 = vmatprep.subr.mxu0 0.0
    %142 = vmatpush1.msra.mxu0 0.0
    %143 = vmatprep.subr.mxu0 0.0
    %144 = vmatpush1.msra.mxu0 %v111
    %145 = vmatprep.subr.mxu0 0.0
    %146 = vmatpush2.msra.mxu0 0.0
    %147 = vmatprep.subr.mxu0 0.0
    %148 = vmatpush2.msra.mxu0 0.0
    %149 = vmatprep.subr.mxu0 0.0
    %150 = vmatpush2.msra.mxu0 0.0
    %151 = vmatprep.subr.mxu0 0.0
    %152 = vmatpush2.msra.mxu0 0.0
    %153 = vmatprep.subr.mxu0 0.0
    %154 = vmatpush2.msra.mxu0 0.0
    %155 = vmatprep.subr.mxu0 0.0
    %156 = vmatpush2.msra.mxu0 0.0
    %157 = vmatprep.subr.mxu0 0.0
    %158 = vmatpush2.msra.mxu0 0.0
    %159 = vmatprep.subr.mxu0 0.0
    %160 = vmatpush2.msra.mxu0 0.0
    %161 = vmatprep.subr.mxu0 0.0
    %162 = vmatpush2.msra.mxu0 0.0
    %163 = vmatprep.subr.mxu0 0.0
    %164 = vmatpush2.msra.mxu0 0.0
    %165 = vmatprep.subr.mxu0 0.0
    %166 = vmatpush2.msra.mxu0 0.0
    %167 = vmatprep.subr.mxu0 0.0
    %168 = vmatpush2.msra.mxu0 0.0
    %169 = vmatprep.subr.mxu0 0.0
    %170 = vmatpush2.msra.mxu0 0.0
    %171 = vmatprep.subr.mxu0 0.0
    %172 = vmatpush2.msra.mxu0 0.0
    %173 = vmatprep.subr.mxu0 0.0
    %174 = vmatpush2.msra.mxu0 0.0
    %175 = vmatprep.subr.mxu0 0.0
    %176 = vmatpush2.msra.mxu0 0.0
    %177 = vmatprep.mubr.f32.mxu0 0.0
    %178 = vmatmul.mubr.f32.gmra.mxu0 %v107
    %v179 = vpop.f32.mrf.mxu0
    %v180 = vadd.f32 %v103, %v179
    %v181 = vpop.f32.mrf.mxu0
    %182 = vdwg.mxu0
    %v183 = vmax.f32 %v180, 0.0
    %v184 = vpack.c.bf16 %v183, %v183
    %v185 = vld [vmem:[%s3] sm:$0xff]
    %v186 = vld [vmem:[%s3 + $0x8] sm:$0xff]
    %v187 = vld [vmem:[#allocation5] sm:$0xf]
    %v189 = vlaneseq
    %v190 = vshrl.u32 %v189, 7
    %v191 = vsub.s32 0, %v190
    %v192 = vrot.slane %v187, %v191
    %v193 = vlaneseq
    %v194 = vshrl.u32 %v193, 7
    %v195 = vsub.s32 1, %v194
    %v196 = vrot.slane %v187, %v195
    %v197 = vlaneseq
    %v198 = vshrl.u32 %v197, 7
    %v199 = vsub.s32 2, %v198
    %v200 = vrot.slane %v187, %v199
    %v201 = vlaneseq
    %v202 = vshrl.u32 %v201, 7
    %v203 = vsub.s32 3, %v202
    %v204 = vrot.slane %v187, %v203
    %v211 = vunpack.c.l.b16 %v185
    %v212 = vunpack.c.h.b16 %v185
    %v213 = vunpack.c.l.b16 %v186
    %v214 = vunpack.c.h.b16 %v186
    %v215 = vpack.c.b16 %v211, %v211
    %v216 = vpack.c.b16 %v212, %v212
    %v217 = vpack.c.b16 %v213, %v213
    %v218 = vpack.c.b16 %v214, %v214
    %vm219 = vcmask 64512
    %v221 = vsel %vm219, %v184, 0
    %v224 = vsel %vm109, %v215, 0
    %v227 = vsel %vm109, %v216, 0
    %v230 = vsel %vm109, %v217, 0
    %v233 = vsel %vm109, %v218, 0
    %235 = vmatprep.subr.bf16.mxu0 0
    %236 = vmatpush1.bf16.msra.mxu0 0
    %237 = vmatprep.subr.bf16.mxu0 0
    %238 = vmatpush1.bf16.msra.mxu0 0
    %239 = vmatprep.subr.bf16.mxu0 0
    %240 = vmatpush1.bf16.msra.mxu0 0
    %241 = vmatprep.subr.bf16.mxu0 0
    %242 = vmatpush1.bf16.msra.mxu0 0
    %243 = vmatprep.subr.bf16.mxu0 0
    %244 = vmatpush1.bf16.msra.mxu0 0
    %245 = vmatprep.subr.bf16.mxu0 0
    %246 = vmatpush1.bf16.msra.mxu0 0
    %247 = vmatprep.subr.bf16.mxu0 0
    %248 = vmatpush1.bf16.msra.mxu0 0
    %249 = vmatprep.subr.bf16.mxu0 %v227
    %250 = vmatpush1.bf16.msra.mxu0 %v224
    %251 = vmatprep.subr.bf16.mxu0 0
    %252 = vmatpush2.bf16.msra.mxu0 0
    %253 = vmatprep.subr.bf16.mxu0 0
    %254 = vmatpush2.bf16.msra.mxu0 0
    %255 = vmatprep.subr.bf16.mxu0 0
    %256 = vmatpush2.bf16.msra.mxu0 0
    %257 = vmatprep.subr.bf16.mxu0 0
    %258 = vmatpush2.bf16.msra.mxu0 0
    %259 = vmatprep.subr.bf16.mxu0 0
    %260 = vmatpush2.bf16.msra.mxu0 0
    %261 = vmatprep.subr.bf16.mxu0 0
    %262 = vmatpush2.bf16.msra.mxu0 0
    %263 = vmatprep.subr.bf16.mxu0 0
    %264 = vmatpush2.bf16.msra.mxu0 0
    %265 = vmatprep.subr.bf16.mxu0 0
    %266 = vmatpush2.bf16.msra.mxu0 0
    %267 = vmatprep.mubr.bf16.mxu0 0
    %268 = vmatmul.mubr.bf16.gmra.mxu0 %v221
    %v269 = vpop.f32.mrf.mxu0
    %v270 = vadd.f32 %v192, %v269
    %v271 = vpop.f32.mrf.mxu0
    %v272 = vadd.f32 %v196, %v271
    %v273 = vpop.f32.mrf.mxu0
    %v274 = vpop.f32.mrf.mxu0
    %275 = vdwg.mxu0
    %276 = vmatprep.subr.bf16.mxu0 0
    %277 = vmatpush1.bf16.msra.mxu0 0
    %278 = vmatprep.subr.bf16.mxu0 0
    %279 = vmatpush1.bf16.msra.mxu0 0
    %280 = vmatprep.subr.bf16.mxu0 0
    %281 = vmatpush1.bf16.msra.mxu0 0
    %282 = vmatprep.subr.bf16.mxu0 0
    %283 = vmatpush1.bf16.msra.mxu0 0
    %284 = vmatprep.subr.bf16.mxu0 0
    %285 = vmatpush1.bf16.msra.mxu0 0
    %286 = vmatprep.subr.bf16.mxu0 0
    %287 = vmatpush1.bf16.msra.mxu0 0
    %288 = vmatprep.subr.bf16.mxu0 0
    %289 = vmatpush1.bf16.msra.mxu0 0
    %290 = vmatprep.subr.bf16.mxu0 %v233
    %291 = vmatpush1.bf16.msra.mxu0 %v230
    %292 = vmatprep.subr.bf16.mxu0 0
    %293 = vmatpush2.bf16.msra.mxu0 0
    %294 = vmatprep.subr.bf16.mxu0 0
    %295 = vmatpush2.bf16.msra.mxu0 0
    %296 = vmatprep.subr.bf16.mxu0 0
    %297 = vmatpush2.bf16.msra.mxu0 0
    %298 = vmatprep.subr.bf16.mxu0 0
    %299 = vmatpush2.bf16.msra.mxu0 0
    %300 = vmatprep.subr.bf16.mxu0 0
    %301 = vmatpush2.bf16.msra.mxu0 0
    %302 = vmatprep.subr.bf16.mxu0 0
    %303 = vmatpush2.bf16.msra.mxu0 0
    %304 = vmatprep.subr.bf16.mxu0 0
    %305 = vmatpush2.bf16.msra.mxu0 0
    %306 = vmatprep.subr.bf16.mxu0 0
    %307 = vmatpush2.bf16.msra.mxu0 0
    %308 = vmatprep.mubr.bf16.mxu0 0
    %309 = vmatmul.mubr.bf16.gmra.mxu0 %v221
    %v310 = vpop.f32.mrf.mxu0
    %v311 = vadd.f32 %v200, %v310
    %v312 = vpop.f32.mrf.mxu0
    %v313 = vadd.f32 %v204, %v312
    %v314 = vpop.f32.mrf.mxu0
    %v315 = vpop.f32.mrf.mxu0
    %316 = vdwg.mxu0
    %v317 = vmax.f32 %v270, 0.0
    %v318 = vmax.f32 %v272, 0.0
    %v319 = vmax.f32 %v311, 0.0
    %v320 = vmax.f32 %v313, 0.0
    %v321 = vpack.c.bf16 %v317, %v317
    %v322 = vpack.c.bf16 %v318, %v318
    %v323 = vpack.c.bf16 %v319, %v319
    %v324 = vpack.c.bf16 %v320, %v320
    %v325 = vld [vmem:[#allocation7] sm:$0xff]
    %v326 = vld [vmem:[#allocation7 + $0x8] sm:$0xff]
    %v327 = vld [vmem:[#allocation7 + $0x10] sm:$0xff]
    %v328 = vld [vmem:[#allocation7 + $0x18] sm:$0xff]
    %v329 = vld [vmem:[#allocation7 + $0x20] sm:$0xff]
    %v330 = vld [vmem:[#allocation7 + $0x28] sm:$0xff]
    %v331 = vld [vmem:[#allocation7 + $0x30] sm:$0xff]
    %v332 = vld [vmem:[#allocation7 + $0x38] sm:$0xff]
    %v333 = vld [vmem:[#allocation7 + $0x40] sm:$0xff]
    %v334 = vld [vmem:[#allocation7 + $0x48] sm:$0xff]
    %v335 = vld [vmem:[#allocation7 + $0x50] sm:$0xff]
    %v336 = vld [vmem:[#allocation7 + $0x58] sm:$0xff]
    %v337 = vld [vmem:[#allocation7 + $0x60] sm:$0xff]
    %v338 = vld [vmem:[#allocation7 + $0x68] sm:$0xff]
    %v339 = vld [vmem:[#allocation7 + $0x70] sm:$0xff]
    %v340 = vld [vmem:[#allocation7 + $0x78] sm:$0xff]
    %v341 = vld [vmem:[#allocation7 + $0x80] sm:$0xff]
    %v342 = vld [vmem:[#allocation7 + $0x88] sm:$0xff]
    %v343 = vld [vmem:[#allocation7 + $0x90] sm:$0xff]
    %v344 = vld [vmem:[#allocation7 + $0x98] sm:$0xff]
    %v345 = vld [vmem:[#allocation7 + $0xa0] sm:$0xff]
    %v346 = vld [vmem:[#allocation7 + $0xa8] sm:$0xff]
    %v347 = vld [vmem:[#allocation7 + $0xb0] sm:$0xff]
    %v348 = vld [vmem:[#allocation7 + $0xb8] sm:$0xff]
    %v349 = vld [vmem:[#allocation7 + $0xc0] sm:$0xff]
    %v350 = vld [vmem:[#allocation7 + $0xc8] sm:$0xff]
    %v351 = vld [vmem:[#allocation7 + $0xd0] sm:$0xff]
    %v352 = vld [vmem:[#allocation7 + $0xd8] sm:$0xff]
    %v353 = vld [vmem:[#allocation7 + $0xe0] sm:$0xff]
    %v354 = vld [vmem:[#allocation7 + $0xe8] sm:$0xff]
    %v355 = vld [vmem:[#allocation7 + $0xf0] sm:$0xff]
    %v356 = vld [vmem:[#allocation7 + $0xf8] sm:$0xff]
    %v357 = vld [vmem:[#allocation7 + $0x100] sm:$0xff]
    %v358 = vld [vmem:[#allocation7 + $0x108] sm:$0xff]
    %v359 = vld [vmem:[#allocation7 + $0x110] sm:$0xff]
    %v360 = vld [vmem:[#allocation7 + $0x118] sm:$0xff]
    %v361 = vld [vmem:[#allocation7 + $0x120] sm:$0xff]
    %v362 = vld [vmem:[#allocation7 + $0x128] sm:$0xff]
    %v363 = vld [vmem:[#allocation7 + $0x130] sm:$0xff]
    %v364 = vld [vmem:[#allocation7 + $0x138] sm:$0xff]
    %v365 = vld [vmem:[#allocation7 + $0x140] sm:$0xff]
    %v366 = vld [vmem:[#allocation7 + $0x148] sm:$0xff]
    %v367 = vld [vmem:[#allocation7 + $0x150] sm:$0xff]
    %v368 = vld [vmem:[#allocation7 + $0x158] sm:$0xff]
    %v369 = vld [vmem:[#allocation7 + $0x160] sm:$0xff]
    %v370 = vld [vmem:[#allocation7 + $0x168] sm:$0xff]
    %v371 = vld [vmem:[#allocation7 + $0x170] sm:$0xff]
    %v372 = vld [vmem:[#allocation7 + $0x178] sm:$0xff]
    %v373 = vld [vmem:[#allocation7 + $0x180] sm:$0xff]
    %v374 = vld [vmem:[#allocation7 + $0x188] sm:$0xff]
    %v375 = vld [vmem:[#allocation7 + $0x190] sm:$0xff]
    %v376 = vld [vmem:[#allocation7 + $0x198] sm:$0xff]
    %v377 = vld [vmem:[#allocation7 + $0x1a0] sm:$0xff]
    %v378 = vld [vmem:[#allocation7 + $0x1a8] sm:$0xff]
    %v379 = vld [vmem:[#allocation7 + $0x1b0] sm:$0xff]
    %v380 = vld [vmem:[#allocation7 + $0x1b8] sm:$0xff]
    %v381 = vld [vmem:[#allocation7 + $0x1c0] sm:$0xff]
    %v382 = vld [vmem:[#allocation7 + $0x1c8] sm:$0xff]
    %v383 = vld [vmem:[#allocation7 + $0x1d0] sm:$0xff]
    %v384 = vld [vmem:[#allocation7 + $0x1d8] sm:$0xff]
    %v385 = vld [vmem:[#allocation7 + $0x1e0] sm:$0xff]
    %v386 = vld [vmem:[#allocation7 + $0x1e8] sm:$0xff]
    %v387 = vld [vmem:[#allocation7 + $0x1f0] sm:$0xff]
    %v388 = vld [vmem:[#allocation7 + $0x1f8] sm:$0xff]
    %v389 = vld [vmem:[#allocation7 + $0x200] sm:$0xff]
    %v390 = vld [vmem:[#allocation7 + $0x208] sm:$0xff]
    %v391 = vld [vmem:[#allocation7 + $0x210] sm:$0xff]
    %v392 = vld [vmem:[#allocation7 + $0x218] sm:$0xff]
    %v393 = vld [vmem:[#allocation7 + $0x220] sm:$0xff]
    %v394 = vld [vmem:[#allocation7 + $0x228] sm:$0xff]
    %v395 = vld [vmem:[#allocation7 + $0x230] sm:$0xff]
    %v396 = vld [vmem:[#allocation7 + $0x238] sm:$0xff]
    %v397 = vld [vmem:[#allocation7 + $0x240] sm:$0xff]
    %v398 = vld [vmem:[#allocation7 + $0x248] sm:$0xff]
    %v399 = vld [vmem:[#allocation7 + $0x250] sm:$0xff]
    %v400 = vld [vmem:[#allocation7 + $0x258] sm:$0xff]
    %v401 = vld [vmem:[#allocation7 + $0x260] sm:$0xff]
    %v402 = vld [vmem:[#allocation7 + $0x268] sm:$0xff]
    %v403 = vld [vmem:[#allocation7 + $0x270] sm:$0xff]
    %v404 = vld [vmem:[#allocation7 + $0x278] sm:$0xff]
    %v405 = vld [vmem:[#allocation7 + $0x280] sm:$0xff]
    %v406 = vld [vmem:[#allocation7 + $0x288] sm:$0xff]
    %v407 = vld [vmem:[#allocation7 + $0x290] sm:$0xff]
    %v408 = vld [vmem:[#allocation7 + $0x298] sm:$0xff]
    %v409 = vld [vmem:[#allocation7 + $0x2a0] sm:$0xff]
    %v410 = vld [vmem:[#allocation7 + $0x2a8] sm:$0xff]
    %v411 = vld [vmem:[#allocation7 + $0x2b0] sm:$0xff]
    %v412 = vld [vmem:[#allocation7 + $0x2b8] sm:$0xff]
    %v413 = vld [vmem:[#allocation7 + $0x2c0] sm:$0xff]
    %v414 = vld [vmem:[#allocation7 + $0x2c8] sm:$0xff]
    %v415 = vld [vmem:[#allocation7 + $0x2d0] sm:$0xff]
    %v416 = vld [vmem:[#allocation7 + $0x2d8] sm:$0xff]
    %v417 = vld [vmem:[#allocation7 + $0x2e0] sm:$0xff]
    %v418 = vld [vmem:[#allocation7 + $0x2e8] sm:$0xff]
    %v419 = vld [vmem:[#allocation7 + $0x2f0] sm:$0xff]
    %v420 = vld [vmem:[#allocation7 + $0x2f8] sm:$0xff]
    %v421 = vld [vmem:[#allocation7 + $0x300] sm:$0xff]
    %v422 = vld [vmem:[#allocation7 + $0x308] sm:$0xff]
    %v423 = vld [vmem:[#allocation7 + $0x310] sm:$0xff]
    %v424 = vld [vmem:[#allocation7 + $0x318] sm:$0xff]
    %v425 = vld [vmem:[#allocation7 + $0x320] sm:$0xff]
    %v426 = vld [vmem:[#allocation7 + $0x328] sm:$0xff]
    %v427 = vld [vmem:[#allocation7 + $0x330] sm:$0xff]
    %v428 = vld [vmem:[#allocation7 + $0x338] sm:$0xff]
    %v429 = vld [vmem:[#allocation7 + $0x340] sm:$0xff]
    %v430 = vld [vmem:[#allocation7 + $0x348] sm:$0xff]
    %v431 = vld [vmem:[#allocation7 + $0x350] sm:$0xff]
    %v432 = vld [vmem:[#allocation7 + $0x358] sm:$0xff]
    %v433 = vld [vmem:[#allocation7 + $0x360] sm:$0xff]
    %v434 = vld [vmem:[#allocation7 + $0x368] sm:$0xff]
    %v435 = vld [vmem:[#allocation7 + $0x370] sm:$0xff]
    %v436 = vld [vmem:[#allocation7 + $0x378] sm:$0xff]
    %v437 = vld [vmem:[#allocation7 + $0x380] sm:$0xff]
    %v438 = vld [vmem:[#allocation7 + $0x388] sm:$0xff]
    %v439 = vld [vmem:[#allocation7 + $0x390] sm:$0xff]
    %v440 = vld [vmem:[#allocation7 + $0x398] sm:$0xff]
    %v441 = vld [vmem:[#allocation7 + $0x3a0] sm:$0xff]
    %v442 = vld [vmem:[#allocation7 + $0x3a8] sm:$0xff]
    %v443 = vld [vmem:[#allocation7 + $0x3b0] sm:$0xff]
    %v444 = vld [vmem:[#allocation7 + $0x3b8] sm:$0xff]
    %v445 = vld [vmem:[#allocation7 + $0x3c0] sm:$0xff]
    %v446 = vld [vmem:[#allocation7 + $0x3c8] sm:$0xff]
    %v447 = vld [vmem:[#allocation7 + $0x3d0] sm:$0xff]
    %v448 = vld [vmem:[#allocation7 + $0x3d8] sm:$0xff]
    %v449 = vld [vmem:[#allocation7 + $0x3e0] sm:$0xff]
    %v450 = vld [vmem:[#allocation7 + $0x3e8] sm:$0xff]
    %v451 = vld [vmem:[#allocation7 + $0x3f0] sm:$0xff]
    %v452 = vld [vmem:[#allocation7 + $0x3f8] sm:$0xff]
    %v453 = vld [vmem:[#allocation7 + $0x400] sm:$0xff]
    %v454 = vld [vmem:[#allocation7 + $0x408] sm:$0xff]
    %v455 = vld [vmem:[#allocation7 + $0x410] sm:$0xff]
    %v456 = vld [vmem:[#allocation7 + $0x418] sm:$0xff]
    %v457 = vld [vmem:[#allocation7 + $0x420] sm:$0xff]
    %v458 = vld [vmem:[#allocation7 + $0x428] sm:$0xff]
    %v459 = vld [vmem:[#allocation7 + $0x430] sm:$0xff]
    %v460 = vld [vmem:[#allocation7 + $0x438] sm:$0xff]
    %v461 = vld [vmem:[#allocation7 + $0x440] sm:$0xff]
    %v462 = vld [vmem:[#allocation7 + $0x448] sm:$0xff]
    %v463 = vld [vmem:[#allocation7 + $0x450] sm:$0xff]
    %v464 = vld [vmem:[#allocation7 + $0x458] sm:$0xff]
    %v465 = vld [vmem:[#allocation7 + $0x460] sm:$0xff]
    %v466 = vld [vmem:[#allocation7 + $0x468] sm:$0xff]
    %v467 = vld [vmem:[#allocation7 + $0x470] sm:$0xff]
    %v468 = vld [vmem:[#allocation7 + $0x478] sm:$0xff]
    %v469 = vld [vmem:[#allocation7 + $0x480] sm:$0xff]
    %v470 = vld [vmem:[#allocation7 + $0x488] sm:$0xff]
    %v471 = vld [vmem:[#allocation7 + $0x490] sm:$0xff]
    %v472 = vld [vmem:[#allocation7 + $0x498] sm:$0xff]
    %v473 = vld [vmem:[#allocation7 + $0x4a0] sm:$0xff]
    %v474 = vld [vmem:[#allocation7 + $0x4a8] sm:$0xff]
    %v475 = vld [vmem:[#allocation7 + $0x4b0] sm:$0xff]
    %v476 = vld [vmem:[#allocation7 + $0x4b8] sm:$0xff]
    %v477 = vld [vmem:[#allocation7 + $0x4c0] sm:$0xff]
    %v478 = vld [vmem:[#allocation7 + $0x4c8] sm:$0xff]
    %v479 = vld [vmem:[#allocation7 + $0x4d0] sm:$0xff]
    %v480 = vld [vmem:[#allocation7 + $0x4d8] sm:$0xff]
    %v481 = vld [vmem:[#allocation7 + $0x4e0] sm:$0xff]
    %v482 = vld [vmem:[#allocation7 + $0x4e8] sm:$0xff]
    %v483 = vld [vmem:[#allocation7 + $0x4f0] sm:$0xff]
    %v484 = vld [vmem:[#allocation7 + $0x4f8] sm:$0xff]
    %v485 = vld [vmem:[#allocation7 + $0x500] sm:$0xff]
    %v486 = vld [vmem:[#allocation7 + $0x508] sm:$0xff]
    %v487 = vld [vmem:[#allocation7 + $0x510] sm:$0xff]
    %v488 = vld [vmem:[#allocation7 + $0x518] sm:$0xff]
    %v489 = vld [vmem:[#allocation7 + $0x520] sm:$0xff]
    %v490 = vld [vmem:[#allocation7 + $0x528] sm:$0xff]
    %v491 = vld [vmem:[#allocation7 + $0x530] sm:$0xff]
    %v492 = vld [vmem:[#allocation7 + $0x538] sm:$0xff]
    %v493 = vld [vmem:[#allocation7 + $0x540] sm:$0xff]
    %v494 = vld [vmem:[#allocation7 + $0x548] sm:$0xff]
    %v495 = vld [vmem:[#allocation7 + $0x550] sm:$0xff]
    %v496 = vld [vmem:[#allocation7 + $0x558] sm:$0xff]
    %v497 = vld [vmem:[#allocation7 + $0x560] sm:$0xff]
    %v498 = vld [vmem:[#allocation7 + $0x568] sm:$0xff]
    %v499 = vld [vmem:[#allocation7 + $0x570] sm:$0xff]
    %v500 = vld [vmem:[#allocation7 + $0x578] sm:$0xff]
    %v501 = vld [vmem:[#allocation7 + $0x580] sm:$0xff]
    %v502 = vld [vmem:[#allocation7 + $0x588] sm:$0xff]
    %v503 = vld [vmem:[#allocation7 + $0x590] sm:$0xff]
    %v504 = vld [vmem:[#allocation7 + $0x598] sm:$0xff]
    %v505 = vld [vmem:[#allocation7 + $0x5a0] sm:$0xff]
    %v506 = vld [vmem:[#allocation7 + $0x5a8] sm:$0xff]
    %v507 = vld [vmem:[#allocation7 + $0x5b0] sm:$0xff]
    %v508 = vld [vmem:[#allocation7 + $0x5b8] sm:$0xff]
    %v509 = vld [vmem:[#allocation7 + $0x5c0] sm:$0xff]
    %v510 = vld [vmem:[#allocation7 + $0x5c8] sm:$0xff]
    %v511 = vld [vmem:[#allocation7 + $0x5d0] sm:$0xff]
    %v512 = vld [vmem:[#allocation7 + $0x5d8] sm:$0xff]
    %v513 = vld [vmem:[#allocation7 + $0x5e0] sm:$0xff]
    %v514 = vld [vmem:[#allocation7 + $0x5e8] sm:$0xff]
    %v515 = vld [vmem:[#allocation7 + $0x5f0] sm:$0xff]
    %v516 = vld [vmem:[#allocation7 + $0x5f8] sm:$0xff]
    %v517 = vld [vmem:[#allocation7 + $0x600] sm:$0xff]
    %v518 = vld [vmem:[#allocation7 + $0x608] sm:$0xff]
    %v519 = vld [vmem:[#allocation7 + $0x610] sm:$0xff]
    %v520 = vld [vmem:[#allocation7 + $0x618] sm:$0xff]
    %v521 = vld [vmem:[#allocation7 + $0x620] sm:$0xff]
    %v522 = vld [vmem:[#allocation7 + $0x628] sm:$0xff]
    %v523 = vld [vmem:[#allocation7 + $0x630] sm:$0xff]
    %v524 = vld [vmem:[#allocation7 + $0x638] sm:$0xff]
    %v525 = vld [vmem:[#allocation7 + $0x640] sm:$0xff]
    %v526 = vld [vmem:[#allocation7 + $0x648] sm:$0xff]
    %v527 = vld [vmem:[#allocation7 + $0x650] sm:$0xff]
    %v528 = vld [vmem:[#allocation7 + $0x658] sm:$0xff]
    %v529 = vld [vmem:[#allocation7 + $0x660] sm:$0xff]
    %v530 = vld [vmem:[#allocation7 + $0x668] sm:$0xff]
    %v531 = vld [vmem:[#allocation7 + $0x670] sm:$0xff]
    %v532 = vld [vmem:[#allocation7 + $0x678] sm:$0xff]
    %v533 = vld [vmem:[#allocation7 + $0x680] sm:$0xff]
    %v534 = vld [vmem:[#allocation7 + $0x688] sm:$0xff]
    %v535 = vld [vmem:[#allocation7 + $0x690] sm:$0xff]
    %v536 = vld [vmem:[#allocation7 + $0x698] sm:$0xff]
    %v537 = vld [vmem:[#allocation7 + $0x6a0] sm:$0xff]
    %v538 = vld [vmem:[#allocation7 + $0x6a8] sm:$0xff]
    %v539 = vld [vmem:[#allocation7 + $0x6b0] sm:$0xff]
    %v540 = vld [vmem:[#allocation7 + $0x6b8] sm:$0xff]
    %v541 = vld [vmem:[#allocation7 + $0x6c0] sm:$0xff]
    %v542 = vld [vmem:[#allocation7 + $0x6c8] sm:$0xff]
    %v543 = vld [vmem:[#allocation7 + $0x6d0] sm:$0xff]
    %v544 = vld [vmem:[#allocation7 + $0x6d8] sm:$0xff]
    %v545 = vld [vmem:[#allocation7 + $0x6e0] sm:$0xff]
    %v546 = vld [vmem:[#allocation7 + $0x6e8] sm:$0xff]
    %v547 = vld [vmem:[#allocation7 + $0x6f0] sm:$0xff]
    %v548 = vld [vmem:[#allocation7 + $0x6f8] sm:$0xff]
    %v549 = vld [vmem:[#allocation7 + $0x700] sm:$0xff]
    %v550 = vld [vmem:[#allocation7 + $0x708] sm:$0xff]
    %v551 = vld [vmem:[#allocation7 + $0x710] sm:$0xff]
    %v552 = vld [vmem:[#allocation7 + $0x718] sm:$0xff]
    %v553 = vld [vmem:[#allocation7 + $0x720] sm:$0xff]
    %v554 = vld [vmem:[#allocation7 + $0x728] sm:$0xff]
    %v555 = vld [vmem:[#allocation7 + $0x730] sm:$0xff]
    %v556 = vld [vmem:[#allocation7 + $0x738] sm:$0xff]
    %v557 = vld [vmem:[#allocation7 + $0x740] sm:$0xff]
    %v558 = vld [vmem:[#allocation7 + $0x748] sm:$0xff]
    %v559 = vld [vmem:[#allocation7 + $0x750] sm:$0xff]
    %v560 = vld [vmem:[#allocation7 + $0x758] sm:$0xff]
    %v561 = vld [vmem:[#allocation7 + $0x760] sm:$0xff]
    %v562 = vld [vmem:[#allocation7 + $0x768] sm:$0xff]
    %v563 = vld [vmem:[#allocation7 + $0x770] sm:$0xff]
    %v564 = vld [vmem:[#allocation7 + $0x778] sm:$0xff]
    %v565 = vld [vmem:[#allocation7 + $0x780] sm:$0xff]
    %v566 = vld [vmem:[#allocation7 + $0x788] sm:$0xff]
    %v567 = vld [vmem:[#allocation7 + $0x790] sm:$0xff]
    %v568 = vld [vmem:[#allocation7 + $0x798] sm:$0xff]
    %v569 = vld [vmem:[#allocation7 + $0x7a0] sm:$0xff]
    %v570 = vld [vmem:[#allocation7 + $0x7a8] sm:$0xff]
    %v571 = vld [vmem:[#allocation7 + $0x7b0] sm:$0xff]
    %v572 = vld [vmem:[#allocation7 + $0x7b8] sm:$0xff]
    %v573 = vld [vmem:[#allocation7 + $0x7c0] sm:$0xff]
    %v574 = vld [vmem:[#allocation7 + $0x7c8] sm:$0xff]
    %v575 = vld [vmem:[#allocation7 + $0x7d0] sm:$0xff]
    %v576 = vld [vmem:[#allocation7 + $0x7d8] sm:$0xff]
    %v577 = vld [vmem:[#allocation7 + $0x7e0] sm:$0xff]
    %v578 = vld [vmem:[#allocation7 + $0x7e8] sm:$0xff]
    %v579 = vld [vmem:[#allocation7 + $0x7f0] sm:$0xff]
    %v580 = vld [vmem:[#allocation7 + $0x7f8] sm:$0xff]
    %v581 = vld [vmem:[#allocation8] sm:$0xff]
    %v583 = vlaneseq
    %v584 = vshrl.u32 %v583, 7
    %v585 = vsub.s32 0, %v584
    %v586 = vrot.slane %v581, %v585
    %v587 = vlaneseq
    %v588 = vshrl.u32 %v587, 7
    %v589 = vsub.s32 1, %v588
    %v590 = vrot.slane %v581, %v589
    %v591 = vlaneseq
    %v592 = vshrl.u32 %v591, 7
    %v593 = vsub.s32 2, %v592
    %v594 = vrot.slane %v581, %v593
    %v595 = vlaneseq
    %v596 = vshrl.u32 %v595, 7
    %v597 = vsub.s32 3, %v596
    %v598 = vrot.slane %v581, %v597
    %v599 = vlaneseq
    %v600 = vshrl.u32 %v599, 7
    %v601 = vsub.s32 4, %v600
    %v602 = vrot.slane %v581, %v601
    %v603 = vlaneseq
    %v604 = vshrl.u32 %v603, 7
    %v605 = vsub.s32 5, %v604
    %v606 = vrot.slane %v581, %v605
    %v607 = vlaneseq
    %v608 = vshrl.u32 %v607, 7
    %v609 = vsub.s32 6, %v608
    %v610 = vrot.slane %v581, %v609
    %v611 = vlaneseq
    %v612 = vshrl.u32 %v611, 7
    %v613 = vsub.s32 7, %v612
    %v614 = vrot.slane %v581, %v613
    %v879 = vunpack.c.l.b16 %v325
    %v880 = vunpack.c.h.b16 %v325
    %v881 = vunpack.c.l.b16 %v326
    %v882 = vunpack.c.h.b16 %v326
    %v883 = vunpack.c.l.b16 %v327
    %v884 = vunpack.c.h.b16 %v327
    %v885 = vunpack.c.l.b16 %v328
    %v886 = vunpack.c.h.b16 %v328
    %v887 = vunpack.c.l.b16 %v329
    %v888 = vunpack.c.h.b16 %v329
    %v889 = vunpack.c.l.b16 %v330
    %v890 = vunpack.c.h.b16 %v330
    %v891 = vunpack.c.l.b16 %v331
    %v892 = vunpack.c.h.b16 %v331
    %v893 = vunpack.c.l.b16 %v332
    %v894 = vunpack.c.h.b16 %v332
    %v895 = vunpack.c.l.b16 %v333
    %v896 = vunpack.c.h.b16 %v333
    %v897 = vunpack.c.l.b16 %v334
    %v898 = vunpack.c.h.b16 %v334
    %v899 = vunpack.c.l.b16 %v335
    %v900 = vunpack.c.h.b16 %v335
    %v901 = vunpack.c.l.b16 %v336
    %v902 = vunpack.c.h.b16 %v336
    %v903 = vunpack.c.l.b16 %v337
    %v904 = vunpack.c.h.b16 %v337
    %v905 = vunpack.c.l.b16 %v338
    %v906 = vunpack.c.h.b16 %v338
    %v907 = vunpack.c.l.b16 %v339
    %v908 = vunpack.c.h.b16 %v339
    %v909 = vunpack.c.l.b16 %v340
    %v910 = vunpack.c.h.b16 %v340
    %v911 = vunpack.c.l.b16 %v341
    %v912 = vunpack.c.h.b16 %v341
    %v913 = vunpack.c.l.b16 %v342
    %v914 = vunpack.c.h.b16 %v342
    %v915 = vunpack.c.l.b16 %v343
    %v916 = vunpack.c.h.b16 %v343
    %v917 = vunpack.c.l.b16 %v344
    %v918 = vunpack.c.h.b16 %v344
    %v919 = vunpack.c.l.b16 %v345
    %v920 = vunpack.c.h.b16 %v345
    %v921 = vunpack.c.l.b16 %v346
    %v922 = vunpack.c.h.b16 %v346
    %v923 = vunpack.c.l.b16 %v347
    %v924 = vunpack.c.h.b16 %v347
    %v925 = vunpack.c.l.b16 %v348
    %v926 = vunpack.c.h.b16 %v348
    %v927 = vunpack.c.l.b16 %v349
    %v928 = vunpack.c.h.b16 %v349
    %v929 = vunpack.c.l.b16 %v350
    %v930 = vunpack.c.h.b16 %v350
    %v931 = vunpack.c.l.b16 %v351
    %v932 = vunpack.c.h.b16 %v351
    %v933 = vunpack.c.l.b16 %v352
    %v934 = vunpack.c.h.b16 %v352
    %v935 = vunpack.c.l.b16 %v353
    %v936 = vunpack.c.h.b16 %v353
    %v937 = vunpack.c.l.b16 %v354
    %v938 = vunpack.c.h.b16 %v354
    %v939 = vunpack.c.l.b16 %v355
    %v940 = vunpack.c.h.b16 %v355
    %v941 = vunpack.c.l.b16 %v356
    %v942 = vunpack.c.h.b16 %v356
    %v943 = vunpack.c.l.b16 %v357
    %v944 = vunpack.c.h.b16 %v357
    %v945 = vunpack.c.l.b16 %v358
    %v946 = vunpack.c.h.b16 %v358
    %v947 = vunpack.c.l.b16 %v359
    %v948 = vunpack.c.h.b16 %v359
    %v949 = vunpack.c.l.b16 %v360
    %v950 = vunpack.c.h.b16 %v360
    %v951 = vunpack.c.l.b16 %v361
    %v952 = vunpack.c.h.b16 %v361
    %v953 = vunpack.c.l.b16 %v362
    %v954 = vunpack.c.h.b16 %v362
    %v955 = vunpack.c.l.b16 %v363
    %v956 = vunpack.c.h.b16 %v363
    %v957 = vunpack.c.l.b16 %v364
    %v958 = vunpack.c.h.b16 %v364
    %v959 = vunpack.c.l.b16 %v365
    %v960 = vunpack.c.h.b16 %v365
    %v961 = vunpack.c.l.b16 %v366
    %v962 = vunpack.c.h.b16 %v366
    %v963 = vunpack.c.l.b16 %v367
    %v964 = vunpack.c.h.b16 %v367
    %v965 = vunpack.c.l.b16 %v368
    %v966 = vunpack.c.h.b16 %v368
    %v967 = vunpack.c.l.b16 %v369
    %v968 = vunpack.c.h.b16 %v369
    %v969 = vunpack.c.l.b16 %v370
    %v970 = vunpack.c.h.b16 %v370
    %v971 = vunpack.c.l.b16 %v371
    %v972 = vunpack.c.h.b16 %v371
    %v973 = vunpack.c.l.b16 %v372
    %v974 = vunpack.c.h.b16 %v372
    %v975 = vunpack.c.l.b16 %v373
    %v976 = vunpack.c.h.b16 %v373
    %v977 = vunpack.c.l.b16 %v374
    %v978 = vunpack.c.h.b16 %v374
    %v979 = vunpack.c.l.b16 %v375
    %v980 = vunpack.c.h.b16 %v375
    %v981 = vunpack.c.l.b16 %v376
    %v982 = vunpack.c.h.b16 %v376
    %v983 = vunpack.c.l.b16 %v377
    %v984 = vunpack.c.h.b16 %v377
    %v985 = vunpack.c.l.b16 %v378
    %v986 = vunpack.c.h.b16 %v378
    %v987 = vunpack.c.l.b16 %v379
    %v988 = vunpack.c.h.b16 %v379
    %v989 = vunpack.c.l.b16 %v380
    %v990 = vunpack.c.h.b16 %v380
    %v991 = vunpack.c.l.b16 %v381
    %v992 = vunpack.c.h.b16 %v381
    %v993 = vunpack.c.l.b16 %v382
    %v994 = vunpack.c.h.b16 %v382
    %v995 = vunpack.c.l.b16 %v383
    %v996 = vunpack.c.h.b16 %v383
    %v997 = vunpack.c.l.b16 %v384
    %v998 = vunpack.c.h.b16 %v384
    %v999 = vunpack.c.l.b16 %v385
    %v1000 = vunpack.c.h.b16 %v385
    %v1001 = vunpack.c.l.b16 %v386
    %v1002 = vunpack.c.h.b16 %v386
    %v1003 = vunpack.c.l.b16 %v387
    %v1004 = vunpack.c.h.b16 %v387
    %v1005 = vunpack.c.l.b16 %v388
    %v1006 = vunpack.c.h.b16 %v388
    %v1007 = vunpack.c.l.b16 %v389
    %v1008 = vunpack.c.h.b16 %v389
    %v1009 = vunpack.c.l.b16 %v390
    %v1010 = vunpack.c.h.b16 %v390
    %v1011 = vunpack.c.l.b16 %v391
    %v1012 = vunpack.c.h.b16 %v391
    %v1013 = vunpack.c.l.b16 %v392
    %v1014 = vunpack.c.h.b16 %v392
    %v1015 = vunpack.c.l.b16 %v393
    %v1016 = vunpack.c.h.b16 %v393
    %v1017 = vunpack.c.l.b16 %v394
    %v1018 = vunpack.c.h.b16 %v394
    %v1019 = vunpack.c.l.b16 %v395
    %v1020 = vunpack.c.h.b16 %v395
    %v1021 = vunpack.c.l.b16 %v396
    %v1022 = vunpack.c.h.b16 %v396
    %v1023 = vunpack.c.l.b16 %v397
    %v1024 = vunpack.c.h.b16 %v397
    %v1025 = vunpack.c.l.b16 %v398
    %v1026 = vunpack.c.h.b16 %v398
    %v1027 = vunpack.c.l.b16 %v399
    %v1028 = vunpack.c.h.b16 %v399
    %v1029 = vunpack.c.l.b16 %v400
    %v1030 = vunpack.c.h.b16 %v400
    %v1031 = vunpack.c.l.b16 %v401
    %v1032 = vunpack.c.h.b16 %v401
    %v1033 = vunpack.c.l.b16 %v402
    %v1034 = vunpack.c.h.b16 %v402
    %v1035 = vunpack.c.l.b16 %v403
    %v1036 = vunpack.c.h.b16 %v403
    %v1037 = vunpack.c.l.b16 %v404
    %v1038 = vunpack.c.h.b16 %v404
    %v1039 = vunpack.c.l.b16 %v405
    %v1040 = vunpack.c.h.b16 %v405
    %v1041 = vunpack.c.l.b16 %v406
    %v1042 = vunpack.c.h.b16 %v406
    %v1043 = vunpack.c.l.b16 %v407
    %v1044 = vunpack.c.h.b16 %v407
    %v1045 = vunpack.c.l.b16 %v408
    %v1046 = vunpack.c.h.b16 %v408
    %v1047 = vunpack.c.l.b16 %v409
    %v1048 = vunpack.c.h.b16 %v409
    %v1049 = vunpack.c.l.b16 %v410
    %v1050 = vunpack.c.h.b16 %v410
    %v1051 = vunpack.c.l.b16 %v411
    %v1052 = vunpack.c.h.b16 %v411
    %v1053 = vunpack.c.l.b16 %v412
    %v1054 = vunpack.c.h.b16 %v412
    %v1055 = vunpack.c.l.b16 %v413
    %v1056 = vunpack.c.h.b16 %v413
    %v1057 = vunpack.c.l.b16 %v414
    %v1058 = vunpack.c.h.b16 %v414
    %v1059 = vunpack.c.l.b16 %v415
    %v1060 = vunpack.c.h.b16 %v415
    %v1061 = vunpack.c.l.b16 %v416
    %v1062 = vunpack.c.h.b16 %v416
    %v1063 = vunpack.c.l.b16 %v417
    %v1064 = vunpack.c.h.b16 %v417
    %v1065 = vunpack.c.l.b16 %v418
    %v1066 = vunpack.c.h.b16 %v418
    %v1067 = vunpack.c.l.b16 %v419
    %v1068 = vunpack.c.h.b16 %v419
    %v1069 = vunpack.c.l.b16 %v420
    %v1070 = vunpack.c.h.b16 %v420
    %v1071 = vunpack.c.l.b16 %v421
    %v1072 = vunpack.c.h.b16 %v421
    %v1073 = vunpack.c.l.b16 %v422
    %v1074 = vunpack.c.h.b16 %v422
    %v1075 = vunpack.c.l.b16 %v423
    %v1076 = vunpack.c.h.b16 %v423
    %v1077 = vunpack.c.l.b16 %v424
    %v1078 = vunpack.c.h.b16 %v424
    %v1079 = vunpack.c.l.b16 %v425
    %v1080 = vunpack.c.h.b16 %v425
    %v1081 = vunpack.c.l.b16 %v426
    %v1082 = vunpack.c.h.b16 %v426
    %v1083 = vunpack.c.l.b16 %v427
    %v1084 = vunpack.c.h.b16 %v427
    %v1085 = vunpack.c.l.b16 %v428
    %v1086 = vunpack.c.h.b16 %v428
    %v1087 = vunpack.c.l.b16 %v429
    %v1088 = vunpack.c.h.b16 %v429
    %v1089 = vunpack.c.l.b16 %v430
    %v1090 = vunpack.c.h.b16 %v430
    %v1091 = vunpack.c.l.b16 %v431
    %v1092 = vunpack.c.h.b16 %v431
    %v1093 = vunpack.c.l.b16 %v432
    %v1094 = vunpack.c.h.b16 %v432
    %v1095 = vunpack.c.l.b16 %v433
    %v1096 = vunpack.c.h.b16 %v433
    %v1097 = vunpack.c.l.b16 %v434
    %v1098 = vunpack.c.h.b16 %v434
    %v1099 = vunpack.c.l.b16 %v435
    %v1100 = vunpack.c.h.b16 %v435
    %v1101 = vunpack.c.l.b16 %v436
    %v1102 = vunpack.c.h.b16 %v436
    %v1103 = vunpack.c.l.b16 %v437
    %v1104 = vunpack.c.h.b16 %v437
    %v1105 = vunpack.c.l.b16 %v438
    %v1106 = vunpack.c.h.b16 %v438
    %v1107 = vunpack.c.l.b16 %v439
    %v1108 = vunpack.c.h.b16 %v439
    %v1109 = vunpack.c.l.b16 %v440
    %v1110 = vunpack.c.h.b16 %v440
    %v1111 = vunpack.c.l.b16 %v441
    %v1112 = vunpack.c.h.b16 %v441
    %v1113 = vunpack.c.l.b16 %v442
    %v1114 = vunpack.c.h.b16 %v442
    %v1115 = vunpack.c.l.b16 %v443
    %v1116 = vunpack.c.h.b16 %v443
    %v1117 = vunpack.c.l.b16 %v444
    %v1118 = vunpack.c.h.b16 %v444
    %v1119 = vunpack.c.l.b16 %v445
    %v1120 = vunpack.c.h.b16 %v445
    %v1121 = vunpack.c.l.b16 %v446
    %v1122 = vunpack.c.h.b16 %v446
    %v1123 = vunpack.c.l.b16 %v447
    %v1124 = vunpack.c.h.b16 %v447
    %v1125 = vunpack.c.l.b16 %v448
    %v1126 = vunpack.c.h.b16 %v448
    %v1127 = vunpack.c.l.b16 %v449
    %v1128 = vunpack.c.h.b16 %v449
    %v1129 = vunpack.c.l.b16 %v450
    %v1130 = vunpack.c.h.b16 %v450
    %v1131 = vunpack.c.l.b16 %v451
    %v1132 = vunpack.c.h.b16 %v451
    %v1133 = vunpack.c.l.b16 %v452
    %v1134 = vunpack.c.h.b16 %v452
    %v1135 = vunpack.c.l.b16 %v453
    %v1136 = vunpack.c.h.b16 %v453
    %v1137 = vunpack.c.l.b16 %v454
    %v1138 = vunpack.c.h.b16 %v454
    %v1139 = vunpack.c.l.b16 %v455
    %v1140 = vunpack.c.h.b16 %v455
    %v1141 = vunpack.c.l.b16 %v456
    %v1142 = vunpack.c.h.b16 %v456
    %v1143 = vunpack.c.l.b16 %v457
    %v1144 = vunpack.c.h.b16 %v457
    %v1145 = vunpack.c.l.b16 %v458
    %v1146 = vunpack.c.h.b16 %v458
    %v1147 = vunpack.c.l.b16 %v459
    %v1148 = vunpack.c.h.b16 %v459
    %v1149 = vunpack.c.l.b16 %v460
    %v1150 = vunpack.c.h.b16 %v460
    %v1151 = vunpack.c.l.b16 %v461
    %v1152 = vunpack.c.h.b16 %v461
    %v1153 = vunpack.c.l.b16 %v462
    %v1154 = vunpack.c.h.b16 %v462
    %v1155 = vunpack.c.l.b16 %v463
    %v1156 = vunpack.c.h.b16 %v463
    %v1157 = vunpack.c.l.b16 %v464
    %v1158 = vunpack.c.h.b16 %v464
    %v1159 = vunpack.c.l.b16 %v465
    %v1160 = vunpack.c.h.b16 %v465
    %v1161 = vunpack.c.l.b16 %v466
    %v1162 = vunpack.c.h.b16 %v466
    %v1163 = vunpack.c.l.b16 %v467
    %v1164 = vunpack.c.h.b16 %v467
    %v1165 = vunpack.c.l.b16 %v468
    %v1166 = vunpack.c.h.b16 %v468
    %v1167 = vunpack.c.l.b16 %v469
    %v1168 = vunpack.c.h.b16 %v469
    %v1169 = vunpack.c.l.b16 %v470
    %v1170 = vunpack.c.h.b16 %v470
    %v1171 = vunpack.c.l.b16 %v471
    %v1172 = vunpack.c.h.b16 %v471
    %v1173 = vunpack.c.l.b16 %v472
    %v1174 = vunpack.c.h.b16 %v472
    %v1175 = vunpack.c.l.b16 %v473
    %v1176 = vunpack.c.h.b16 %v473
    %v1177 = vunpack.c.l.b16 %v474
    %v1178 = vunpack.c.h.b16 %v474
    %v1179 = vunpack.c.l.b16 %v475
    %v1180 = vunpack.c.h.b16 %v475
    %v1181 = vunpack.c.l.b16 %v476
    %v1182 = vunpack.c.h.b16 %v476
    %v1183 = vunpack.c.l.b16 %v477
    %v1184 = vunpack.c.h.b16 %v477
    %v1185 = vunpack.c.l.b16 %v478
    %v1186 = vunpack.c.h.b16 %v478
    %v1187 = vunpack.c.l.b16 %v479
    %v1188 = vunpack.c.h.b16 %v479
    %v1189 = vunpack.c.l.b16 %v480
    %v1190 = vunpack.c.h.b16 %v480
    %v1191 = vunpack.c.l.b16 %v481
    %v1192 = vunpack.c.h.b16 %v481
    %v1193 = vunpack.c.l.b16 %v482
    %v1194 = vunpack.c.h.b16 %v482
    %v1195 = vunpack.c.l.b16 %v483
    %v1196 = vunpack.c.h.b16 %v483
    %v1197 = vunpack.c.l.b16 %v484
    %v1198 = vunpack.c.h.b16 %v484
    %v1199 = vunpack.c.l.b16 %v485
    %v1200 = vunpack.c.h.b16 %v485
    %v1201 = vunpack.c.l.b16 %v486
    %v1202 = vunpack.c.h.b16 %v486
    %v1203 = vunpack.c.l.b16 %v487
    %v1204 = vunpack.c.h.b16 %v487
    %v1205 = vunpack.c.l.b16 %v488
    %v1206 = vunpack.c.h.b16 %v488
    %v1207 = vunpack.c.l.b16 %v489
    %v1208 = vunpack.c.h.b16 %v489
    %v1209 = vunpack.c.l.b16 %v490
    %v1210 = vunpack.c.h.b16 %v490
    %v1211 = vunpack.c.l.b16 %v491
    %v1212 = vunpack.c.h.b16 %v491
    %v1213 = vunpack.c.l.b16 %v492
    %v1214 = vunpack.c.h.b16 %v492
    %v1215 = vunpack.c.l.b16 %v493
    %v1216 = vunpack.c.h.b16 %v493
    %v1217 = vunpack.c.l.b16 %v494
    %v1218 = vunpack.c.h.b16 %v494
    %v1219 = vunpack.c.l.b16 %v495
    %v1220 = vunpack.c.h.b16 %v495
    %v1221 = vunpack.c.l.b16 %v496
    %v1222 = vunpack.c.h.b16 %v496
    %v1223 = vunpack.c.l.b16 %v497
    %v1224 = vunpack.c.h.b16 %v497
    %v1225 = vunpack.c.l.b16 %v498
    %v1226 = vunpack.c.h.b16 %v498
    %v1227 = vunpack.c.l.b16 %v499
    %v1228 = vunpack.c.h.b16 %v499
    %v1229 = vunpack.c.l.b16 %v500
    %v1230 = vunpack.c.h.b16 %v500
    %v1231 = vunpack.c.l.b16 %v501
    %v1232 = vunpack.c.h.b16 %v501
    %v1233 = vunpack.c.l.b16 %v502
    %v1234 = vunpack.c.h.b16 %v502
    %v1235 = vunpack.c.l.b16 %v503
    %v1236 = vunpack.c.h.b16 %v503
    %v1237 = vunpack.c.l.b16 %v504
    %v1238 = vunpack.c.h.b16 %v504
    %v1239 = vunpack.c.l.b16 %v505
    %v1240 = vunpack.c.h.b16 %v505
    %v1241 = vunpack.c.l.b16 %v506
    %v1242 = vunpack.c.h.b16 %v506
    %v1243 = vunpack.c.l.b16 %v507
    %v1244 = vunpack.c.h.b16 %v507
    %v1245 = vunpack.c.l.b16 %v508
    %v1246 = vunpack.c.h.b16 %v508
    %v1247 = vunpack.c.l.b16 %v509
    %v1248 = vunpack.c.h.b16 %v509
    %v1249 = vunpack.c.l.b16 %v510
    %v1250 = vunpack.c.h.b16 %v510
    %v1251 = vunpack.c.l.b16 %v511
    %v1252 = vunpack.c.h.b16 %v511
    %v1253 = vunpack.c.l.b16 %v512
    %v1254 = vunpack.c.h.b16 %v512
    %v1255 = vunpack.c.l.b16 %v513
    %v1256 = vunpack.c.h.b16 %v513
    %v1257 = vunpack.c.l.b16 %v514
    %v1258 = vunpack.c.h.b16 %v514
    %v1259 = vunpack.c.l.b16 %v515
    %v1260 = vunpack.c.h.b16 %v515
    %v1261 = vunpack.c.l.b16 %v516
    %v1262 = vunpack.c.h.b16 %v516
    %v1263 = vunpack.c.l.b16 %v517
    %v1264 = vunpack.c.h.b16 %v517
    %v1265 = vunpack.c.l.b16 %v518
    %v1266 = vunpack.c.h.b16 %v518
    %v1267 = vunpack.c.l.b16 %v519
    %v1268 = vunpack.c.h.b16 %v519
    %v1269 = vunpack.c.l.b16 %v520
    %v1270 = vunpack.c.h.b16 %v520
    %v1271 = vunpack.c.l.b16 %v521
    %v1272 = vunpack.c.h.b16 %v521
    %v1273 = vunpack.c.l.b16 %v522
    %v1274 = vunpack.c.h.b16 %v522
    %v1275 = vunpack.c.l.b16 %v523
    %v1276 = vunpack.c.h.b16 %v523
    %v1277 = vunpack.c.l.b16 %v524
    %v1278 = vunpack.c.h.b16 %v524
    %v1279 = vunpack.c.l.b16 %v525
    %v1280 = vunpack.c.h.b16 %v525
    %v1281 = vunpack.c.l.b16 %v526
    %v1282 = vunpack.c.h.b16 %v526
    %v1283 = vunpack.c.l.b16 %v527
    %v1284 = vunpack.c.h.b16 %v527
    %v1285 = vunpack.c.l.b16 %v528
    %v1286 = vunpack.c.h.b16 %v528
    %v1287 = vunpack.c.l.b16 %v529
    %v1288 = vunpack.c.h.b16 %v529
    %v1289 = vunpack.c.l.b16 %v530
    %v1290 = vunpack.c.h.b16 %v530
    %v1291 = vunpack.c.l.b16 %v531
    %v1292 = vunpack.c.h.b16 %v531
    %v1293 = vunpack.c.l.b16 %v532
    %v1294 = vunpack.c.h.b16 %v532
    %v1295 = vunpack.c.l.b16 %v533
    %v1296 = vunpack.c.h.b16 %v533
    %v1297 = vunpack.c.l.b16 %v534
    %v1298 = vunpack.c.h.b16 %v534
    %v1299 = vunpack.c.l.b16 %v535
    %v1300 = vunpack.c.h.b16 %v535
    %v1301 = vunpack.c.l.b16 %v536
    %v1302 = vunpack.c.h.b16 %v536
    %v1303 = vunpack.c.l.b16 %v537
    %v1304 = vunpack.c.h.b16 %v537
    %v1305 = vunpack.c.l.b16 %v538
    %v1306 = vunpack.c.h.b16 %v538
    %v1307 = vunpack.c.l.b16 %v539
    %v1308 = vunpack.c.h.b16 %v539
    %v1309 = vunpack.c.l.b16 %v540
    %v1310 = vunpack.c.h.b16 %v540
    %v1311 = vunpack.c.l.b16 %v541
    %v1312 = vunpack.c.h.b16 %v541
    %v1313 = vunpack.c.l.b16 %v542
    %v1314 = vunpack.c.h.b16 %v542
    %v1315 = vunpack.c.l.b16 %v543
    %v1316 = vunpack.c.h.b16 %v543
    %v1317 = vunpack.c.l.b16 %v544
    %v1318 = vunpack.c.h.b16 %v544
    %v1319 = vunpack.c.l.b16 %v545
    %v1320 = vunpack.c.h.b16 %v545
    %v1321 = vunpack.c.l.b16 %v546
    %v1322 = vunpack.c.h.b16 %v546
    %v1323 = vunpack.c.l.b16 %v547
    %v1324 = vunpack.c.h.b16 %v547
    %v1325 = vunpack.c.l.b16 %v548
    %v1326 = vunpack.c.h.b16 %v548
    %v1327 = vunpack.c.l.b16 %v549
    %v1328 = vunpack.c.h.b16 %v549
    %v1329 = vunpack.c.l.b16 %v550
    %v1330 = vunpack.c.h.b16 %v550
    %v1331 = vunpack.c.l.b16 %v551
    %v1332 = vunpack.c.h.b16 %v551
    %v1333 = vunpack.c.l.b16 %v552
    %v1334 = vunpack.c.h.b16 %v552
    %v1335 = vunpack.c.l.b16 %v553
    %v1336 = vunpack.c.h.b16 %v553
    %v1337 = vunpack.c.l.b16 %v554
    %v1338 = vunpack.c.h.b16 %v554
    %v1339 = vunpack.c.l.b16 %v555
    %v1340 = vunpack.c.h.b16 %v555
    %v1341 = vunpack.c.l.b16 %v556
    %v1342 = vunpack.c.h.b16 %v556
    %v1343 = vunpack.c.l.b16 %v557
    %v1344 = vunpack.c.h.b16 %v557
    %v1345 = vunpack.c.l.b16 %v558
    %v1346 = vunpack.c.h.b16 %v558
    %v1347 = vunpack.c.l.b16 %v559
    %v1348 = vunpack.c.h.b16 %v559
    %v1349 = vunpack.c.l.b16 %v560
    %v1350 = vunpack.c.h.b16 %v560
    %v1351 = vunpack.c.l.b16 %v561
    %v1352 = vunpack.c.h.b16 %v561
    %v1353 = vunpack.c.l.b16 %v562
    %v1354 = vunpack.c.h.b16 %v562
    %v1355 = vunpack.c.l.b16 %v563
    %v1356 = vunpack.c.h.b16 %v563
    %v1357 = vunpack.c.l.b16 %v564
    %v1358 = vunpack.c.h.b16 %v564
    %v1359 = vunpack.c.l.b16 %v565
    %v1360 = vunpack.c.h.b16 %v565
    %v1361 = vunpack.c.l.b16 %v566
    %v1362 = vunpack.c.h.b16 %v566
    %v1363 = vunpack.c.l.b16 %v567
    %v1364 = vunpack.c.h.b16 %v567
    %v1365 = vunpack.c.l.b16 %v568
    %v1366 = vunpack.c.h.b16 %v568
    %v1367 = vunpack.c.l.b16 %v569
    %v1368 = vunpack.c.h.b16 %v569
    %v1369 = vunpack.c.l.b16 %v570
    %v1370 = vunpack.c.h.b16 %v570
    %v1371 = vunpack.c.l.b16 %v571
    %v1372 = vunpack.c.h.b16 %v571
    %v1373 = vunpack.c.l.b16 %v572
    %v1374 = vunpack.c.h.b16 %v572
    %v1375 = vunpack.c.l.b16 %v573
    %v1376 = vunpack.c.h.b16 %v573
    %v1377 = vunpack.c.l.b16 %v574
    %v1378 = vunpack.c.h.b16 %v574
    %v1379 = vunpack.c.l.b16 %v575
    %v1380 = vunpack.c.h.b16 %v575
    %v1381 = vunpack.c.l.b16 %v576
    %v1382 = vunpack.c.h.b16 %v576
    %v1383 = vunpack.c.l.b16 %v577
    %v1384 = vunpack.c.h.b16 %v577
    %v1385 = vunpack.c.l.b16 %v578
    %v1386 = vunpack.c.h.b16 %v578
    %v1387 = vunpack.c.l.b16 %v579
    %v1388 = vunpack.c.h.b16 %v579
    %v1389 = vunpack.c.l.b16 %v580
    %v1390 = vunpack.c.h.b16 %v580
    %v1391 = vpack.c.b16 %v887, %v879
    %v1392 = vpack.c.b16 %v888, %v880
    %v1393 = vpack.c.b16 %v889, %v881
    %v1394 = vpack.c.b16 %v890, %v882
    %v1395 = vpack.c.b16 %v891, %v883
    %v1396 = vpack.c.b16 %v892, %v884
    %v1397 = vpack.c.b16 %v893, %v885
    %v1398 = vpack.c.b16 %v894, %v886
    %v1399 = vpack.c.b16 %v903, %v895
    %v1400 = vpack.c.b16 %v904, %v896
    %v1401 = vpack.c.b16 %v905, %v897
    %v1402 = vpack.c.b16 %v906, %v898
    %v1403 = vpack.c.b16 %v907, %v899
    %v1404 = vpack.c.b16 %v908, %v900
    %v1405 = vpack.c.b16 %v909, %v901
    %v1406 = vpack.c.b16 %v910, %v902
    %v1407 = vpack.c.b16 %v919, %v911
    %v1408 = vpack.c.b16 %v920, %v912
    %v1409 = vpack.c.b16 %v921, %v913
    %v1410 = vpack.c.b16 %v922, %v914
    %v1411 = vpack.c.b16 %v923, %v915
    %v1412 = vpack.c.b16 %v924, %v916
    %v1413 = vpack.c.b16 %v925, %v917
    %v1414 = vpack.c.b16 %v926, %v918
    %v1415 = vpack.c.b16 %v935, %v927
    %v1416 = vpack.c.b16 %v936, %v928
    %v1417 = vpack.c.b16 %v937, %v929
    %v1418 = vpack.c.b16 %v938, %v930
    %v1419 = vpack.c.b16 %v939, %v931
    %v1420 = vpack.c.b16 %v940, %v932
    %v1421 = vpack.c.b16 %v941, %v933
    %v1422 = vpack.c.b16 %v942, %v934
    %v1423 = vpack.c.b16 %v951, %v943
    %v1424 = vpack.c.b16 %v952, %v944
    %v1425 = vpack.c.b16 %v953, %v945
    %v1426 = vpack.c.b16 %v954, %v946
    %v1427 = vpack.c.b16 %v955, %v947
    %v1428 = vpack.c.b16 %v956, %v948
    %v1429 = vpack.c.b16 %v957, %v949
    %v1430 = vpack.c.b16 %v958, %v950
    %v1431 = vpack.c.b16 %v967, %v959
    %v1432 = vpack.c.b16 %v968, %v960
    %v1433 = vpack.c.b16 %v969, %v961
    %v1434 = vpack.c.b16 %v970, %v962
    %v1435 = vpack.c.b16 %v971, %v963
    %v1436 = vpack.c.b16 %v972, %v964
    %v1437 = vpack.c.b16 %v973, %v965
    %v1438 = vpack.c.b16 %v974, %v966
    %v1439 = vpack.c.b16 %v983, %v975
    %v1440 = vpack.c.b16 %v984, %v976
    %v1441 = vpack.c.b16 %v985, %v977
    %v1442 = vpack.c.b16 %v986, %v978
    %v1443 = vpack.c.b16 %v987, %v979
    %v1444 = vpack.c.b16 %v988, %v980
    %v1445 = vpack.c.b16 %v989, %v981
    %v1446 = vpack.c.b16 %v990, %v982
    %v1447 = vpack.c.b16 %v999, %v991
    %v1448 = vpack.c.b16 %v1000, %v992
    %v1449 = vpack.c.b16 %v1001, %v993
    %v1450 = vpack.c.b16 %v1002, %v994
    %v1451 = vpack.c.b16 %v1003, %v995
    %v1452 = vpack.c.b16 %v1004, %v996
    %v1453 = vpack.c.b16 %v1005, %v997
    %v1454 = vpack.c.b16 %v1006, %v998
    %v1455 = vpack.c.b16 %v1015, %v1007
    %v1456 = vpack.c.b16 %v1016, %v1008
    %v1457 = vpack.c.b16 %v1017, %v1009
    %v1458 = vpack.c.b16 %v1018, %v1010
    %v1459 = vpack.c.b16 %v1019, %v1011
    %v1460 = vpack.c.b16 %v1020, %v1012
    %v1461 = vpack.c.b16 %v1021, %v1013
    %v1462 = vpack.c.b16 %v1022, %v1014
    %v1463 = vpack.c.b16 %v1031, %v1023
    %v1464 = vpack.c.b16 %v1032, %v1024
    %v1465 = vpack.c.b16 %v1033, %v1025
    %v1466 = vpack.c.b16 %v1034, %v1026
    %v1467 = vpack.c.b16 %v1035, %v1027
    %v1468 = vpack.c.b16 %v1036, %v1028
    %v1469 = vpack.c.b16 %v1037, %v1029
    %v1470 = vpack.c.b16 %v1038, %v1030
    %v1471 = vpack.c.b16 %v1047, %v1039
    %v1472 = vpack.c.b16 %v1048, %v1040
    %v1473 = vpack.c.b16 %v1049, %v1041
    %v1474 = vpack.c.b16 %v1050, %v1042
    %v1475 = vpack.c.b16 %v1051, %v1043
    %v1476 = vpack.c.b16 %v1052, %v1044
    %v1477 = vpack.c.b16 %v1053, %v1045
    %v1478 = vpack.c.b16 %v1054, %v1046
    %v1479 = vpack.c.b16 %v1063, %v1055
    %v1480 = vpack.c.b16 %v1064, %v1056
    %v1481 = vpack.c.b16 %v1065, %v1057
    %v1482 = vpack.c.b16 %v1066, %v1058
    %v1483 = vpack.c.b16 %v1067, %v1059
    %v1484 = vpack.c.b16 %v1068, %v1060
    %v1485 = vpack.c.b16 %v1069, %v1061
    %v1486 = vpack.c.b16 %v1070, %v1062
    %v1487 = vpack.c.b16 %v1079, %v1071
    %v1488 = vpack.c.b16 %v1080, %v1072
    %v1489 = vpack.c.b16 %v1081, %v1073
    %v1490 = vpack.c.b16 %v1082, %v1074
    %v1491 = vpack.c.b16 %v1083, %v1075
    %v1492 = vpack.c.b16 %v1084, %v1076
    %v1493 = vpack.c.b16 %v1085, %v1077
    %v1494 = vpack.c.b16 %v1086, %v1078
    %v1495 = vpack.c.b16 %v1095, %v1087
    %v1496 = vpack.c.b16 %v1096, %v1088
    %v1497 = vpack.c.b16 %v1097, %v1089
    %v1498 = vpack.c.b16 %v1098, %v1090
    %v1499 = vpack.c.b16 %v1099, %v1091
    %v1500 = vpack.c.b16 %v1100, %v1092
    %v1501 = vpack.c.b16 %v1101, %v1093
    %v1502 = vpack.c.b16 %v1102, %v1094
    %v1503 = vpack.c.b16 %v1111, %v1103
    %v1504 = vpack.c.b16 %v1112, %v1104
    %v1505 = vpack.c.b16 %v1113, %v1105
    %v1506 = vpack.c.b16 %v1114, %v1106
    %v1507 = vpack.c.b16 %v1115, %v1107
    %v1508 = vpack.c.b16 %v1116, %v1108
    %v1509 = vpack.c.b16 %v1117, %v1109
    %v1510 = vpack.c.b16 %v1118, %v1110
    %v1511 = vpack.c.b16 %v1127, %v1119
    %v1512 = vpack.c.b16 %v1128, %v1120
    %v1513 = vpack.c.b16 %v1129, %v1121
    %v1514 = vpack.c.b16 %v1130, %v1122
    %v1515 = vpack.c.b16 %v1131, %v1123
    %v1516 = vpack.c.b16 %v1132, %v1124
    %v1517 = vpack.c.b16 %v1133, %v1125
    %v1518 = vpack.c.b16 %v1134, %v1126
    %v1519 = vpack.c.b16 %v1143, %v1135
    %v1520 = vpack.c.b16 %v1144, %v1136
    %v1521 = vpack.c.b16 %v1145, %v1137
    %v1522 = vpack.c.b16 %v1146, %v1138
    %v1523 = vpack.c.b16 %v1147, %v1139
    %v1524 = vpack.c.b16 %v1148, %v1140
    %v1525 = vpack.c.b16 %v1149, %v1141
    %v1526 = vpack.c.b16 %v1150, %v1142
    %v1527 = vpack.c.b16 %v1159, %v1151
    %v1528 = vpack.c.b16 %v1160, %v1152
    %v1529 = vpack.c.b16 %v1161, %v1153
    %v1530 = vpack.c.b16 %v1162, %v1154
    %v1531 = vpack.c.b16 %v1163, %v1155
    %v1532 = vpack.c.b16 %v1164, %v1156
    %v1533 = vpack.c.b16 %v1165, %v1157
    %v1534 = vpack.c.b16 %v1166, %v1158
    %v1535 = vpack.c.b16 %v1175, %v1167
    %v1536 = vpack.c.b16 %v1176, %v1168
    %v1537 = vpack.c.b16 %v1177, %v1169
    %v1538 = vpack.c.b16 %v1178, %v1170
    %v1539 = vpack.c.b16 %v1179, %v1171
    %v1540 = vpack.c.b16 %v1180, %v1172
    %v1541 = vpack.c.b16 %v1181, %v1173
    %v1542 = vpack.c.b16 %v1182, %v1174
    %v1543 = vpack.c.b16 %v1191, %v1183
    %v1544 = vpack.c.b16 %v1192, %v1184
    %v1545 = vpack.c.b16 %v1193, %v1185
    %v1546 = vpack.c.b16 %v1194, %v1186
    %v1547 = vpack.c.b16 %v1195, %v1187
    %v1548 = vpack.c.b16 %v1196, %v1188
    %v1549 = vpack.c.b16 %v1197, %v1189
    %v1550 = vpack.c.b16 %v1198, %v1190
    %v1551 = vpack.c.b16 %v1207, %v1199
    %v1552 = vpack.c.b16 %v1208, %v1200
    %v1553 = vpack.c.b16 %v1209, %v1201
    %v1554 = vpack.c.b16 %v1210, %v1202
    %v1555 = vpack.c.b16 %v1211, %v1203
    %v1556 = vpack.c.b16 %v1212, %v1204
    %v1557 = vpack.c.b16 %v1213, %v1205
    %v1558 = vpack.c.b16 %v1214, %v1206
    %v1559 = vpack.c.b16 %v1223, %v1215
    %v1560 = vpack.c.b16 %v1224, %v1216
    %v1561 = vpack.c.b16 %v1225, %v1217
    %v1562 = vpack.c.b16 %v1226, %v1218
    %v1563 = vpack.c.b16 %v1227, %v1219
    %v1564 = vpack.c.b16 %v1228, %v1220
    %v1565 = vpack.c.b16 %v1229, %v1221
    %v1566 = vpack.c.b16 %v1230, %v1222
    %v1567 = vpack.c.b16 %v1239, %v1231
    %v1568 = vpack.c.b16 %v1240, %v1232
    %v1569 = vpack.c.b16 %v1241, %v1233
    %v1570 = vpack.c.b16 %v1242, %v1234
    %v1571 = vpack.c.b16 %v1243, %v1235
    %v1572 = vpack.c.b16 %v1244, %v1236
    %v1573 = vpack.c.b16 %v1245, %v1237
    %v1574 = vpack.c.b16 %v1246, %v1238
    %v1575 = vpack.c.b16 %v1255, %v1247
    %v1576 = vpack.c.b16 %v1256, %v1248
    %v1577 = vpack.c.b16 %v1257, %v1249
    %v1578 = vpack.c.b16 %v1258, %v1250
    %v1579 = vpack.c.b16 %v1259, %v1251
    %v1580 = vpack.c.b16 %v1260, %v1252
    %v1581 = vpack.c.b16 %v1261, %v1253
    %v1582 = vpack.c.b16 %v1262, %v1254
    %v1583 = vpack.c.b16 %v1271, %v1263
    %v1584 = vpack.c.b16 %v1272, %v1264
    %v1585 = vpack.c.b16 %v1273, %v1265
    %v1586 = vpack.c.b16 %v1274, %v1266
    %v1587 = vpack.c.b16 %v1275, %v1267
    %v1588 = vpack.c.b16 %v1276, %v1268
    %v1589 = vpack.c.b16 %v1277, %v1269
    %v1590 = vpack.c.b16 %v1278, %v1270
    %v1591 = vpack.c.b16 %v1287, %v1279
    %v1592 = vpack.c.b16 %v1288, %v1280
    %v1593 = vpack.c.b16 %v1289, %v1281
    %v1594 = vpack.c.b16 %v1290, %v1282
    %v1595 = vpack.c.b16 %v1291, %v1283
    %v1596 = vpack.c.b16 %v1292, %v1284
    %v1597 = vpack.c.b16 %v1293, %v1285
    %v1598 = vpack.c.b16 %v1294, %v1286
    %v1599 = vpack.c.b16 %v1303, %v1295
    %v1600 = vpack.c.b16 %v1304, %v1296
    %v1601 = vpack.c.b16 %v1305, %v1297
    %v1602 = vpack.c.b16 %v1306, %v1298
    %v1603 = vpack.c.b16 %v1307, %v1299
    %v1604 = vpack.c.b16 %v1308, %v1300
    %v1605 = vpack.c.b16 %v1309, %v1301
    %v1606 = vpack.c.b16 %v1310, %v1302
    %v1607 = vpack.c.b16 %v1319, %v1311
    %v1608 = vpack.c.b16 %v1320, %v1312
    %v1609 = vpack.c.b16 %v1321, %v1313
    %v1610 = vpack.c.b16 %v1322, %v1314
    %v1611 = vpack.c.b16 %v1323, %v1315
    %v1612 = vpack.c.b16 %v1324, %v1316
    %v1613 = vpack.c.b16 %v1325, %v1317
    %v1614 = vpack.c.b16 %v1326, %v1318
    %v1615 = vpack.c.b16 %v1335, %v1327
    %v1616 = vpack.c.b16 %v1336, %v1328
    %v1617 = vpack.c.b16 %v1337, %v1329
    %v1618 = vpack.c.b16 %v1338, %v1330
    %v1619 = vpack.c.b16 %v1339, %v1331
    %v1620 = vpack.c.b16 %v1340, %v1332
    %v1621 = vpack.c.b16 %v1341, %v1333
    %v1622 = vpack.c.b16 %v1342, %v1334
    %v1623 = vpack.c.b16 %v1351, %v1343
    %v1624 = vpack.c.b16 %v1352, %v1344
    %v1625 = vpack.c.b16 %v1353, %v1345
    %v1626 = vpack.c.b16 %v1354, %v1346
    %v1627 = vpack.c.b16 %v1355, %v1347
    %v1628 = vpack.c.b16 %v1356, %v1348
    %v1629 = vpack.c.b16 %v1357, %v1349
    %v1630 = vpack.c.b16 %v1358, %v1350
    %v1631 = vpack.c.b16 %v1367, %v1359
    %v1632 = vpack.c.b16 %v1368, %v1360
    %v1633 = vpack.c.b16 %v1369, %v1361
    %v1634 = vpack.c.b16 %v1370, %v1362
    %v1635 = vpack.c.b16 %v1371, %v1363
    %v1636 = vpack.c.b16 %v1372, %v1364
    %v1637 = vpack.c.b16 %v1373, %v1365
    %v1638 = vpack.c.b16 %v1374, %v1366
    %v1639 = vpack.c.b16 %v1383, %v1375
    %v1640 = vpack.c.b16 %v1384, %v1376
    %v1641 = vpack.c.b16 %v1385, %v1377
    %v1642 = vpack.c.b16 %v1386, %v1378
    %v1643 = vpack.c.b16 %v1387, %v1379
    %v1644 = vpack.c.b16 %v1388, %v1380
    %v1645 = vpack.c.b16 %v1389, %v1381
    %v1646 = vpack.c.b16 %v1390, %v1382
    %1903 = vmatprep.subr.bf16.mxu0 %v1448
    %1904 = vmatpush1.bf16.msra.mxu0 %v1447
    %1905 = vmatprep.subr.bf16.mxu0 %v1440
    %1906 = vmatpush1.bf16.msra.mxu0 %v1439
    %1907 = vmatprep.subr.bf16.mxu0 %v1432
    %1908 = vmatpush1.bf16.msra.mxu0 %v1431
    %1909 = vmatprep.subr.bf16.mxu0 %v1424
    %1910 = vmatpush1.bf16.msra.mxu0 %v1423
    %1911 = vmatprep.subr.bf16.mxu0 %v1416
    %1912 = vmatpush1.bf16.msra.mxu0 %v1415
    %1913 = vmatprep.subr.bf16.mxu0 %v1408
    %1914 = vmatpush1.bf16.msra.mxu0 %v1407
    %1915 = vmatprep.subr.bf16.mxu0 %v1400
    %1916 = vmatpush1.bf16.msra.mxu0 %v1399
    %1917 = vmatprep.subr.bf16.mxu0 %v1392
    %1918 = vmatpush1.bf16.msra.mxu0 %v1391
    %1919 = vmatprep.subr.bf16.mxu0 %v1512
    %1920 = vmatpush2.bf16.msra.mxu0 %v1511
    %1921 = vmatprep.subr.bf16.mxu0 %v1504
    %1922 = vmatpush2.bf16.msra.mxu0 %v1503
    %1923 = vmatprep.subr.bf16.mxu0 %v1496
    %1924 = vmatpush2.bf16.msra.mxu0 %v1495
    %1925 = vmatprep.subr.bf16.mxu0 %v1488
    %1926 = vmatpush2.bf16.msra.mxu0 %v1487
    %1927 = vmatprep.subr.bf16.mxu0 %v1480
    %1928 = vmatpush2.bf16.msra.mxu0 %v1479
    %1929 = vmatprep.subr.bf16.mxu0 %v1472
    %1930 = vmatpush2.bf16.msra.mxu0 %v1471
    %1931 = vmatprep.subr.bf16.mxu0 %v1464
    %1932 = vmatpush2.bf16.msra.mxu0 %v1463
    %1933 = vmatprep.subr.bf16.mxu0 %v1456
    %1934 = vmatpush2.bf16.msra.mxu0 %v1455
    %1935 = vmatprep.mubr.bf16.mxu0 %v322
    %1936 = vmatmul.mubr.bf16.gmra.mxu0 %v321
    %v1937 = vpop.f32.mrf.mxu0
    %v1938 = vadd.f32 %v586, %v1937
    %v1939 = vpop.f32.mrf.mxu0
    %v1940 = vadd.f32 %v590, %v1939
    %v1941 = vpop.f32.mrf.mxu0
    %v1942 = vpop.f32.mrf.mxu0
    %1943 = vdwg.mxu0
    %1944 = vmatprep.subr.bf16.mxu0 %v1576
    %1945 = vmatpush1.bf16.msra.mxu0 %v1575
    %1946 = vmatprep.subr.bf16.mxu0 %v1568
    %1947 = vmatpush1.bf16.msra.mxu0 %v1567
    %1948 = vmatprep.subr.bf16.mxu0 %v1560
    %1949 = vmatpush1.bf16.msra.mxu0 %v1559
    %1950 = vmatprep.subr.bf16.mxu0 %v1552
    %1951 = vmatpush1.bf16.msra.mxu0 %v1551
    %1952 = vmatprep.subr.bf16.mxu0 %v1544
    %1953 = vmatpush1.bf16.msra.mxu0 %v1543
    %1954 = vmatprep.subr.bf16.mxu0 %v1536
    %1955 = vmatpush1.bf16.msra.mxu0 %v1535
    %1956 = vmatprep.subr.bf16.mxu0 %v1528
    %1957 = vmatpush1.bf16.msra.mxu0 %v1527
    %1958 = vmatprep.subr.bf16.mxu0 %v1520
    %1959 = vmatpush1.bf16.msra.mxu0 %v1519
    %1960 = vmatprep.subr.bf16.mxu0 %v1640
    %1961 = vmatpush2.bf16.msra.mxu0 %v1639
    %1962 = vmatprep.subr.bf16.mxu0 %v1632
    %1963 = vmatpush2.bf16.msra.mxu0 %v1631
    %1964 = vmatprep.subr.bf16.mxu0 %v1624
    %1965 = vmatpush2.bf16.msra.mxu0 %v1623
    %1966 = vmatprep.subr.bf16.mxu0 %v1616
    %1967 = vmatpush2.bf16.msra.mxu0 %v1615
    %1968 = vmatprep.subr.bf16.mxu0 %v1608
    %1969 = vmatpush2.bf16.msra.mxu0 %v1607
    %1970 = vmatprep.subr.bf16.mxu0 %v1600
    %1971 = vmatpush2.bf16.msra.mxu0 %v1599
    %1972 = vmatprep.subr.bf16.mxu0 %v1592
    %1973 = vmatpush2.bf16.msra.mxu0 %v1591
    %1974 = vmatprep.subr.bf16.mxu0 %v1584
    %1975 = vmatpush2.bf16.msra.mxu0 %v1583
    %1976 = vmatprep.mubr.bf16.mxu0 %v324
    %1977 = vmatmul.mubr.bf16.gmra.mxu0 %v323
    %v1978 = vpop.f32.mrf.mxu0
    %v1979 = vadd.f32 %v1938, %v1978
    %v1980 = vpop.f32.mrf.mxu0
    %v1981 = vadd.f32 %v1940, %v1980
    %v1982 = vpop.f32.mrf.mxu0
    %v1983 = vpop.f32.mrf.mxu0
    %1984 = vdwg.mxu0
    %1985 = vmatprep.subr.bf16.mxu0 %v1450
    %1986 = vmatpush1.bf16.msra.mxu0 %v1449
    %1987 = vmatprep.subr.bf16.mxu0 %v1442
    %1988 = vmatpush1.bf16.msra.mxu0 %v1441
    %1989 = vmatprep.subr.bf16.mxu0 %v1434
    %1990 = vmatpush1.bf16.msra.mxu0 %v1433
    %1991 = vmatprep.subr.bf16.mxu0 %v1426
    %1992 = vmatpush1.bf16.msra.mxu0 %v1425
    %1993 = vmatprep.subr.bf16.mxu0 %v1418
    %1994 = vmatpush1.bf16.msra.mxu0 %v1417
    %1995 = vmatprep.subr.bf16.mxu0 %v1410
    %1996 = vmatpush1.bf16.msra.mxu0 %v1409
    %1997 = vmatprep.subr.bf16.mxu0 %v1402
    %1998 = vmatpush1.bf16.msra.mxu0 %v1401
    %1999 = vmatprep.subr.bf16.mxu0 %v1394
    %2000 = vmatpush1.bf16.msra.mxu0 %v1393
    %2001 = vmatprep.subr.bf16.mxu0 %v1514
    %2002 = vmatpush2.bf16.msra.mxu0 %v1513
    %2003 = vmatprep.subr.bf16.mxu0 %v1506
    %2004 = vmatpush2.bf16.msra.mxu0 %v1505
    %2005 = vmatprep.subr.bf16.mxu0 %v1498
    %2006 = vmatpush2.bf16.msra.mxu0 %v1497
    %2007 = vmatprep.subr.bf16.mxu0 %v1490
    %2008 = vmatpush2.bf16.msra.mxu0 %v1489
    %2009 = vmatprep.subr.bf16.mxu0 %v1482
    %2010 = vmatpush2.bf16.msra.mxu0 %v1481
    %2011 = vmatprep.subr.bf16.mxu0 %v1474
    %2012 = vmatpush2.bf16.msra.mxu0 %v1473
    %2013 = vmatprep.subr.bf16.mxu0 %v1466
    %2014 = vmatpush2.bf16.msra.mxu0 %v1465
    %2015 = vmatprep.subr.bf16.mxu0 %v1458
    %2016 = vmatpush2.bf16.msra.mxu0 %v1457
    %2017 = vmatprep.mubr.bf16.mxu0 %v322
    %2018 = vmatmul.mubr.bf16.gmra.mxu0 %v321
    %v2019 = vpop.f32.mrf.mxu0
    %v2020 = vadd.f32 %v594, %v2019
    %v2021 = vpop.f32.mrf.mxu0
    %v2022 = vadd.f32 %v598, %v2021
    %v2023 = vpop.f32.mrf.mxu0
    %v2024 = vpop.f32.mrf.mxu0
    %2025 = vdwg.mxu0
    %2026 = vmatprep.subr.bf16.mxu0 %v1578
    %2027 = vmatpush1.bf16.msra.mxu0 %v1577
    %2028 = vmatprep.subr.bf16.mxu0 %v1570
    %2029 = vmatpush1.bf16.msra.mxu0 %v1569
    %2030 = vmatprep.subr.bf16.mxu0 %v1562
    %2031 = vmatpush1.bf16.msra.mxu0 %v1561
    %2032 = vmatprep.subr.bf16.mxu0 %v1554
    %2033 = vmatpush1.bf16.msra.mxu0 %v1553
    %2034 = vmatprep.subr.bf16.mxu0 %v1546
    %2035 = vmatpush1.bf16.msra.mxu0 %v1545
    %2036 = vmatprep.subr.bf16.mxu0 %v1538
    %2037 = vmatpush1.bf16.msra.mxu0 %v1537
    %2038 = vmatprep.subr.bf16.mxu0 %v1530
    %2039 = vmatpush1.bf16.msra.mxu0 %v1529
    %2040 = vmatprep.subr.bf16.mxu0 %v1522
    %2041 = vmatpush1.bf16.msra.mxu0 %v1521
    %2042 = vmatprep.subr.bf16.mxu0 %v1642
    %2043 = vmatpush2.bf16.msra.mxu0 %v1641
    %2044 = vmatprep.subr.bf16.mxu0 %v1634
    %2045 = vmatpush2.bf16.msra.mxu0 %v1633
    %2046 = vmatprep.subr.bf16.mxu0 %v1626
    %2047 = vmatpush2.bf16.msra.mxu0 %v1625
    %2048 = vmatprep.subr.bf16.mxu0 %v1618
    %2049 = vmatpush2.bf16.msra.mxu0 %v1617
    %2050 = vmatprep.subr.bf16.mxu0 %v1610
    %2051 = vmatpush2.bf16.msra.mxu0 %v1609
    %2052 = vmatprep.subr.bf16.mxu0 %v1602
    %2053 = vmatpush2.bf16.msra.mxu0 %v1601
    %2054 = vmatprep.subr.bf16.mxu0 %v1594
    %2055 = vmatpush2.bf16.msra.mxu0 %v1593
    %2056 = vmatprep.subr.bf16.mxu0 %v1586
    %2057 = vmatpush2.bf16.msra.mxu0 %v1585
    %2058 = vmatprep.mubr.bf16.mxu0 %v324
    %2059 = vmatmul.mubr.bf16.gmra.mxu0 %v323
    %v2060 = vpop.f32.mrf.mxu0
    %v2061 = vadd.f32 %v2020, %v2060
    %v2062 = vpop.f32.mrf.mxu0
    %v2063 = vadd.f32 %v2022, %v2062
    %v2064 = vpop.f32.mrf.mxu0
    %v2065 = vpop.f32.mrf.mxu0
    %2066 = vdwg.mxu0
    %2067 = vmatprep.subr.bf16.mxu0 %v1452
    %2068 = vmatpush1.bf16.msra.mxu0 %v1451
    %2069 = vmatprep.subr.bf16.mxu0 %v1444
    %2070 = vmatpush1.bf16.msra.mxu0 %v1443
    %2071 = vmatprep.subr.bf16.mxu0 %v1436
    %2072 = vmatpush1.bf16.msra.mxu0 %v1435
    %2073 = vmatprep.subr.bf16.mxu0 %v1428
    %2074 = vmatpush1.bf16.msra.mxu0 %v1427
    %2075 = vmatprep.subr.bf16.mxu0 %v1420
    %2076 = vmatpush1.bf16.msra.mxu0 %v1419
    %2077 = vmatprep.subr.bf16.mxu0 %v1412
    %2078 = vmatpush1.bf16.msra.mxu0 %v1411
    %2079 = vmatprep.subr.bf16.mxu0 %v1404
    %2080 = vmatpush1.bf16.msra.mxu0 %v1403
    %2081 = vmatprep.subr.bf16.mxu0 %v1396
    %2082 = vmatpush1.bf16.msra.mxu0 %v1395
    %2083 = vmatprep.subr.bf16.mxu0 %v1516
    %2084 = vmatpush2.bf16.msra.mxu0 %v1515
    %2085 = vmatprep.subr.bf16.mxu0 %v1508
    %2086 = vmatpush2.bf16.msra.mxu0 %v1507
    %2087 = vmatprep.subr.bf16.mxu0 %v1500
    %2088 = vmatpush2.bf16.msra.mxu0 %v1499
    %2089 = vmatprep.subr.bf16.mxu0 %v1492
    %2090 = vmatpush2.bf16.msra.mxu0 %v1491
    %2091 = vmatprep.subr.bf16.mxu0 %v1484
    %2092 = vmatpush2.bf16.msra.mxu0 %v1483
    %2093 = vmatprep.subr.bf16.mxu0 %v1476
    %2094 = vmatpush2.bf16.msra.mxu0 %v1475
    %2095 = vmatprep.subr.bf16.mxu0 %v1468
    %2096 = vmatpush2.bf16.msra.mxu0 %v1467
    %2097 = vmatprep.subr.bf16.mxu0 %v1460
    %2098 = vmatpush2.bf16.msra.mxu0 %v1459
    %2099 = vmatprep.mubr.bf16.mxu0 %v322
    %2100 = vmatmul.mubr.bf16.gmra.mxu0 %v321
    %v2101 = vpop.f32.mrf.mxu0
    %v2102 = vadd.f32 %v602, %v2101
    %v2103 = vpop.f32.mrf.mxu0
    %v2104 = vadd.f32 %v606, %v2103
    %v2105 = vpop.f32.mrf.mxu0
    %v2106 = vpop.f32.mrf.mxu0
    %2107 = vdwg.mxu0
    %2108 = vmatprep.subr.bf16.mxu0 %v1580
    %2109 = vmatpush1.bf16.msra.mxu0 %v1579
    %2110 = vmatprep.subr.bf16.mxu0 %v1572
    %2111 = vmatpush1.bf16.msra.mxu0 %v1571
    %2112 = vmatprep.subr.bf16.mxu0 %v1564
    %2113 = vmatpush1.bf16.msra.mxu0 %v1563
    %2114 = vmatprep.subr.bf16.mxu0 %v1556
    %2115 = vmatpush1.bf16.msra.mxu0 %v1555
    %2116 = vmatprep.subr.bf16.mxu0 %v1548
    %2117 = vmatpush1.bf16.msra.mxu0 %v1547
    %2118 = vmatprep.subr.bf16.mxu0 %v1540
    %2119 = vmatpush1.bf16.msra.mxu0 %v1539
    %2120 = vmatprep.subr.bf16.mxu0 %v1532
    %2121 = vmatpush1.bf16.msra.mxu0 %v1531
    %2122 = vmatprep.subr.bf16.mxu0 %v1524
    %2123 = vmatpush1.bf16.msra.mxu0 %v1523
    %2124 = vmatprep.subr.bf16.mxu0 %v1644
    %2125 = vmatpush2.bf16.msra.mxu0 %v1643
    %2126 = vmatprep.subr.bf16.mxu0 %v1636
    %2127 = vmatpush2.bf16.msra.mxu0 %v1635
    %2128 = vmatprep.subr.bf16.mxu0 %v1628
    %2129 = vmatpush2.bf16.msra.mxu0 %v1627
    %2130 = vmatprep.subr.bf16.mxu0 %v1620
    %2131 = vmatpush2.bf16.msra.mxu0 %v1619
    %2132 = vmatprep.subr.bf16.mxu0 %v1612
    %2133 = vmatpush2.bf16.msra.mxu0 %v1611
    %2134 = vmatprep.subr.bf16.mxu0 %v1604
    %2135 = vmatpush2.bf16.msra.mxu0 %v1603
    %2136 = vmatprep.subr.bf16.mxu0 %v1596
    %2137 = vmatpush2.bf16.msra.mxu0 %v1595
    %2138 = vmatprep.subr.bf16.mxu0 %v1588
    %2139 = vmatpush2.bf16.msra.mxu0 %v1587
    %2140 = vmatprep.mubr.bf16.mxu0 %v324
    %2141 = vmatmul.mubr.bf16.gmra.mxu0 %v323
    %v2142 = vpop.f32.mrf.mxu0
    %v2143 = vadd.f32 %v2102, %v2142
    %v2144 = vpop.f32.mrf.mxu0
    %v2145 = vadd.f32 %v2104, %v2144
    %v2146 = vpop.f32.mrf.mxu0
    %v2147 = vpop.f32.mrf.mxu0
    %2148 = vdwg.mxu0
    %2149 = vmatprep.subr.bf16.mxu0 %v1454
    %2150 = vmatpush1.bf16.msra.mxu0 %v1453
    %2151 = vmatprep.subr.bf16.mxu0 %v1446
    %2152 = vmatpush1.bf16.msra.mxu0 %v1445
    %2153 = vmatprep.subr.bf16.mxu0 %v1438
    %2154 = vmatpush1.bf16.msra.mxu0 %v1437
    %2155 = vmatprep.subr.bf16.mxu0 %v1430
    %2156 = vmatpush1.bf16.msra.mxu0 %v1429
    %2157 = vmatprep.subr.bf16.mxu0 %v1422
    %2158 = vmatpush1.bf16.msra.mxu0 %v1421
    %2159 = vmatprep.subr.bf16.mxu0 %v1414
    %2160 = vmatpush1.bf16.msra.mxu0 %v1413
    %2161 = vmatprep.subr.bf16.mxu0 %v1406
    %2162 = vmatpush1.bf16.msra.mxu0 %v1405
    %2163 = vmatprep.subr.bf16.mxu0 %v1398
    %2164 = vmatpush1.bf16.msra.mxu0 %v1397
    %2165 = vmatprep.subr.bf16.mxu0 %v1518
    %2166 = vmatpush2.bf16.msra.mxu0 %v1517
    %2167 = vmatprep.subr.bf16.mxu0 %v1510
    %2168 = vmatpush2.bf16.msra.mxu0 %v1509
    %2169 = vmatprep.subr.bf16.mxu0 %v1502
    %2170 = vmatpush2.bf16.msra.mxu0 %v1501
    %2171 = vmatprep.subr.bf16.mxu0 %v1494
    %2172 = vmatpush2.bf16.msra.mxu0 %v1493
    %2173 = vmatprep.subr.bf16.mxu0 %v1486
    %2174 = vmatpush2.bf16.msra.mxu0 %v1485
    %2175 = vmatprep.subr.bf16.mxu0 %v1478
    %2176 = vmatpush2.bf16.msra.mxu0 %v1477
    %2177 = vmatprep.subr.bf16.mxu0 %v1470
    %2178 = vmatpush2.bf16.msra.mxu0 %v1469
    %2179 = vmatprep.subr.bf16.mxu0 %v1462
    %2180 = vmatpush2.bf16.msra.mxu0 %v1461
    %2181 = vmatprep.mubr.bf16.mxu0 %v322
    %2182 = vmatmul.mubr.bf16.gmra.mxu0 %v321
    %v2183 = vpop.f32.mrf.mxu0
    %v2184 = vadd.f32 %v610, %v2183
    %v2185 = vpop.f32.mrf.mxu0
    %v2186 = vadd.f32 %v614, %v2185
    %v2187 = vpop.f32.mrf.mxu0
    %v2188 = vpop.f32.mrf.mxu0
    %2189 = vdwg.mxu0
    %2190 = vmatprep.subr.bf16.mxu0 %v1582
    %2191 = vmatpush1.bf16.msra.mxu0 %v1581
    %2192 = vmatprep.subr.bf16.mxu0 %v1574
    %2193 = vmatpush1.bf16.msra.mxu0 %v1573
    %2194 = vmatprep.subr.bf16.mxu0 %v1566
    %2195 = vmatpush1.bf16.msra.mxu0 %v1565
    %2196 = vmatprep.subr.bf16.mxu0 %v1558
    %2197 = vmatpush1.bf16.msra.mxu0 %v1557
    %2198 = vmatprep.subr.bf16.mxu0 %v1550
    %2199 = vmatpush1.bf16.msra.mxu0 %v1549
    %2200 = vmatprep.subr.bf16.mxu0 %v1542
    %2201 = vmatpush1.bf16.msra.mxu0 %v1541
    %2202 = vmatprep.subr.bf16.mxu0 %v1534
    %2203 = vmatpush1.bf16.msra.mxu0 %v1533
    %2204 = vmatprep.subr.bf16.mxu0 %v1526
    %2205 = vmatpush1.bf16.msra.mxu0 %v1525
    %2206 = vmatprep.subr.bf16.mxu0 %v1646
    %2207 = vmatpush2.bf16.msra.mxu0 %v1645
    %2208 = vmatprep.subr.bf16.mxu0 %v1638
    %2209 = vmatpush2.bf16.msra.mxu0 %v1637
    %2210 = vmatprep.subr.bf16.mxu0 %v1630
    %2211 = vmatpush2.bf16.msra.mxu0 %v1629
    %2212 = vmatprep.subr.bf16.mxu0 %v1622
    %2213 = vmatpush2.bf16.msra.mxu0 %v1621
    %2214 = vmatprep.subr.bf16.mxu0 %v1614
    %2215 = vmatpush2.bf16.msra.mxu0 %v1613
    %2216 = vmatprep.subr.bf16.mxu0 %v1606
    %2217 = vmatpush2.bf16.msra.mxu0 %v1605
    %2218 = vmatprep.subr.bf16.mxu0 %v1598
    %2219 = vmatpush2.bf16.msra.mxu0 %v1597
    %2220 = vmatprep.subr.bf16.mxu0 %v1590
    %2221 = vmatpush2.bf16.msra.mxu0 %v1589
    %2222 = vmatprep.mubr.bf16.mxu0 %v324
    %2223 = vmatmul.mubr.bf16.gmra.mxu0 %v323
    %v2224 = vpop.f32.mrf.mxu0
    %v2225 = vadd.f32 %v2184, %v2224
    %v2226 = vpop.f32.mrf.mxu0
    %v2227 = vadd.f32 %v2186, %v2226
    %v2228 = vpop.f32.mrf.mxu0
    %v2229 = vpop.f32.mrf.mxu0
    %2230 = vdwg.mxu0
    %v2231 = vmax.f32 %v1979, 0.0
    %v2232 = vmax.f32 %v1981, 0.0
    %v2233 = vmax.f32 %v2061, 0.0
    %v2234 = vmax.f32 %v2063, 0.0
    %v2235 = vmax.f32 %v2143, 0.0
    %v2236 = vmax.f32 %v2145, 0.0
    %v2237 = vmax.f32 %v2225, 0.0
    %v2238 = vmax.f32 %v2227, 0.0
    %v2239 = vpack.c.bf16 %v2231, %v2231
    %v2240 = vpack.c.bf16 %v2232, %v2232
    %v2241 = vpack.c.bf16 %v2233, %v2233
    %v2242 = vpack.c.bf16 %v2234, %v2234
    %v2243 = vpack.c.bf16 %v2235, %v2235
    %v2244 = vpack.c.bf16 %v2236, %v2236
    %v2245 = vpack.c.bf16 %v2237, %v2237
    %v2246 = vpack.c.bf16 %v2238, %v2238
    %v2247 = vld [vmem:[#allocation10] sm:$0xf]
    %v2248 = vld [vmem:[#allocation10 + $0x4] sm:$0xf]
    %v2249 = vld [vmem:[#allocation10 + $0x8] sm:$0xf]
    %v2250 = vld [vmem:[#allocation10 + $0xc] sm:$0xf]
    %v2251 = vld [vmem:[#allocation10 + $0x10] sm:$0xf]
    %v2252 = vld [vmem:[#allocation10 + $0x14] sm:$0xf]
    %v2253 = vld [vmem:[#allocation10 + $0x18] sm:$0xf]
    %v2254 = vld [vmem:[#allocation10 + $0x1c] sm:$0xf]
    %v2255 = vld [vmem:[#allocation10 + $0x20] sm:$0xf]
    %v2256 = vld [vmem:[#allocation10 + $0x24] sm:$0xf]
    %v2257 = vld [vmem:[#allocation10 + $0x28] sm:$0xf]
    %v2258 = vld [vmem:[#allocation10 + $0x2c] sm:$0xf]
    %v2259 = vld [vmem:[#allocation10 + $0x30] sm:$0xf]
    %v2260 = vld [vmem:[#allocation10 + $0x34] sm:$0xf]
    %v2261 = vld [vmem:[#allocation10 + $0x38] sm:$0xf]
    %v2262 = vld [vmem:[#allocation10 + $0x3c] sm:$0xf]
    %v2263 = vld [vmem:[#allocation10 + $0x40] sm:$0xf]
    %v2264 = vld [vmem:[#allocation10 + $0x44] sm:$0xf]
    %v2265 = vld [vmem:[#allocation10 + $0x48] sm:$0xf]
    %v2266 = vld [vmem:[#allocation10 + $0x4c] sm:$0xf]
    %v2267 = vld [vmem:[#allocation10 + $0x50] sm:$0xf]
    %v2268 = vld [vmem:[#allocation10 + $0x54] sm:$0xf]
    %v2269 = vld [vmem:[#allocation10 + $0x58] sm:$0xf]
    %v2270 = vld [vmem:[#allocation10 + $0x5c] sm:$0xf]
    %v2271 = vld [vmem:[#allocation10 + $0x60] sm:$0xf]
    %v2272 = vld [vmem:[#allocation10 + $0x64] sm:$0xf]
    %v2273 = vld [vmem:[#allocation10 + $0x68] sm:$0xf]
    %v2274 = vld [vmem:[#allocation10 + $0x6c] sm:$0xf]
    %v2275 = vld [vmem:[#allocation10 + $0x70] sm:$0xf]
    %v2276 = vld [vmem:[#allocation10 + $0x74] sm:$0xf]
    %v2277 = vld [vmem:[#allocation10 + $0x78] sm:$0xf]
    %v2278 = vld [vmem:[#allocation10 + $0x7c] sm:$0xf]
    %v2279 = vld [vmem:[#allocation10 + $0x80] sm:$0xf]
    %v2280 = vld [vmem:[#allocation10 + $0x84] sm:$0xf]
    %v2281 = vld [vmem:[#allocation10 + $0x88] sm:$0xf]
    %v2282 = vld [vmem:[#allocation10 + $0x8c] sm:$0xf]
    %v2283 = vld [vmem:[#allocation10 + $0x90] sm:$0xf]
    %v2284 = vld [vmem:[#allocation10 + $0x94] sm:$0xf]
    %v2285 = vld [vmem:[#allocation10 + $0x98] sm:$0xf]
    %v2286 = vld [vmem:[#allocation10 + $0x9c] sm:$0xf]
    %v2287 = vld [vmem:[#allocation10 + $0xa0] sm:$0xf]
    %v2288 = vld [vmem:[#allocation10 + $0xa4] sm:$0xf]
    %v2289 = vld [vmem:[#allocation10 + $0xa8] sm:$0xf]
    %v2290 = vld [vmem:[#allocation10 + $0xac] sm:$0xf]
    %v2291 = vld [vmem:[#allocation10 + $0xb0] sm:$0xf]
    %v2292 = vld [vmem:[#allocation10 + $0xb4] sm:$0xf]
    %v2293 = vld [vmem:[#allocation10 + $0xb8] sm:$0xf]
    %v2294 = vld [vmem:[#allocation10 + $0xbc] sm:$0xf]
    %v2295 = vld [vmem:[#allocation10 + $0xc0] sm:$0xf]
    %v2296 = vld [vmem:[#allocation10 + $0xc4] sm:$0xf]
    %v2297 = vld [vmem:[#allocation10 + $0xc8] sm:$0xf]
    %v2298 = vld [vmem:[#allocation10 + $0xcc] sm:$0xf]
    %v2299 = vld [vmem:[#allocation10 + $0xd0] sm:$0xf]
    %v2300 = vld [vmem:[#allocation10 + $0xd4] sm:$0xf]
    %v2301 = vld [vmem:[#allocation10 + $0xd8] sm:$0xf]
    %v2302 = vld [vmem:[#allocation10 + $0xdc] sm:$0xf]
    %v2303 = vld [vmem:[#allocation10 + $0xe0] sm:$0xf]
    %v2304 = vld [vmem:[#allocation10 + $0xe4] sm:$0xf]
    %v2305 = vld [vmem:[#allocation10 + $0xe8] sm:$0xf]
    %v2306 = vld [vmem:[#allocation10 + $0xec] sm:$0xf]
    %v2307 = vld [vmem:[#allocation10 + $0xf0] sm:$0xf]
    %v2308 = vld [vmem:[#allocation10 + $0xf4] sm:$0xf]
    %v2309 = vld [vmem:[#allocation10 + $0xf8] sm:$0xf]
    %v2310 = vld [vmem:[#allocation10 + $0xfc] sm:$0xf]
    %v2311 = vld [vmem:[#allocation10 + $0x100] sm:$0xf]
    %v2312 = vld [vmem:[#allocation10 + $0x104] sm:$0xf]
    %v2313 = vld [vmem:[#allocation10 + $0x108] sm:$0xf]
    %v2314 = vld [vmem:[#allocation10 + $0x10c] sm:$0xf]
    %v2315 = vld [vmem:[#allocation10 + $0x110] sm:$0xf]
    %v2316 = vld [vmem:[#allocation10 + $0x114] sm:$0xf]
    %v2317 = vld [vmem:[#allocation10 + $0x118] sm:$0xf]
    %v2318 = vld [vmem:[#allocation10 + $0x11c] sm:$0xf]
    %v2319 = vld [vmem:[#allocation10 + $0x120] sm:$0xf]
    %v2320 = vld [vmem:[#allocation10 + $0x124] sm:$0xf]
    %v2321 = vld [vmem:[#allocation10 + $0x128] sm:$0xf]
    %v2322 = vld [vmem:[#allocation10 + $0x12c] sm:$0xf]
    %v2323 = vld [vmem:[#allocation10 + $0x130] sm:$0xf]
    %v2324 = vld [vmem:[#allocation10 + $0x134] sm:$0xf]
    %v2325 = vld [vmem:[#allocation10 + $0x138] sm:$0xf]
    %v2326 = vld [vmem:[#allocation10 + $0x13c] sm:$0xf]
    %v2327 = vld [vmem:[#allocation10 + $0x140] sm:$0xf]
    %v2328 = vld [vmem:[#allocation10 + $0x144] sm:$0xf]
    %v2329 = vld [vmem:[#allocation10 + $0x148] sm:$0xf]
    %v2330 = vld [vmem:[#allocation10 + $0x14c] sm:$0xf]
    %v2331 = vld [vmem:[#allocation10 + $0x150] sm:$0xf]
    %v2332 = vld [vmem:[#allocation10 + $0x154] sm:$0xf]
    %v2333 = vld [vmem:[#allocation10 + $0x158] sm:$0xf]
    %v2334 = vld [vmem:[#allocation10 + $0x15c] sm:$0xf]
    %v2335 = vld [vmem:[#allocation10 + $0x160] sm:$0xf]
    %v2336 = vld [vmem:[#allocation10 + $0x164] sm:$0xf]
    %v2337 = vld [vmem:[#allocation10 + $0x168] sm:$0xf]
    %v2338 = vld [vmem:[#allocation10 + $0x16c] sm:$0xf]
    %v2339 = vld [vmem:[#allocation10 + $0x170] sm:$0xf]
    %v2340 = vld [vmem:[#allocation10 + $0x174] sm:$0xf]
    %v2341 = vld [vmem:[#allocation10 + $0x178] sm:$0xf]
    %v2342 = vld [vmem:[#allocation10 + $0x17c] sm:$0xf]
    %v2343 = vld [vmem:[#allocation10 + $0x180] sm:$0xf]
    %v2344 = vld [vmem:[#allocation10 + $0x184] sm:$0xf]
    %v2345 = vld [vmem:[#allocation10 + $0x188] sm:$0xf]
    %v2346 = vld [vmem:[#allocation10 + $0x18c] sm:$0xf]
    %v2347 = vld [vmem:[#allocation10 + $0x190] sm:$0xf]
    %v2348 = vld [vmem:[#allocation10 + $0x194] sm:$0xf]
    %v2349 = vld [vmem:[#allocation10 + $0x198] sm:$0xf]
    %v2350 = vld [vmem:[#allocation10 + $0x19c] sm:$0xf]
    %v2351 = vld [vmem:[#allocation10 + $0x1a0] sm:$0xf]
    %v2352 = vld [vmem:[#allocation10 + $0x1a4] sm:$0xf]
    %v2353 = vld [vmem:[#allocation10 + $0x1a8] sm:$0xf]
    %v2354 = vld [vmem:[#allocation10 + $0x1ac] sm:$0xf]
    %v2355 = vld [vmem:[#allocation10 + $0x1b0] sm:$0xf]
    %v2356 = vld [vmem:[#allocation10 + $0x1b4] sm:$0xf]
    %v2357 = vld [vmem:[#allocation10 + $0x1b8] sm:$0xf]
    %v2358 = vld [vmem:[#allocation10 + $0x1bc] sm:$0xf]
    %v2359 = vld [vmem:[#allocation10 + $0x1c0] sm:$0xf]
    %v2360 = vld [vmem:[#allocation10 + $0x1c4] sm:$0xf]
    %v2361 = vld [vmem:[#allocation10 + $0x1c8] sm:$0xf]
    %v2362 = vld [vmem:[#allocation10 + $0x1cc] sm:$0xf]
    %v2363 = vld [vmem:[#allocation10 + $0x1d0] sm:$0xf]
    %v2364 = vld [vmem:[#allocation10 + $0x1d4] sm:$0xf]
    %v2365 = vld [vmem:[#allocation10 + $0x1d8] sm:$0xf]
    %v2366 = vld [vmem:[#allocation10 + $0x1dc] sm:$0xf]
    %v2367 = vld [vmem:[#allocation10 + $0x1e0] sm:$0xf]
    %v2368 = vld [vmem:[#allocation10 + $0x1e4] sm:$0xf]
    %v2369 = vld [vmem:[#allocation10 + $0x1e8] sm:$0xf]
    %v2370 = vld [vmem:[#allocation10 + $0x1ec] sm:$0xf]
    %v2371 = vld [vmem:[#allocation10 + $0x1f0] sm:$0xf]
    %v2372 = vld [vmem:[#allocation10 + $0x1f4] sm:$0xf]
    %v2373 = vld [vmem:[#allocation10 + $0x1f8] sm:$0xf]
    %v2374 = vld [vmem:[#allocation10 + $0x1fc] sm:$0xf]
    %v2375 = vld [vmem:[%s8] sm:$0x1]
    %v2377 = vlaneseq
    %v2378 = vshrl.u32 %v2377, 7
    %v2379 = vsub.s32 0, %v2378
    %v2380 = vrot.slane %v2375, %v2379
    %v2510 = vunpack.c.l.b16 %v2247
    %v2511 = vunpack.c.l.b16 %v2248
    %v2512 = vunpack.c.l.b16 %v2249
    %v2513 = vunpack.c.l.b16 %v2250
    %v2514 = vunpack.c.l.b16 %v2251
    %v2515 = vunpack.c.l.b16 %v2252
    %v2516 = vunpack.c.l.b16 %v2253
    %v2517 = vunpack.c.l.b16 %v2254
    %v2518 = vunpack.c.l.b16 %v2255
    %v2519 = vunpack.c.l.b16 %v2256
    %v2520 = vunpack.c.l.b16 %v2257
    %v2521 = vunpack.c.l.b16 %v2258
    %v2522 = vunpack.c.l.b16 %v2259
    %v2523 = vunpack.c.l.b16 %v2260
    %v2524 = vunpack.c.l.b16 %v2261
    %v2525 = vunpack.c.l.b16 %v2262
    %v2526 = vunpack.c.l.b16 %v2263
    %v2527 = vunpack.c.l.b16 %v2264
    %v2528 = vunpack.c.l.b16 %v2265
    %v2529 = vunpack.c.l.b16 %v2266
    %v2530 = vunpack.c.l.b16 %v2267
    %v2531 = vunpack.c.l.b16 %v2268
    %v2532 = vunpack.c.l.b16 %v2269
    %v2533 = vunpack.c.l.b16 %v2270
    %v2534 = vunpack.c.l.b16 %v2271
    %v2535 = vunpack.c.l.b16 %v2272
    %v2536 = vunpack.c.l.b16 %v2273
    %v2537 = vunpack.c.l.b16 %v2274
    %v2538 = vunpack.c.l.b16 %v2275
    %v2539 = vunpack.c.l.b16 %v2276
    %v2540 = vunpack.c.l.b16 %v2277
    %v2541 = vunpack.c.l.b16 %v2278
    %v2542 = vunpack.c.l.b16 %v2279
    %v2543 = vunpack.c.l.b16 %v2280
    %v2544 = vunpack.c.l.b16 %v2281
    %v2545 = vunpack.c.l.b16 %v2282
    %v2546 = vunpack.c.l.b16 %v2283
    %v2547 = vunpack.c.l.b16 %v2284
    %v2548 = vunpack.c.l.b16 %v2285
    %v2549 = vunpack.c.l.b16 %v2286
    %v2550 = vunpack.c.l.b16 %v2287
    %v2551 = vunpack.c.l.b16 %v2288
    %v2552 = vunpack.c.l.b16 %v2289
    %v2553 = vunpack.c.l.b16 %v2290
    %v2554 = vunpack.c.l.b16 %v2291
    %v2555 = vunpack.c.l.b16 %v2292
    %v2556 = vunpack.c.l.b16 %v2293
    %v2557 = vunpack.c.l.b16 %v2294
    %v2558 = vunpack.c.l.b16 %v2295
    %v2559 = vunpack.c.l.b16 %v2296
    %v2560 = vunpack.c.l.b16 %v2297
    %v2561 = vunpack.c.l.b16 %v2298
    %v2562 = vunpack.c.l.b16 %v2299
    %v2563 = vunpack.c.l.b16 %v2300
    %v2564 = vunpack.c.l.b16 %v2301
    %v2565 = vunpack.c.l.b16 %v2302
    %v2566 = vunpack.c.l.b16 %v2303
    %v2567 = vunpack.c.l.b16 %v2304
    %v2568 = vunpack.c.l.b16 %v2305
    %v2569 = vunpack.c.l.b16 %v2306
    %v2570 = vunpack.c.l.b16 %v2307
    %v2571 = vunpack.c.l.b16 %v2308
    %v2572 = vunpack.c.l.b16 %v2309
    %v2573 = vunpack.c.l.b16 %v2310
    %v2574 = vunpack.c.l.b16 %v2311
    %v2575 = vunpack.c.l.b16 %v2312
    %v2576 = vunpack.c.l.b16 %v2313
    %v2577 = vunpack.c.l.b16 %v2314
    %v2578 = vunpack.c.l.b16 %v2315
    %v2579 = vunpack.c.l.b16 %v2316
    %v2580 = vunpack.c.l.b16 %v2317
    %v2581 = vunpack.c.l.b16 %v2318
    %v2582 = vunpack.c.l.b16 %v2319
    %v2583 = vunpack.c.l.b16 %v2320
    %v2584 = vunpack.c.l.b16 %v2321
    %v2585 = vunpack.c.l.b16 %v2322
    %v2586 = vunpack.c.l.b16 %v2323
    %v2587 = vunpack.c.l.b16 %v2324
    %v2588 = vunpack.c.l.b16 %v2325
    %v2589 = vunpack.c.l.b16 %v2326
    %v2590 = vunpack.c.l.b16 %v2327
    %v2591 = vunpack.c.l.b16 %v2328
    %v2592 = vunpack.c.l.b16 %v2329
    %v2593 = vunpack.c.l.b16 %v2330
    %v2594 = vunpack.c.l.b16 %v2331
    %v2595 = vunpack.c.l.b16 %v2332
    %v2596 = vunpack.c.l.b16 %v2333
    %v2597 = vunpack.c.l.b16 %v2334
    %v2598 = vunpack.c.l.b16 %v2335
    %v2599 = vunpack.c.l.b16 %v2336
    %v2600 = vunpack.c.l.b16 %v2337
    %v2601 = vunpack.c.l.b16 %v2338
    %v2602 = vunpack.c.l.b16 %v2339
    %v2603 = vunpack.c.l.b16 %v2340
    %v2604 = vunpack.c.l.b16 %v2341
    %v2605 = vunpack.c.l.b16 %v2342
    %v2606 = vunpack.c.l.b16 %v2343
    %v2607 = vunpack.c.l.b16 %v2344
    %v2608 = vunpack.c.l.b16 %v2345
    %v2609 = vunpack.c.l.b16 %v2346
    %v2610 = vunpack.c.l.b16 %v2347
    %v2611 = vunpack.c.l.b16 %v2348
    %v2612 = vunpack.c.l.b16 %v2349
    %v2613 = vunpack.c.l.b16 %v2350
    %v2614 = vunpack.c.l.b16 %v2351
    %v2615 = vunpack.c.l.b16 %v2352
    %v2616 = vunpack.c.l.b16 %v2353
    %v2617 = vunpack.c.l.b16 %v2354
    %v2618 = vunpack.c.l.b16 %v2355
    %v2619 = vunpack.c.l.b16 %v2356
    %v2620 = vunpack.c.l.b16 %v2357
    %v2621 = vunpack.c.l.b16 %v2358
    %v2622 = vunpack.c.l.b16 %v2359
    %v2623 = vunpack.c.l.b16 %v2360
    %v2624 = vunpack.c.l.b16 %v2361
    %v2625 = vunpack.c.l.b16 %v2362
    %v2626 = vunpack.c.l.b16 %v2363
    %v2627 = vunpack.c.l.b16 %v2364
    %v2628 = vunpack.c.l.b16 %v2365
    %v2629 = vunpack.c.l.b16 %v2366
    %v2630 = vunpack.c.l.b16 %v2367
    %v2631 = vunpack.c.l.b16 %v2368
    %v2632 = vunpack.c.l.b16 %v2369
    %v2633 = vunpack.c.l.b16 %v2370
    %v2634 = vunpack.c.l.b16 %v2371
    %v2635 = vunpack.c.l.b16 %v2372
    %v2636 = vunpack.c.l.b16 %v2373
    %v2637 = vunpack.c.l.b16 %v2374
    %v2638 = vpack.c.b16 %v2511, %v2510
    %v2639 = vpack.c.b16 %v2513, %v2512
    %v2640 = vpack.c.b16 %v2515, %v2514
    %v2641 = vpack.c.b16 %v2517, %v2516
    %v2642 = vpack.c.b16 %v2519, %v2518
    %v2643 = vpack.c.b16 %v2521, %v2520
    %v2644 = vpack.c.b16 %v2523, %v2522
    %v2645 = vpack.c.b16 %v2525, %v2524
    %v2646 = vpack.c.b16 %v2527, %v2526
    %v2647 = vpack.c.b16 %v2529, %v2528
    %v2648 = vpack.c.b16 %v2531, %v2530
    %v2649 = vpack.c.b16 %v2533, %v2532
    %v2650 = vpack.c.b16 %v2535, %v2534
    %v2651 = vpack.c.b16 %v2537, %v2536
    %v2652 = vpack.c.b16 %v2539, %v2538
    %v2653 = vpack.c.b16 %v2541, %v2540
    %v2654 = vpack.c.b16 %v2543, %v2542
    %v2655 = vpack.c.b16 %v2545, %v2544
    %v2656 = vpack.c.b16 %v2547, %v2546
    %v2657 = vpack.c.b16 %v2549, %v2548
    %v2658 = vpack.c.b16 %v2551, %v2550
    %v2659 = vpack.c.b16 %v2553, %v2552
    %v2660 = vpack.c.b16 %v2555, %v2554
    %v2661 = vpack.c.b16 %v2557, %v2556
    %v2662 = vpack.c.b16 %v2559, %v2558
    %v2663 = vpack.c.b16 %v2561, %v2560
    %v2664 = vpack.c.b16 %v2563, %v2562
    %v2665 = vpack.c.b16 %v2565, %v2564
    %v2666 = vpack.c.b16 %v2567, %v2566
    %v2667 = vpack.c.b16 %v2569, %v2568
    %v2668 = vpack.c.b16 %v2571, %v2570
    %v2669 = vpack.c.b16 %v2573, %v2572
    %v2670 = vpack.c.b16 %v2575, %v2574
    %v2671 = vpack.c.b16 %v2577, %v2576
    %v2672 = vpack.c.b16 %v2579, %v2578
    %v2673 = vpack.c.b16 %v2581, %v2580
    %v2674 = vpack.c.b16 %v2583, %v2582
    %v2675 = vpack.c.b16 %v2585, %v2584
    %v2676 = vpack.c.b16 %v2587, %v2586
    %v2677 = vpack.c.b16 %v2589, %v2588
    %v2678 = vpack.c.b16 %v2591, %v2590
    %v2679 = vpack.c.b16 %v2593, %v2592
    %v2680 = vpack.c.b16 %v2595, %v2594
    %v2681 = vpack.c.b16 %v2597, %v2596
    %v2682 = vpack.c.b16 %v2599, %v2598
    %v2683 = vpack.c.b16 %v2601, %v2600
    %v2684 = vpack.c.b16 %v2603, %v2602
    %v2685 = vpack.c.b16 %v2605, %v2604
    %v2686 = vpack.c.b16 %v2607, %v2606
    %v2687 = vpack.c.b16 %v2609, %v2608
    %v2688 = vpack.c.b16 %v2611, %v2610
    %v2689 = vpack.c.b16 %v2613, %v2612
    %v2690 = vpack.c.b16 %v2615, %v2614
    %v2691 = vpack.c.b16 %v2617, %v2616
    %v2692 = vpack.c.b16 %v2619, %v2618
    %v2693 = vpack.c.b16 %v2621, %v2620
    %v2694 = vpack.c.b16 %v2623, %v2622
    %v2695 = vpack.c.b16 %v2625, %v2624
    %v2696 = vpack.c.b16 %v2627, %v2626
    %v2697 = vpack.c.b16 %v2629, %v2628
    %v2698 = vpack.c.b16 %v2631, %v2630
    %v2699 = vpack.c.b16 %v2633, %v2632
    %v2700 = vpack.c.b16 %v2635, %v2634
    %v2701 = vpack.c.b16 %v2637, %v2636
    %2766 = vmatprep.subr.bf16.mxu0 0
    %2767 = vmatpush1.bf16.msra.mxu0 %v2645
    %2768 = vmatprep.subr.bf16.mxu0 0
    %2769 = vmatpush1.bf16.msra.mxu0 %v2644
    %2770 = vmatprep.subr.bf16.mxu0 0
    %2771 = vmatpush1.bf16.msra.mxu0 %v2643
    %2772 = vmatprep.subr.bf16.mxu0 0
    %2773 = vmatpush1.bf16.msra.mxu0 %v2642
    %2774 = vmatprep.subr.bf16.mxu0 0
    %2775 = vmatpush1.bf16.msra.mxu0 %v2641
    %2776 = vmatprep.subr.bf16.mxu0 0
    %2777 = vmatpush1.bf16.msra.mxu0 %v2640
    %2778 = vmatprep.subr.bf16.mxu0 0
    %2779 = vmatpush1.bf16.msra.mxu0 %v2639
    %2780 = vmatprep.subr.bf16.mxu0 0
    %2781 = vmatpush1.bf16.msra.mxu0 %v2638
    %2782 = vmatprep.subr.bf16.mxu0 0
    %2783 = vmatpush2.bf16.msra.mxu0 %v2653
    %2784 = vmatprep.subr.bf16.mxu0 0
    %2785 = vmatpush2.bf16.msra.mxu0 %v2652
    %2786 = vmatprep.subr.bf16.mxu0 0
    %2787 = vmatpush2.bf16.msra.mxu0 %v2651
    %2788 = vmatprep.subr.bf16.mxu0 0
    %2789 = vmatpush2.bf16.msra.mxu0 %v2650
    %2790 = vmatprep.subr.bf16.mxu0 0
    %2791 = vmatpush2.bf16.msra.mxu0 %v2649
    %2792 = vmatprep.subr.bf16.mxu0 0
    %2793 = vmatpush2.bf16.msra.mxu0 %v2648
    %2794 = vmatprep.subr.bf16.mxu0 0
    %2795 = vmatpush2.bf16.msra.mxu0 %v2647
    %2796 = vmatprep.subr.bf16.mxu0 0
    %2797 = vmatpush2.bf16.msra.mxu0 %v2646
    %2798 = vmatprep.mubr.bf16.mxu0 %v2240
    %2799 = vmatmul.mubr.bf16.gmra.mxu0 %v2239
    %v2800 = vpop.f32.mrf.mxu0
    %v2801 = vadd.f32 %v2380, %v2800
    %v2802 = vpop.f32.mrf.mxu0
    %v2803 = vpop.f32.mrf.mxu0
    %v2804 = vpop.f32.mrf.mxu0
    %2805 = vdwg.mxu0
    %2806 = vmatprep.subr.bf16.mxu0 0
    %2807 = vmatpush1.bf16.msra.mxu0 %v2661
    %2808 = vmatprep.subr.bf16.mxu0 0
    %2809 = vmatpush1.bf16.msra.mxu0 %v2660
    %2810 = vmatprep.subr.bf16.mxu0 0
    %2811 = vmatpush1.bf16.msra.mxu0 %v2659
    %2812 = vmatprep.subr.bf16.mxu0 0
    %2813 = vmatpush1.bf16.msra.mxu0 %v2658
    %2814 = vmatprep.subr.bf16.mxu0 0
    %2815 = vmatpush1.bf16.msra.mxu0 %v2657
    %2816 = vmatprep.subr.bf16.mxu0 0
    %2817 = vmatpush1.bf16.msra.mxu0 %v2656
    %2818 = vmatprep.subr.bf16.mxu0 0
    %2819 = vmatpush1.bf16.msra.mxu0 %v2655
    %2820 = vmatprep.subr.bf16.mxu0 0
    %2821 = vmatpush1.bf16.msra.mxu0 %v2654
    %2822 = vmatprep.subr.bf16.mxu0 0
    %2823 = vmatpush2.bf16.msra.mxu0 %v2669
    %2824 = vmatprep.subr.bf16.mxu0 0
    %2825 = vmatpush2.bf16.msra.mxu0 %v2668
    %2826 = vmatprep.subr.bf16.mxu0 0
    %2827 = vmatpush2.bf16.msra.mxu0 %v2667
    %2828 = vmatprep.subr.bf16.mxu0 0
    %2829 = vmatpush2.bf16.msra.mxu0 %v2666
    %2830 = vmatprep.subr.bf16.mxu0 0
    %2831 = vmatpush2.bf16.msra.mxu0 %v2665
    %2832 = vmatprep.subr.bf16.mxu0 0
    %2833 = vmatpush2.bf16.msra.mxu0 %v2664
    %2834 = vmatprep.subr.bf16.mxu0 0
    %2835 = vmatpush2.bf16.msra.mxu0 %v2663
    %2836 = vmatprep.subr.bf16.mxu0 0
    %2837 = vmatpush2.bf16.msra.mxu0 %v2662
    %2838 = vmatprep.mubr.bf16.mxu0 %v2242
    %2839 = vmatmul.mubr.bf16.gmra.mxu0 %v2241
    %v2840 = vpop.f32.mrf.mxu0
    %v2841 = vadd.f32 %v2801, %v2840
    %v2842 = vpop.f32.mrf.mxu0
    %v2843 = vpop.f32.mrf.mxu0
    %v2844 = vpop.f32.mrf.mxu0
    %2845 = vdwg.mxu0
    %2846 = vmatprep.subr.bf16.mxu0 0
    %2847 = vmatpush1.bf16.msra.mxu0 %v2677
    %2848 = vmatprep.subr.bf16.mxu0 0
    %2849 = vmatpush1.bf16.msra.mxu0 %v2676
    %2850 = vmatprep.subr.bf16.mxu0 0
    %2851 = vmatpush1.bf16.msra.mxu0 %v2675
    %2852 = vmatprep.subr.bf16.mxu0 0
    %2853 = vmatpush1.bf16.msra.mxu0 %v2674
    %2854 = vmatprep.subr.bf16.mxu0 0
    %2855 = vmatpush1.bf16.msra.mxu0 %v2673
    %2856 = vmatprep.subr.bf16.mxu0 0
    %2857 = vmatpush1.bf16.msra.mxu0 %v2672
    %2858 = vmatprep.subr.bf16.mxu0 0
    %2859 = vmatpush1.bf16.msra.mxu0 %v2671
    %2860 = vmatprep.subr.bf16.mxu0 0
    %2861 = vmatpush1.bf16.msra.mxu0 %v2670
    %2862 = vmatprep.subr.bf16.mxu0 0
    %2863 = vmatpush2.bf16.msra.mxu0 %v2685
    %2864 = vmatprep.subr.bf16.mxu0 0
    %2865 = vmatpush2.bf16.msra.mxu0 %v2684
    %2866 = vmatprep.subr.bf16.mxu0 0
    %2867 = vmatpush2.bf16.msra.mxu0 %v2683
    %2868 = vmatprep.subr.bf16.mxu0 0
    %2869 = vmatpush2.bf16.msra.mxu0 %v2682
    %2870 = vmatprep.subr.bf16.mxu0 0
    %2871 = vmatpush2.bf16.msra.mxu0 %v2681
    %2872 = vmatprep.subr.bf16.mxu0 0
    %2873 = vmatpush2.bf16.msra.mxu0 %v2680
    %2874 = vmatprep.subr.bf16.mxu0 0
    %2875 = vmatpush2.bf16.msra.mxu0 %v2679
    %2876 = vmatprep.subr.bf16.mxu0 0
    %2877 = vmatpush2.bf16.msra.mxu0 %v2678
    %2878 = vmatprep.mubr.bf16.mxu0 %v2244
    %2879 = vmatmul.mubr.bf16.gmra.mxu0 %v2243
    %v2880 = vpop.f32.mrf.mxu0
    %v2881 = vadd.f32 %v2841, %v2880
    %v2882 = vpop.f32.mrf.mxu0
    %v2883 = vpop.f32.mrf.mxu0
    %v2884 = vpop.f32.mrf.mxu0
    %2885 = vdwg.mxu0
    %2886 = vmatprep.subr.bf16.mxu0 0
    %2887 = vmatpush1.bf16.msra.mxu0 %v2693
    %2888 = vmatprep.subr.bf16.mxu0 0
    %2889 = vmatpush1.bf16.msra.mxu0 %v2692
    %2890 = vmatprep.subr.bf16.mxu0 0
    %2891 = vmatpush1.bf16.msra.mxu0 %v2691
    %2892 = vmatprep.subr.bf16.mxu0 0
    %2893 = vmatpush1.bf16.msra.mxu0 %v2690
    %2894 = vmatprep.subr.bf16.mxu0 0
    %2895 = vmatpush1.bf16.msra.mxu0 %v2689
    %2896 = vmatprep.subr.bf16.mxu0 0
    %2897 = vmatpush1.bf16.msra.mxu0 %v2688
    %2898 = vmatprep.subr.bf16.mxu0 0
    %2899 = vmatpush1.bf16.msra.mxu0 %v2687
    %2900 = vmatprep.subr.bf16.mxu0 0
    %2901 = vmatpush1.bf16.msra.mxu0 %v2686
    %2902 = vmatprep.subr.bf16.mxu0 0
    %2903 = vmatpush2.bf16.msra.mxu0 %v2701
    %2904 = vmatprep.subr.bf16.mxu0 0
    %2905 = vmatpush2.bf16.msra.mxu0 %v2700
    %2906 = vmatprep.subr.bf16.mxu0 0
    %2907 = vmatpush2.bf16.msra.mxu0 %v2699
    %2908 = vmatprep.subr.bf16.mxu0 0
    %2909 = vmatpush2.bf16.msra.mxu0 %v2698
    %2910 = vmatprep.subr.bf16.mxu0 0
    %2911 = vmatpush2.bf16.msra.mxu0 %v2697
    %2912 = vmatprep.subr.bf16.mxu0 0
    %2913 = vmatpush2.bf16.msra.mxu0 %v2696
    %2914 = vmatprep.subr.bf16.mxu0 0
    %2915 = vmatpush2.bf16.msra.mxu0 %v2695
    %2916 = vmatprep.subr.bf16.mxu0 0
    %2917 = vmatpush2.bf16.msra.mxu0 %v2694
    %2918 = vmatprep.mubr.bf16.mxu0 %v2246
    %2919 = vmatmul.mubr.bf16.gmra.mxu0 %v2245
    %v2920 = vpop.f32.mrf.mxu0
    %v2921 = vadd.f32 %v2881, %v2920
    %v2922 = vpop.f32.mrf.mxu0
    %v2923 = vpop.f32.mrf.mxu0
    %v2924 = vpop.f32.mrf.mxu0
    %2925 = vdwg.mxu0
    %2926 = vst [vmem:[#allocation11] sm:$0xff] %v2921
    // Predicated region
    $region58: #{tpu_custom_call.1} parent=1 // pred_check
      _
    $region59: #{tpu_custom_call.1} parent=1 // pred_check_branch
      %2928 = sbr.rel (0) target = $region61
    $region60: #{tpu_custom_call.1} parent=1 // pred_region
      %s2930 = ssub.s32 128, 128
      %2931 = vsyncadd [#allocation4], %s2930
      %s2933 = sshll.u32 [#allocation11], 4
      %s2934 = int_to_ptr.vmem [resolvable:$true] %s2933
      %2936 = dma.vmem_to_hbm [thread:$0]  %s2934, 128, %s9, [#allocation4]
    $region61: #{tpu_custom_call.1} parent=1 // pred_fallthru
      _
    // Predicated region
    $region62: #{tpu_custom_call.1} parent=1 // pred_check
      _
    $region63: #{tpu_custom_call.1} parent=1 // pred_check_branch
      %2938 = sbr.rel (0) target = $region65
    $region64: #{tpu_custom_call.1} parent=1 // pred_region
      %2939 = dma.done [#allocation4], 128
    $region65: #{tpu_custom_call.1} parent=1 // pred_fallthru
      _
    %2940 = vsyncpa [#allocation3], 1
    %2941 = vsyncpa [#allocation6], 1
    %2942 = vsyncpa [#allocation9], 1
    %2943 = vsyncpa [#allocation4], 1

// kernel: tpu_custom_call.1
$region0: #{tpu_custom_call.1}
  #allocation0 [shape = 'u32[]', space=smem, size = 0x4, offset = 0x4, fixed_abs, tag = 'smem constant byte address 0x4 - core index']
  #allocation1 [shape = 'u32[144,128]{1,0:T(1,128)}', space=vmem, size = 0x12000, scoped, tag = 'internal scratch']
  %s0 = inlined_call_operand.vmem [shape: f32[8,4], index: 0, kind: input, shape index: {}]
  %s1 = inlined_call_operand.hbm [shape: f32[4,8], index: 1, kind: input, shape index: {}]
  %s2 = inlined_call_operand.vmem [shape: f32[1,8], index: 2, kind: input, shape index: {}]
  %s3 = inlined_call_operand.vmem [shape: bf16[8,512], index: 3, kind: input, shape index: {}]
  %s4 = inlined_call_operand.hbm [shape: f32[1,512], index: 4, kind: input, shape index: {}]
  %s5 = inlined_call_operand.hbm [shape: bf16[512,1024], index: 5, kind: input, shape index: {}]
  %s6 = inlined_call_operand.hbm [shape: f32[1,1024], index: 6, kind: input, shape index: {}]
  %s7 = inlined_call_operand.hbm [shape: bf16[1024,128], index: 7, kind: input, shape index: {}]
  %s8 = inlined_call_operand.vmem [shape: f32[1,128], index: 8, kind: input, shape index: {}]
  %s9 = inlined_call_operand.hbm [shape: f32[8,128], index: 9, kind: output, shape index: {}]
  %s10 = sld [smem:[#allocation0]]
  $region66: #{tpu_custom_call.1} parent=0
    _
  %s12 = ssub.s32 1, %s10
  %s13 = scalar_select 0, %s12, %s10
  $region1: #{tpu_custom_call.1} parent=0
    #allocation2 [shape = 'u8[2048]{0}', space=vmem, size = 0x800, scoped, tag = 'input window, operand 1, single buffered']
    #allocation3 [shape = 's32[1]{0}', space=sflag, size = 0x4, scoped, tag = 'scoped memory for tpu_custom_call.1']
    #allocation4 [shape = 's32[1]{0}', space=sflag, size = 0x4, scoped, tag = 'scoped memory for tpu_custom_call.1']
    #allocation5 [shape = 'u8[2048]{0}', space=vmem, size = 0x800, scoped, tag = 'input window, operand 4, single buffered']
    #allocation6 [shape = 's32[1]{0}', space=sflag, size = 0x4, scoped, tag = 'scoped memory for tpu_custom_call.1']
    #allocation7 [shape = 'u8[1048576]{0}', space=vmem, size = 0x100000, scoped, tag = 'input window, operand 5, single buffered']
    #allocation8 [shape = 'u8[4096]{0}', space=vmem, size = 0x1000, scoped, tag = 'input window, operand 6, single buffered']
    #allocation9 [shape = 's32[1]{0}', space=sflag, size = 0x4, scoped, tag = 'scoped memory for tpu_custom_call.1']
    #allocation10 [shape = 'u8[262144]{0}', space=vmem, size = 0x40000, scoped, tag = 'input window, operand 7, single buffered']
    #allocation11 [shape = 'u8[4096]{0}', space=vmem, size = 0x1000, scoped, tag = 'output window, operand 0, single buffered']
    %14 = vsyncpa [#allocation3], 0
    %15 = vsyncpa [#allocation6], 0
    %16 = vsyncpa [#allocation9], 0
    %17 = vsyncpa [#allocation4], 0
    // Predicated region
    $region2: #{tpu_custom_call.1} parent=1 // pred_check
      _
    $region3: #{tpu_custom_call.1} parent=1 // pred_check_branch
      %19 = sbr.rel (0) target = $region5
    $region4: #{tpu_custom_call.1} parent=1 // pred_region
      _
    $region5: #{tpu_custom_call.1} parent=1 // pred_fallthru
      _
    // Predicated region
    $region6: #{tpu_custom_call.1} parent=1 // pred_check
      _
    $region7: #{tpu_custom_call.1} parent=1 // pred_check_branch
      %21 = sbr.rel (0) target = $region9
    $region8: #{tpu_custom_call.1} parent=1 // pred_region
      %s23 = ssub.s32 64, 64
      %24 = vsyncadd [#allocation3], %s23
      %s26 = sshll.u32 [#allocation2], 4
      %s27 = int_to_ptr.vmem [resolvable:$true] %s26
      %29 = dma.hbm_to_vmem [thread:$0]  %s1, 64, %s27, [#allocation3]
    $region9: #{tpu_custom_call.1} parent=1 // pred_fallthru
      _
    // Predicated region
    $region10: #{tpu_custom_call.1} parent=1 // pred_check
      _
    $region11: #{tpu_custom_call.1} parent=1 // pred_check_branch
      %31 = sbr.rel (0) target = $region13
    $region12: #{tpu_custom_call.1} parent=1 // pred_region
      _
    $region13: #{tpu_custom_call.1} parent=1 // pred_fallthru
      _
    // Predicated region
    $region14: #{tpu_custom_call.1} parent=1 // pred_check
      _
    $region15: #{tpu_custom_call.1} parent=1 // pred_check_branch
      %33 = sbr.rel (0) target = $region17
    $region16: #{tpu_custom_call.1} parent=1 // pred_region
      _
    $region17: #{tpu_custom_call.1} parent=1 // pred_fallthru
      _
    // Predicated region
    $region18: #{tpu_custom_call.1} parent=1 // pred_check
      _
    $region19: #{tpu_custom_call.1} parent=1 // pred_check_branch
      %35 = sbr.rel (0) target = $region21
    $region20: #{tpu_custom_call.1} parent=1 // pred_region
      %s37 = ssub.s32 64, 64
      %38 = vsyncadd [#allocation6], %s37
      %s40 = sshll.u32 [#allocation5], 4
      %s41 = int_to_ptr.vmem [resolvable:$true] %s40
      %43 = dma.hbm_to_vmem [thread:$0]  %s4, 64, %s41, [#allocation6]
    $region21: #{tpu_custom_call.1} parent=1 // pred_fallthru
      _
    // Predicated region
    $region22: #{tpu_custom_call.1} parent=1 // pred_check
      _
    $region23: #{tpu_custom_call.1} parent=1 // pred_check_branch
      %45 = sbr.rel (0) target = $region25
    $region24: #{tpu_custom_call.1} parent=1 // pred_region
      %s47 = ssub.s32 32768, 32768
      %48 = vsyncadd [#allocation6], %s47
      %s49 = sshll.u32 [#allocation7], 4
      %s50 = int_to_ptr.vmem [resolvable:$true] %s49
      %55 = dma.hbm_to_vmem [thread:$0]  %s5, 32768, %s50, [#allocation6], 512, 512, 32
    $region25: #{tpu_custom_call.1} parent=1 // pred_fallthru
      _
    // Predicated region
    $region26: #{tpu_custom_call.1} parent=1 // pred_check
      _
    $region27: #{tpu_custom_call.1} parent=1 // pred_check_branch
      %57 = sbr.rel (0) target = $region29
    $region28: #{tpu_custom_call.1} parent=1 // pred_region
      %s59 = ssub.s32 128, 128
      %60 = vsyncadd [#allocation9], %s59
      %s62 = sshll.u32 [#allocation8], 4
      %s63 = int_to_ptr.vmem [resolvable:$true] %s62
      %65 = dma.hbm_to_vmem [thread:$0]  %s6, 128, %s63, [#allocation9]
    $region29: #{tpu_custom_call.1} parent=1 // pred_fallthru
      _
    // Predicated region
    $region30: #{tpu_custom_call.1} parent=1 // pred_check
      _
    $region31: #{tpu_custom_call.1} parent=1 // pred_check_branch
      %67 = sbr.rel (0) target = $region33
    $region32: #{tpu_custom_call.1} parent=1 // pred_region
      %s69 = ssub.s32 8192, 8192
      %70 = vsyncadd [#allocation9], %s69
      %s71 = sshll.u32 [#allocation10], 4
      %s72 = int_to_ptr.vmem [resolvable:$true] %s71
      %77 = dma.hbm_to_vmem [thread:$0]  %s7, 8192, %s72, [#allocation9], 64, 64, 4
    $region33: #{tpu_custom_call.1} parent=1 // pred_fallthru
      _
    // Predicated region
    $region34: #{tpu_custom_call.1} parent=1 // pred_check
      _
    $region35: #{tpu_custom_call.1} parent=1 // pred_check_branch
      %79 = sbr.rel (0) target = $region37
    $region36: #{tpu_custom_call.1} parent=1 // pred_region
      _
    $region37: #{tpu_custom_call.1} parent=1 // pred_fallthru
      _
    // Predicated region
    $region38: #{tpu_custom_call.1} parent=1 // pred_check
      _
    $region39: #{tpu_custom_call.1} parent=1 // pred_check_branch
      %81 = sbr.rel (0) target = $region41
    $region40: #{tpu_custom_call.1} parent=1 // pred_region
      %82 = dma.done [#allocation3], 64
    $region41: #{tpu_custom_call.1} parent=1 // pred_fallthru
      _
    // Predicated region
    $region42: #{tpu_custom_call.1} parent=1 // pred_check
      _
    $region43: #{tpu_custom_call.1} parent=1 // pred_check_branch
      %84 = sbr.rel (0) target = $region45
    $region44: #{tpu_custom_call.1} parent=1 // pred_region
      %85 = dma.done [#allocation6], 64
    $region45: #{tpu_custom_call.1} parent=1 // pred_fallthru
      _
    // Predicated region
    $region46: #{tpu_custom_call.1} parent=1 // pred_check
      _
    $region47: #{tpu_custom_call.1} parent=1 // pred_check_branch
      %87 = sbr.rel (0) target = $region49
    $region48: #{tpu_custom_call.1} parent=1 // pred_region
      %88 = dma.done [#allocation6], 32768
    $region49: #{tpu_custom_call.1} parent=1 // pred_fallthru
      _
    // Predicated region
    $region50: #{tpu_custom_call.1} parent=1 // pred_check
      _
    $region51: #{tpu_custom_call.1} parent=1 // pred_check_branch
      %90 = sbr.rel (0) target = $region53
    $region52: #{tpu_custom_call.1} parent=1 // pred_region
      %91 = dma.done [#allocation9], 128
    $region53: #{tpu_custom_call.1} parent=1 // pred_fallthru
      _
    // Predicated region
    $region54: #{tpu_custom_call.1} parent=1 // pred_check
      _
    $region55: #{tpu_custom_call.1} parent=1 // pred_check_branch
      %93 = sbr.rel (0) target = $region57
    $region56: #{tpu_custom_call.1} parent=1 // pred_region
      %94 = dma.done [#allocation9], 8192
    $region57: #{tpu_custom_call.1} parent=1 // pred_fallthru
      _
    %v96 = vld [vmem:[%s0] sm:$0xff]
    %v97 = vld [vmem:[#allocation2] sm:$0xf]
    %v98 = vld [vmem:[%s2] sm:$0x1]
    %v100 = vlaneseq
    %v101 = vshrl.u32 %v100, 7
    %v102 = vsub.s32 0, %v101
    %v103 = vrot.slane %v98, %v102
    %vm105 = vcmask 31744
    %v107 = vsel %vm105, %v96, 0
    %vm109 = vcmask 1043456
    %v111 = vsel %vm109, %v97, 0
    %113 = vmatprep.subr.mxu0 0.0
    %114 = vmatpush1.msra.mxu0 0.0
    %115 = vmatprep.subr.mxu0 0.0
    %116 = vmatpush1.msra.mxu0 0.0
    %117 = vmatprep.subr.mxu0 0.0
    %118 = vmatpush1.msra.mxu0 0.0
    %119 = vmatprep.subr.mxu0 0.0
    %120 = vmatpush1.msra.mxu0 0.0
    %121 = vmatprep.subr.mxu0 0.0
    %122 = vmatpush1.msra.mxu0 0.0
    %123 = vmatprep.subr.mxu0 0.0
    %124 = vmatpush1.msra.mxu0 0.0
    %125 = vmatprep.subr.mxu0 0.0
    %126 = vmatpush1.msra.mxu0 0.0
    %127 = vmatprep.subr.mxu0 0.0
    %128 = vmatpush1.msra.mxu0 0.0
    %129 = vmatprep.subr.mxu0 0.0
    %130 = vmatpush1.msra.mxu0 0.0
    %131 = vmatprep.subr.mxu0 0.0
    %132 = vmatpush1.msra.mxu0 0.0
    %133 = vmatprep.subr.mxu0 0.0
    %134 = vmatpush1.msra.mxu0 0.0
    %135 = vmatprep.subr.mxu0 0.0
    %136 = vmatpush1.msra.mxu0 0.0
    %137 = vmatprep.subr.mxu0 0.0
    %138 = vmatpush1.msra.mxu0 0.0
    %139 = vmatprep.subr.mxu0 0.0
    %140 = vmatpush1.msra.mxu0 0.0
    %141 = vmatprep.subr.mxu0 0.0
    %142 = vmatpush1.msra.mxu0 0.0
    %143 = vmatprep.subr.mxu0 0.0
    %144 = vmatpush1.msra.mxu0 %v111
    %145 = vmatprep.subr.mxu0 0.0
    %146 = vmatpush2.msra.mxu0 0.0
    %147 = vmatprep.subr.mxu0 0.0
    %148 = vmatpush2.msra.mxu0 0.0
    %149 = vmatprep.subr.mxu0 0.0
    %150 = vmatpush2.msra.mxu0 0.0
    %151 = vmatprep.subr.mxu0 0.0
    %152 = vmatpush2.msra.mxu0 0.0
    %153 = vmatprep.subr.mxu0 0.0
    %154 = vmatpush2.msra.mxu0 0.0
    %155 = vmatprep.subr.mxu0 0.0
    %156 = vmatpush2.msra.mxu0 0.0
    %157 = vmatprep.subr.mxu0 0.0
    %158 = vmatpush2.msra.mxu0 0.0
    %159 = vmatprep.subr.mxu0 0.0
    %160 = vmatpush2.msra.mxu0 0.0
    %161 = vmatprep.subr.mxu0 0.0
    %162 = vmatpush2.msra.mxu0 0.0
    %163 = vmatprep.subr.mxu0 0.0
    %164 = vmatpush2.msra.mxu0 0.0
    %165 = vmatprep.subr.mxu0 0.0
    %166 = vmatpush2.msra.mxu0 0.0
    %167 = vmatprep.subr.mxu0 0.0
    %168 = vmatpush2.msra.mxu0 0.0
    %169 = vmatprep.subr.mxu0 0.0
    %170 = vmatpush2.msra.mxu0 0.0
    %171 = vmatprep.subr.mxu0 0.0
    %172 = vmatpush2.msra.mxu0 0.0
    %173 = vmatprep.subr.mxu0 0.0
    %174 = vmatpush2.msra.mxu0 0.0
    %175 = vmatprep.subr.mxu0 0.0
    %176 = vmatpush2.msra.mxu0 0.0
    %177 = vmatprep.mubr.f32.mxu0 0.0
    %178 = vmatmul.mubr.f32.gmra.mxu0 %v107
    %v179 = vpop.f32.mrf.mxu0
    %v180 = vadd.f32 %v103, %v179
    %v181 = vpop.f32.mrf.mxu0
    %182 = vdwg.mxu0
    %v183 = vmax.f32 %v180, 0.0
    %v184 = vpack.c.bf16 %v183, %v183
    %v185 = vld [vmem:[%s3] sm:$0xff]
    %v186 = vld [vmem:[%s3 + $0x8] sm:$0xff]
    %v187 = vld [vmem:[#allocation5] sm:$0xf]
    %v189 = vlaneseq
    %v190 = vshrl.u32 %v189, 7
    %v191 = vsub.s32 0, %v190
    %v192 = vrot.slane %v187, %v191
    %v193 = vlaneseq
    %v194 = vshrl.u32 %v193, 7
    %v195 = vsub.s32 1, %v194
    %v196 = vrot.slane %v187, %v195
    %v197 = vlaneseq
    %v198 = vshrl.u32 %v197, 7
    %v199 = vsub.s32 2, %v198
    %v200 = vrot.slane %v187, %v199
    %v201 = vlaneseq
    %v202 = vshrl.u32 %v201, 7
    %v203 = vsub.s32 3, %v202
    %v204 = vrot.slane %v187, %v203
    %v211 = vunpack.c.l.b16 %v185
    %v212 = vunpack.c.h.b16 %v185
    %v213 = vunpack.c.l.b16 %v186
    %v214 = vunpack.c.h.b16 %v186
    %v215 = vpack.c.b16 %v211, %v211
    %v216 = vpack.c.b16 %v212, %v212
    %v217 = vpack.c.b16 %v213, %v213
    %v218 = vpack.c.b16 %v214, %v214
    %vm219 = vcmask 64512
    %v221 = vsel %vm219, %v184, 0
    %v224 = vsel %vm109, %v215, 0
    %v227 = vsel %vm109, %v216, 0
    %v230 = vsel %vm109, %v217, 0
    %v233 = vsel %vm109, %v218, 0
    %235 = vmatprep.subr.bf16.mxu0 0
    %236 = vmatpush1.bf16.msra.mxu0 0
    %237 = vmatprep.subr.bf16.mxu0 0
    %238 = vmatpush1.bf16.msra.mxu0 0
    %239 = vmatprep.subr.bf16.mxu0 0
    %240 = vmatpush1.bf16.msra.mxu0 0
    %241 = vmatprep.subr.bf16.mxu0 0
    %242 = vmatpush1.bf16.msra.mxu0 0
    %243 = vmatprep.subr.bf16.mxu0 0
    %244 = vmatpush1.bf16.msra.mxu0 0
    %245 = vmatprep.subr.bf16.mxu0 0
    %246 = vmatpush1.bf16.msra.mxu0 0
    %247 = vmatprep.subr.bf16.mxu0 0
    %248 = vmatpush1.bf16.msra.mxu0 0
    %249 = vmatprep.subr.bf16.mxu0 %v227
    %250 = vmatpush1.bf16.msra.mxu0 %v224
    %251 = vmatprep.subr.bf16.mxu0 0
    %252 = vmatpush2.bf16.msra.mxu0 0
    %253 = vmatprep.subr.bf16.mxu0 0
    %254 = vmatpush2.bf16.msra.mxu0 0
    %255 = vmatprep.subr.bf16.mxu0 0
    %256 = vmatpush2.bf16.msra.mxu0 0
    %257 = vmatprep.subr.bf16.mxu0 0
    %258 = vmatpush2.bf16.msra.mxu0 0
    %259 = vmatprep.subr.bf16.mxu0 0
    %260 = vmatpush2.bf16.msra.mxu0 0
    %261 = vmatprep.subr.bf16.mxu0 0
    %262 = vmatpush2.bf16.msra.mxu0 0
    %263 = vmatprep.subr.bf16.mxu0 0
    %264 = vmatpush2.bf16.msra.mxu0 0
    %265 = vmatprep.subr.bf16.mxu0 0
    %266 = vmatpush2.bf16.msra.mxu0 0
    %267 = vmatprep.mubr.bf16.mxu0 0
    %268 = vmatmul.mubr.bf16.gmra.mxu0 %v221
    %v269 = vpop.f32.mrf.mxu0
    %v270 = vadd.f32 %v192, %v269
    %v271 = vpop.f32.mrf.mxu0
    %v272 = vadd.f32 %v196, %v271
    %v273 = vpop.f32.mrf.mxu0
    %v274 = vpop.f32.mrf.mxu0
    %275 = vdwg.mxu0
    %276 = vmatprep.subr.bf16.mxu0 0
    %277 = vmatpush1.bf16.msra.mxu0 0
    %278 = vmatprep.subr.bf16.mxu0 0
    %279 = vmatpush1.bf16.msra.mxu0 0
    %280 = vmatprep.subr.bf16.mxu0 0
    %281 = vmatpush1.bf16.msra.mxu0 0
    %282 = vmatprep.subr.bf16.mxu0 0
    %283 = vmatpush1.bf16.msra.mxu0 0
    %284 = vmatprep.subr.bf16.mxu0 0
    %285 = vmatpush1.bf16.msra.mxu0 0
    %286 = vmatprep.subr.bf16.mxu0 0
    %287 = vmatpush1.bf16.msra.mxu0 0
    %288 = vmatprep.subr.bf16.mxu0 0
    %289 = vmatpush1.bf16.msra.mxu0 0
    %290 = vmatprep.subr.bf16.mxu0 %v233
    %291 = vmatpush1.bf16.msra.mxu0 %v230
    %292 = vmatprep.subr.bf16.mxu0 0
    %293 = vmatpush2.bf16.msra.mxu0 0
    %294 = vmatprep.subr.bf16.mxu0 0
    %295 = vmatpush2.bf16.msra.mxu0 0
    %296 = vmatprep.subr.bf16.mxu0 0
    %297 = vmatpush2.bf16.msra.mxu0 0
    %298 = vmatprep.subr.bf16.mxu0 0
    %299 = vmatpush2.bf16.msra.mxu0 0
    %300 = vmatprep.subr.bf16.mxu0 0
    %301 = vmatpush2.bf16.msra.mxu0 0
    %302 = vmatprep.subr.bf16.mxu0 0
    %303 = vmatpush2.bf16.msra.mxu0 0
    %304 = vmatprep.subr.bf16.mxu0 0
    %305 = vmatpush2.bf16.msra.mxu0 0
    %306 = vmatprep.subr.bf16.mxu0 0
    %307 = vmatpush2.bf16.msra.mxu0 0
    %308 = vmatprep.mubr.bf16.mxu0 0
    %309 = vmatmul.mubr.bf16.gmra.mxu0 %v221
    %v310 = vpop.f32.mrf.mxu0
    %v311 = vadd.f32 %v200, %v310
    %v312 = vpop.f32.mrf.mxu0
    %v313 = vadd.f32 %v204, %v312
    %v314 = vpop.f32.mrf.mxu0
    %v315 = vpop.f32.mrf.mxu0
    %316 = vdwg.mxu0
    %v317 = vmax.f32 %v270, 0.0
    %v318 = vmax.f32 %v272, 0.0
    %v319 = vmax.f32 %v311, 0.0
    %v320 = vmax.f32 %v313, 0.0
    %v321 = vpack.c.bf16 %v317, %v317
    %v322 = vpack.c.bf16 %v318, %v318
    %v323 = vpack.c.bf16 %v319, %v319
    %v324 = vpack.c.bf16 %v320, %v320
    %v325 = vld [vmem:[#allocation7] sm:$0xff]
    %v326 = vld [vmem:[#allocation7 + $0x8] sm:$0xff]
    %v327 = vld [vmem:[#allocation7 + $0x10] sm:$0xff]
    %v328 = vld [vmem:[#allocation7 + $0x18] sm:$0xff]
    %v329 = vld [vmem:[#allocation7 + $0x20] sm:$0xff]
    %v330 = vld [vmem:[#allocation7 + $0x28] sm:$0xff]
    %v331 = vld [vmem:[#allocation7 + $0x30] sm:$0xff]
    %v332 = vld [vmem:[#allocation7 + $0x38] sm:$0xff]
    %v333 = vld [vmem:[#allocation7 + $0x40] sm:$0xff]
    %v334 = vld [vmem:[#allocation7 + $0x48] sm:$0xff]
    %v335 = vld [vmem:[#allocation7 + $0x50] sm:$0xff]
    %v336 = vld [vmem:[#allocation7 + $0x58] sm:$0xff]
    %v337 = vld [vmem:[#allocation7 + $0x60] sm:$0xff]
    %v338 = vld [vmem:[#allocation7 + $0x68] sm:$0xff]
    %v339 = vld [vmem:[#allocation7 + $0x70] sm:$0xff]
    %v340 = vld [vmem:[#allocation7 + $0x78] sm:$0xff]
    %v341 = vld [vmem:[#allocation7 + $0x80] sm:$0xff]
    %v342 = vld [vmem:[#allocation7 + $0x88] sm:$0xff]
    %v343 = vld [vmem:[#allocation7 + $0x90] sm:$0xff]
    %v344 = vld [vmem:[#allocation7 + $0x98] sm:$0xff]
    %v345 = vld [vmem:[#allocation7 + $0xa0] sm:$0xff]
    %v346 = vld [vmem:[#allocation7 + $0xa8] sm:$0xff]
    %v347 = vld [vmem:[#allocation7 + $0xb0] sm:$0xff]
    %v348 = vld [vmem:[#allocation7 + $0xb8] sm:$0xff]
    %v349 = vld [vmem:[#allocation7 + $0xc0] sm:$0xff]
    %v350 = vld [vmem:[#allocation7 + $0xc8] sm:$0xff]
    %v351 = vld [vmem:[#allocation7 + $0xd0] sm:$0xff]
    %v352 = vld [vmem:[#allocation7 + $0xd8] sm:$0xff]
    %v353 = vld [vmem:[#allocation7 + $0xe0] sm:$0xff]
    %v354 = vld [vmem:[#allocation7 + $0xe8] sm:$0xff]
    %v355 = vld [vmem:[#allocation7 + $0xf0] sm:$0xff]
    %v356 = vld [vmem:[#allocation7 + $0xf8] sm:$0xff]
    %v357 = vld [vmem:[#allocation7 + $0x100] sm:$0xff]
    %v358 = vld [vmem:[#allocation7 + $0x108] sm:$0xff]
    %v359 = vld [vmem:[#allocation7 + $0x110] sm:$0xff]
    %v360 = vld [vmem:[#allocation7 + $0x118] sm:$0xff]
    %v361 = vld [vmem:[#allocation7 + $0x120] sm:$0xff]
    %v362 = vld [vmem:[#allocation7 + $0x128] sm:$0xff]
    %v363 = vld [vmem:[#allocation7 + $0x130] sm:$0xff]
    %v364 = vld [vmem:[#allocation7 + $0x138] sm:$0xff]
    %v365 = vld [vmem:[#allocation7 + $0x140] sm:$0xff]
    %v366 = vld [vmem:[#allocation7 + $0x148] sm:$0xff]
    %v367 = vld [vmem:[#allocation7 + $0x150] sm:$0xff]
    %v368 = vld [vmem:[#allocation7 + $0x158] sm:$0xff]
    %v369 = vld [vmem:[#allocation7 + $0x160] sm:$0xff]
    %v370 = vld [vmem:[#allocation7 + $0x168] sm:$0xff]
    %v371 = vld [vmem:[#allocation7 + $0x170] sm:$0xff]
    %v372 = vld [vmem:[#allocation7 + $0x178] sm:$0xff]
    %v373 = vld [vmem:[#allocation7 + $0x180] sm:$0xff]
    %v374 = vld [vmem:[#allocation7 + $0x188] sm:$0xff]
    %v375 = vld [vmem:[#allocation7 + $0x190] sm:$0xff]
    %v376 = vld [vmem:[#allocation7 + $0x198] sm:$0xff]
    %v377 = vld [vmem:[#allocation7 + $0x1a0] sm:$0xff]
    %v378 = vld [vmem:[#allocation7 + $0x1a8] sm:$0xff]
    %v379 = vld [vmem:[#allocation7 + $0x1b0] sm:$0xff]
    %v380 = vld [vmem:[#allocation7 + $0x1b8] sm:$0xff]
    %v381 = vld [vmem:[#allocation7 + $0x1c0] sm:$0xff]
    %v382 = vld [vmem:[#allocation7 + $0x1c8] sm:$0xff]
    %v383 = vld [vmem:[#allocation7 + $0x1d0] sm:$0xff]
    %v384 = vld [vmem:[#allocation7 + $0x1d8] sm:$0xff]
    %v385 = vld [vmem:[#allocation7 + $0x1e0] sm:$0xff]
    %v386 = vld [vmem:[#allocation7 + $0x1e8] sm:$0xff]
    %v387 = vld [vmem:[#allocation7 + $0x1f0] sm:$0xff]
    %v388 = vld [vmem:[#allocation7 + $0x1f8] sm:$0xff]
    %v389 = vld [vmem:[#allocation7 + $0x200] sm:$0xff]
    %v390 = vld [vmem:[#allocation7 + $0x208] sm:$0xff]
    %v391 = vld [vmem:[#allocation7 + $0x210] sm:$0xff]
    %v392 = vld [vmem:[#allocation7 + $0x218] sm:$0xff]
    %v393 = vld [vmem:[#allocation7 + $0x220] sm:$0xff]
    %v394 = vld [vmem:[#allocation7 + $0x228] sm:$0xff]
    %v395 = vld [vmem:[#allocation7 + $0x230] sm:$0xff]
    %v396 = vld [vmem:[#allocation7 + $0x238] sm:$0xff]
    %v397 = vld [vmem:[#allocation7 + $0x240] sm:$0xff]
    %v398 = vld [vmem:[#allocation7 + $0x248] sm:$0xff]
    %v399 = vld [vmem:[#allocation7 + $0x250] sm:$0xff]
    %v400 = vld [vmem:[#allocation7 + $0x258] sm:$0xff]
    %v401 = vld [vmem:[#allocation7 + $0x260] sm:$0xff]
    %v402 = vld [vmem:[#allocation7 + $0x268] sm:$0xff]
    %v403 = vld [vmem:[#allocation7 + $0x270] sm:$0xff]
    %v404 = vld [vmem:[#allocation7 + $0x278] sm:$0xff]
    %v405 = vld [vmem:[#allocation7 + $0x280] sm:$0xff]
    %v406 = vld [vmem:[#allocation7 + $0x288] sm:$0xff]
    %v407 = vld [vmem:[#allocation7 + $0x290] sm:$0xff]
    %v408 = vld [vmem:[#allocation7 + $0x298] sm:$0xff]
    %v409 = vld [vmem:[#allocation7 + $0x2a0] sm:$0xff]
    %v410 = vld [vmem:[#allocation7 + $0x2a8] sm:$0xff]
    %v411 = vld [vmem:[#allocation7 + $0x2b0] sm:$0xff]
    %v412 = vld [vmem:[#allocation7 + $0x2b8] sm:$0xff]
    %v413 = vld [vmem:[#allocation7 + $0x2c0] sm:$0xff]
    %v414 = vld [vmem:[#allocation7 + $0x2c8] sm:$0xff]
    %v415 = vld [vmem:[#allocation7 + $0x2d0] sm:$0xff]
    %v416 = vld [vmem:[#allocation7 + $0x2d8] sm:$0xff]
    %v417 = vld [vmem:[#allocation7 + $0x2e0] sm:$0xff]
    %v418 = vld [vmem:[#allocation7 + $0x2e8] sm:$0xff]
    %v419 = vld [vmem:[#allocation7 + $0x2f0] sm:$0xff]
    %v420 = vld [vmem:[#allocation7 + $0x2f8] sm:$0xff]
    %v421 = vld [vmem:[#allocation7 + $0x300] sm:$0xff]
    %v422 = vld [vmem:[#allocation7 + $0x308] sm:$0xff]
    %v423 = vld [vmem:[#allocation7 + $0x310] sm:$0xff]
    %v424 = vld [vmem:[#allocation7 + $0x318] sm:$0xff]
    %v425 = vld [vmem:[#allocation7 + $0x320] sm:$0xff]
    %v426 = vld [vmem:[#allocation7 + $0x328] sm:$0xff]
    %v427 = vld [vmem:[#allocation7 + $0x330] sm:$0xff]
    %v428 = vld [vmem:[#allocation7 + $0x338] sm:$0xff]
    %v429 = vld [vmem:[#allocation7 + $0x340] sm:$0xff]
    %v430 = vld [vmem:[#allocation7 + $0x348] sm:$0xff]
    %v431 = vld [vmem:[#allocation7 + $0x350] sm:$0xff]
    %v432 = vld [vmem:[#allocation7 + $0x358] sm:$0xff]
    %v433 = vld [vmem:[#allocation7 + $0x360] sm:$0xff]
    %v434 = vld [vmem:[#allocation7 + $0x368] sm:$0xff]
    %v435 = vld [vmem:[#allocation7 + $0x370] sm:$0xff]
    %v436 = vld [vmem:[#allocation7 + $0x378] sm:$0xff]
    %v437 = vld [vmem:[#allocation7 + $0x380] sm:$0xff]
    %v438 = vld [vmem:[#allocation7 + $0x388] sm:$0xff]
    %v439 = vld [vmem:[#allocation7 + $0x390] sm:$0xff]
    %v440 = vld [vmem:[#allocation7 + $0x398] sm:$0xff]
    %v441 = vld [vmem:[#allocation7 + $0x3a0] sm:$0xff]
    %v442 = vld [vmem:[#allocation7 + $0x3a8] sm:$0xff]
    %v443 = vld [vmem:[#allocation7 + $0x3b0] sm:$0xff]
    %v444 = vld [vmem:[#allocation7 + $0x3b8] sm:$0xff]
    %v445 = vld [vmem:[#allocation7 + $0x3c0] sm:$0xff]
    %v446 = vld [vmem:[#allocation7 + $0x3c8] sm:$0xff]
    %v447 = vld [vmem:[#allocation7 + $0x3d0] sm:$0xff]
    %v448 = vld [vmem:[#allocation7 + $0x3d8] sm:$0xff]
    %v449 = vld [vmem:[#allocation7 + $0x3e0] sm:$0xff]
    %v450 = vld [vmem:[#allocation7 + $0x3e8] sm:$0xff]
    %v451 = vld [vmem:[#allocation7 + $0x3f0] sm:$0xff]
    %v452 = vld [vmem:[#allocation7 + $0x3f8] sm:$0xff]
    %v453 = vld [vmem:[#allocation7 + $0x400] sm:$0xff]
    %v454 = vld [vmem:[#allocation7 + $0x408] sm:$0xff]
    %v455 = vld [vmem:[#allocation7 + $0x410] sm:$0xff]
    %v456 = vld [vmem:[#allocation7 + $0x418] sm:$0xff]
    %v457 = vld [vmem:[#allocation7 + $0x420] sm:$0xff]
    %v458 = vld [vmem:[#allocation7 + $0x428] sm:$0xff]
    %v459 = vld [vmem:[#allocation7 + $0x430] sm:$0xff]
    %v460 = vld [vmem:[#allocation7 + $0x438] sm:$0xff]
    %v461 = vld [vmem:[#allocation7 + $0x440] sm:$0xff]
    %v462 = vld [vmem:[#allocation7 + $0x448] sm:$0xff]
    %v463 = vld [vmem:[#allocation7 + $0x450] sm:$0xff]
    %v464 = vld [vmem:[#allocation7 + $0x458] sm:$0xff]
    %v465 = vld [vmem:[#allocation7 + $0x460] sm:$0xff]
    %v466 = vld [vmem:[#allocation7 + $0x468] sm:$0xff]
    %v467 = vld [vmem:[#allocation7 + $0x470] sm:$0xff]
    %v468 = vld [vmem:[#allocation7 + $0x478] sm:$0xff]
    %v469 = vld [vmem:[#allocation7 + $0x480] sm:$0xff]
    %v470 = vld [vmem:[#allocation7 + $0x488] sm:$0xff]
    %v471 = vld [vmem:[#allocation7 + $0x490] sm:$0xff]
    %v472 = vld [vmem:[#allocation7 + $0x498] sm:$0xff]
    %v473 = vld [vmem:[#allocation7 + $0x4a0] sm:$0xff]
    %v474 = vld [vmem:[#allocation7 + $0x4a8] sm:$0xff]
    %v475 = vld [vmem:[#allocation7 + $0x4b0] sm:$0xff]
    %v476 = vld [vmem:[#allocation7 + $0x4b8] sm:$0xff]
    %v477 = vld [vmem:[#allocation7 + $0x4c0] sm:$0xff]
    %v478 = vld [vmem:[#allocation7 + $0x4c8] sm:$0xff]
    %v479 = vld [vmem:[#allocation7 + $0x4d0] sm:$0xff]
    %v480 = vld [vmem:[#allocation7 + $0x4d8] sm:$0xff]
    %v481 = vld [vmem:[#allocation7 + $0x4e0] sm:$0xff]
    %v482 = vld [vmem:[#allocation7 + $0x4e8] sm:$0xff]
    %v483 = vld [vmem:[#allocation7 + $0x4f0] sm:$0xff]
    %v484 = vld [vmem:[#allocation7 + $0x4f8] sm:$0xff]
    %v485 = vld [vmem:[#allocation7 + $0x500] sm:$0xff]
    %v486 = vld [vmem:[#allocation7 + $0x508] sm:$0xff]
    %v487 = vld [vmem:[#allocation7 + $0x510] sm:$0xff]
    %v488 = vld [vmem:[#allocation7 + $0x518] sm:$0xff]
    %v489 = vld [vmem:[#allocation7 + $0x520] sm:$0xff]
    %v490 = vld [vmem:[#allocation7 + $0x528] sm:$0xff]
    %v491 = vld [vmem:[#allocation7 + $0x530] sm:$0xff]
    %v492 = vld [vmem:[#allocation7 + $0x538] sm:$0xff]
    %v493 = vld [vmem:[#allocation7 + $0x540] sm:$0xff]
    %v494 = vld [vmem:[#allocation7 + $0x548] sm:$0xff]
    %v495 = vld [vmem:[#allocation7 + $0x550] sm:$0xff]
    %v496 = vld [vmem:[#allocation7 + $0x558] sm:$0xff]
    %v497 = vld [vmem:[#allocation7 + $0x560] sm:$0xff]
    %v498 = vld [vmem:[#allocation7 + $0x568] sm:$0xff]
    %v499 = vld [vmem:[#allocation7 + $0x570] sm:$0xff]
    %v500 = vld [vmem:[#allocation7 + $0x578] sm:$0xff]
    %v501 = vld [vmem:[#allocation7 + $0x580] sm:$0xff]
    %v502 = vld [vmem:[#allocation7 + $0x588] sm:$0xff]
    %v503 = vld [vmem:[#allocation7 + $0x590] sm:$0xff]
    %v504 = vld [vmem:[#allocation7 + $0x598] sm:$0xff]
    %v505 = vld [vmem:[#allocation7 + $0x5a0] sm:$0xff]
    %v506 = vld [vmem:[#allocation7 + $0x5a8] sm:$0xff]
    %v507 = vld [vmem:[#allocation7 + $0x5b0] sm:$0xff]
    %v508 = vld [vmem:[#allocation7 + $0x5b8] sm:$0xff]
    %v509 = vld [vmem:[#allocation7 + $0x5c0] sm:$0xff]
    %v510 = vld [vmem:[#allocation7 + $0x5c8] sm:$0xff]
    %v511 = vld [vmem:[#allocation7 + $0x5d0] sm:$0xff]
    %v512 = vld [vmem:[#allocation7 + $0x5d8] sm:$0xff]
    %v513 = vld [vmem:[#allocation7 + $0x5e0] sm:$0xff]
    %v514 = vld [vmem:[#allocation7 + $0x5e8] sm:$0xff]
    %v515 = vld [vmem:[#allocation7 + $0x5f0] sm:$0xff]
    %v516 = vld [vmem:[#allocation7 + $0x5f8] sm:$0xff]
    %v517 = vld [vmem:[#allocation7 + $0x600] sm:$0xff]
    %v518 = vld [vmem:[#allocation7 + $0x608] sm:$0xff]
    %v519 = vld [vmem:[#allocation7 + $0x610] sm:$0xff]
    %v520 = vld [vmem:[#allocation7 + $0x618] sm:$0xff]
    %v521 = vld [vmem:[#allocation7 + $0x620] sm:$0xff]
    %v522 = vld [vmem:[#allocation7 + $0x628] sm:$0xff]
    %v523 = vld [vmem:[#allocation7 + $0x630] sm:$0xff]
    %v524 = vld [vmem:[#allocation7 + $0x638] sm:$0xff]
    %v525 = vld [vmem:[#allocation7 + $0x640] sm:$0xff]
    %v526 = vld [vmem:[#allocation7 + $0x648] sm:$0xff]
    %v527 = vld [vmem:[#allocation7 + $0x650] sm:$0xff]
    %v528 = vld [vmem:[#allocation7 + $0x658] sm:$0xff]
    %v529 = vld [vmem:[#allocation7 + $0x660] sm:$0xff]
    %v530 = vld [vmem:[#allocation7 + $0x668] sm:$0xff]
    %v531 = vld [vmem:[#allocation7 + $0x670] sm:$0xff]
    %v532 = vld [vmem:[#allocation7 + $0x678] sm:$0xff]
    %v533 = vld [vmem:[#allocation7 + $0x680] sm:$0xff]
    %v534 = vld [vmem:[#allocation7 + $0x688] sm:$0xff]
    %v535 = vld [vmem:[#allocation7 + $0x690] sm:$0xff]
    %v536 = vld [vmem:[#allocation7 + $0x698] sm:$0xff]
    %v537 = vld [vmem:[#allocation7 + $0x6a0] sm:$0xff]
    %v538 = vld [vmem:[#allocation7 + $0x6a8] sm:$0xff]
    %v539 = vld [vmem:[#allocation7 + $0x6b0] sm:$0xff]
    %v540 = vld [vmem:[#allocation7 + $0x6b8] sm:$0xff]
    %v541 = vld [vmem:[#allocation7 + $0x6c0] sm:$0xff]
    %v542 = vld [vmem:[#allocation7 + $0x6c8] sm:$0xff]
    %v543 = vld [vmem:[#allocation7 + $0x6d0] sm:$0xff]
    %v544 = vld [vmem:[#allocation7 + $0x6d8] sm:$0xff]
    %v545 = vld [vmem:[#allocation7 + $0x6e0] sm:$0xff]
    %v546 = vld [vmem:[#allocation7 + $0x6e8] sm:$0xff]
    %v547 = vld [vmem:[#allocation7 + $0x6f0] sm:$0xff]
    %v548 = vld [vmem:[#allocation7 + $0x6f8] sm:$0xff]
    %v549 = vld [vmem:[#allocation7 + $0x700] sm:$0xff]
    %v550 = vld [vmem:[#allocation7 + $0x708] sm:$0xff]
    %v551 = vld [vmem:[#allocation7 + $0x710] sm:$0xff]
    %v552 = vld [vmem:[#allocation7 + $0x718] sm:$0xff]
    %v553 = vld [vmem:[#allocation7 + $0x720] sm:$0xff]
    %v554 = vld [vmem:[#allocation7 + $0x728] sm:$0xff]
    %v555 = vld [vmem:[#allocation7 + $0x730] sm:$0xff]
    %v556 = vld [vmem:[#allocation7 + $0x738] sm:$0xff]
    %v557 = vld [vmem:[#allocation7 + $0x740] sm:$0xff]
    %v558 = vld [vmem:[#allocation7 + $0x748] sm:$0xff]
    %v559 = vld [vmem:[#allocation7 + $0x750] sm:$0xff]
    %v560 = vld [vmem:[#allocation7 + $0x758] sm:$0xff]
    %v561 = vld [vmem:[#allocation7 + $0x760] sm:$0xff]
    %v562 = vld [vmem:[#allocation7 + $0x768] sm:$0xff]
    %v563 = vld [vmem:[#allocation7 + $0x770] sm:$0xff]
    %v564 = vld [vmem:[#allocation7 + $0x778] sm:$0xff]
    %v565 = vld [vmem:[#allocation7 + $0x780] sm:$0xff]
    %v566 = vld [vmem:[#allocation7 + $0x788] sm:$0xff]
    %v567 = vld [vmem:[#allocation7 + $0x790] sm:$0xff]
    %v568 = vld [vmem:[#allocation7 + $0x798] sm:$0xff]
    %v569 = vld [vmem:[#allocation7 + $0x7a0] sm:$0xff]
    %v570 = vld [vmem:[#allocation7 + $0x7a8] sm:$0xff]
    %v571 = vld [vmem:[#allocation7 + $0x7b0] sm:$0xff]
    %v572 = vld [vmem:[#allocation7 + $0x7b8] sm:$0xff]
    %v573 = vld [vmem:[#allocation7 + $0x7c0] sm:$0xff]
    %v574 = vld [vmem:[#allocation7 + $0x7c8] sm:$0xff]
    %v575 = vld [vmem:[#allocation7 + $0x7d0] sm:$0xff]
    %v576 = vld [vmem:[#allocation7 + $0x7d8] sm:$0xff]
    %v577 = vld [vmem:[#allocation7 + $0x7e0] sm:$0xff]
    %v578 = vld [vmem:[#allocation7 + $0x7e8] sm:$0xff]
    %v579 = vld [vmem:[#allocation7 + $0x7f0] sm:$0xff]
    %v580 = vld [vmem:[#allocation7 + $0x7f8] sm:$0xff]
    %v581 = vld [vmem:[#allocation8] sm:$0xff]
    %v583 = vlaneseq
    %v584 = vshrl.u32 %v583, 7
    %v585 = vsub.s32 0, %v584
    %v586 = vrot.slane %v581, %v585
    %v587 = vlaneseq
    %v588 = vshrl.u32 %v587, 7
    %v589 = vsub.s32 1, %v588
    %v590 = vrot.slane %v581, %v589
    %v591 = vlaneseq
    %v592 = vshrl.u32 %v591, 7
    %v593 = vsub.s32 2, %v592
    %v594 = vrot.slane %v581, %v593
    %v595 = vlaneseq
    %v596 = vshrl.u32 %v595, 7
    %v597 = vsub.s32 3, %v596
    %v598 = vrot.slane %v581, %v597
    %v599 = vlaneseq
    %v600 = vshrl.u32 %v599, 7
    %v601 = vsub.s32 4, %v600
    %v602 = vrot.slane %v581, %v601
    %v603 = vlaneseq
    %v604 = vshrl.u32 %v603, 7
    %v605 = vsub.s32 5, %v604
    %v606 = vrot.slane %v581, %v605
    %v607 = vlaneseq
    %v608 = vshrl.u32 %v607, 7
    %v609 = vsub.s32 6, %v608
    %v610 = vrot.slane %v581, %v609
    %v611 = vlaneseq
    %v612 = vshrl.u32 %v611, 7
    %v613 = vsub.s32 7, %v612
    %v614 = vrot.slane %v581, %v613
    %v879 = vunpack.c.l.b16 %v325
    %v880 = vunpack.c.h.b16 %v325
    %v881 = vunpack.c.l.b16 %v326
    %v882 = vunpack.c.h.b16 %v326
    %v883 = vunpack.c.l.b16 %v327
    %v884 = vunpack.c.h.b16 %v327
    %v885 = vunpack.c.l.b16 %v328
    %v886 = vunpack.c.h.b16 %v328
    %v887 = vunpack.c.l.b16 %v329
    %v888 = vunpack.c.h.b16 %v329
    %v889 = vunpack.c.l.b16 %v330
    %v890 = vunpack.c.h.b16 %v330
    %v891 = vunpack.c.l.b16 %v331
    %v892 = vunpack.c.h.b16 %v331
    %v893 = vunpack.c.l.b16 %v332
    %v894 = vunpack.c.h.b16 %v332
    %v895 = vunpack.c.l.b16 %v333
    %v896 = vunpack.c.h.b16 %v333
    %v897 = vunpack.c.l.b16 %v334
    %v898 = vunpack.c.h.b16 %v334
    %v899 = vunpack.c.l.b16 %v335
    %v900 = vunpack.c.h.b16 %v335
    %v901 = vunpack.c.l.b16 %v336
    %v902 = vunpack.c.h.b16 %v336
    %v903 = vunpack.c.l.b16 %v337
    %v904 = vunpack.c.h.b16 %v337
    %v905 = vunpack.c.l.b16 %v338
    %v906 = vunpack.c.h.b16 %v338
    %v907 = vunpack.c.l.b16 %v339
    %v908 = vunpack.c.h.b16 %v339
    %v909 = vunpack.c.l.b16 %v340
    %v910 = vunpack.c.h.b16 %v340
    %v911 = vunpack.c.l.b16 %v341
    %v912 = vunpack.c.h.b16 %v341
    %v913 = vunpack.c.l.b16 %v342
    %v914 = vunpack.c.h.b16 %v342
    %v915 = vunpack.c.l.b16 %v343
    %v916 = vunpack.c.h.b16 %v343
    %v917 = vunpack.c.l.b16 %v344
    %v918 = vunpack.c.h.b16 %v344
    %v919 = vunpack.c.l.b16 %v345
    %v920 = vunpack.c.h.b16 %v345
    %v921 = vunpack.c.l.b16 %v346
    %v922 = vunpack.c.h.b16 %v346
    %v923 = vunpack.c.l.b16 %v347
    %v924 = vunpack.c.h.b16 %v347
    %v925 = vunpack.c.l.b16 %v348
    %v926 = vunpack.c.h.b16 %v348
    %v927 = vunpack.c.l.b16 %v349
    %v928 = vunpack.c.h.b16 %v349
    %v929 = vunpack.c.l.b16 %v350
    %v930 = vunpack.c.h.b16 %v350
    %v931 = vunpack.c.l.b16 %v351
    %v932 = vunpack.c.h.b16 %v351
    %v933 = vunpack.c.l.b16 %v352
    %v934 = vunpack.c.h.b16 %v352
    %v935 = vunpack.c.l.b16 %v353
    %v936 = vunpack.c.h.b16 %v353
    %v937 = vunpack.c.l.b16 %v354
    %v938 = vunpack.c.h.b16 %v354
    %v939 = vunpack.c.l.b16 %v355
    %v940 = vunpack.c.h.b16 %v355
    %v941 = vunpack.c.l.b16 %v356
    %v942 = vunpack.c.h.b16 %v356
    %v943 = vunpack.c.l.b16 %v357
    %v944 = vunpack.c.h.b16 %v357
    %v945 = vunpack.c.l.b16 %v358
    %v946 = vunpack.c.h.b16 %v358
    %v947 = vunpack.c.l.b16 %v359
    %v948 = vunpack.c.h.b16 %v359
    %v949 = vunpack.c.l.b16 %v360
    %v950 = vunpack.c.h.b16 %v360
    %v951 = vunpack.c.l.b16 %v361
    %v952 = vunpack.c.h.b16 %v361
    %v953 = vunpack.c.l.b16 %v362
    %v954 = vunpack.c.h.b16 %v362
    %v955 = vunpack.c.l.b16 %v363
    %v956 = vunpack.c.h.b16 %v363
    %v957 = vunpack.c.l.b16 %v364
    %v958 = vunpack.c.h.b16 %v364
    %v959 = vunpack.c.l.b16 %v365
    %v960 = vunpack.c.h.b16 %v365
    %v961 = vunpack.c.l.b16 %v366
    %v962 = vunpack.c.h.b16 %v366
    %v963 = vunpack.c.l.b16 %v367
    %v964 = vunpack.c.h.b16 %v367
    %v965 = vunpack.c.l.b16 %v368
    %v966 = vunpack.c.h.b16 %v368
    %v967 = vunpack.c.l.b16 %v369
    %v968 = vunpack.c.h.b16 %v369
    %v969 = vunpack.c.l.b16 %v370
    %v970 = vunpack.c.h.b16 %v370
    %v971 = vunpack.c.l.b16 %v371
    %v972 = vunpack.c.h.b16 %v371
    %v973 = vunpack.c.l.b16 %v372
    %v974 = vunpack.c.h.b16 %v372
    %v975 = vunpack.c.l.b16 %v373
    %v976 = vunpack.c.h.b16 %v373
    %v977 = vunpack.c.l.b16 %v374
    %v978 = vunpack.c.h.b16 %v374
    %v979 = vunpack.c.l.b16 %v375
    %v980 = vunpack.c.h.b16 %v375
    %v981 = vunpack.c.l.b16 %v376
    %v982 = vunpack.c.h.b16 %v376
    %v983 = vunpack.c.l.b16 %v377
    %v984 = vunpack.c.h.b16 %v377
    %v985 = vunpack.c.l.b16 %v378
    %v986 = vunpack.c.h.b16 %v378
    %v987 = vunpack.c.l.b16 %v379
    %v988 = vunpack.c.h.b16 %v379
    %v989 = vunpack.c.l.b16 %v380
    %v990 = vunpack.c.h.b16 %v380
    %v991 = vunpack.c.l.b16 %v381
    %v992 = vunpack.c.h.b16 %v381
    %v993 = vunpack.c.l.b16 %v382
    %v994 = vunpack.c.h.b16 %v382
    %v995 = vunpack.c.l.b16 %v383
    %v996 = vunpack.c.h.b16 %v383
    %v997 = vunpack.c.l.b16 %v384
    %v998 = vunpack.c.h.b16 %v384
    %v999 = vunpack.c.l.b16 %v385
    %v1000 = vunpack.c.h.b16 %v385
    %v1001 = vunpack.c.l.b16 %v386
    %v1002 = vunpack.c.h.b16 %v386
    %v1003 = vunpack.c.l.b16 %v387
    %v1004 = vunpack.c.h.b16 %v387
    %v1005 = vunpack.c.l.b16 %v388
    %v1006 = vunpack.c.h.b16 %v388
    %v1007 = vunpack.c.l.b16 %v389
    %v1008 = vunpack.c.h.b16 %v389
    %v1009 = vunpack.c.l.b16 %v390
    %v1010 = vunpack.c.h.b16 %v390
    %v1011 = vunpack.c.l.b16 %v391
    %v1012 = vunpack.c.h.b16 %v391
    %v1013 = vunpack.c.l.b16 %v392
    %v1014 = vunpack.c.h.b16 %v392
    %v1015 = vunpack.c.l.b16 %v393
    %v1016 = vunpack.c.h.b16 %v393
    %v1017 = vunpack.c.l.b16 %v394
    %v1018 = vunpack.c.h.b16 %v394
    %v1019 = vunpack.c.l.b16 %v395
    %v1020 = vunpack.c.h.b16 %v395
    %v1021 = vunpack.c.l.b16 %v396
    %v1022 = vunpack.c.h.b16 %v396
    %v1023 = vunpack.c.l.b16 %v397
    %v1024 = vunpack.c.h.b16 %v397
    %v1025 = vunpack.c.l.b16 %v398
    %v1026 = vunpack.c.h.b16 %v398
    %v1027 = vunpack.c.l.b16 %v399
    %v1028 = vunpack.c.h.b16 %v399
    %v1029 = vunpack.c.l.b16 %v400
    %v1030 = vunpack.c.h.b16 %v400
    %v1031 = vunpack.c.l.b16 %v401
    %v1032 = vunpack.c.h.b16 %v401
    %v1033 = vunpack.c.l.b16 %v402
    %v1034 = vunpack.c.h.b16 %v402
    %v1035 = vunpack.c.l.b16 %v403
    %v1036 = vunpack.c.h.b16 %v403
    %v1037 = vunpack.c.l.b16 %v404
    %v1038 = vunpack.c.h.b16 %v404
    %v1039 = vunpack.c.l.b16 %v405
    %v1040 = vunpack.c.h.b16 %v405
    %v1041 = vunpack.c.l.b16 %v406
    %v1042 = vunpack.c.h.b16 %v406
    %v1043 = vunpack.c.l.b16 %v407
    %v1044 = vunpack.c.h.b16 %v407
    %v1045 = vunpack.c.l.b16 %v408
    %v1046 = vunpack.c.h.b16 %v408
    %v1047 = vunpack.c.l.b16 %v409
    %v1048 = vunpack.c.h.b16 %v409
    %v1049 = vunpack.c.l.b16 %v410
    %v1050 = vunpack.c.h.b16 %v410
    %v1051 = vunpack.c.l.b16 %v411
    %v1052 = vunpack.c.h.b16 %v411
    %v1053 = vunpack.c.l.b16 %v412
    %v1054 = vunpack.c.h.b16 %v412
    %v1055 = vunpack.c.l.b16 %v413
    %v1056 = vunpack.c.h.b16 %v413
    %v1057 = vunpack.c.l.b16 %v414
    %v1058 = vunpack.c.h.b16 %v414
    %v1059 = vunpack.c.l.b16 %v415
    %v1060 = vunpack.c.h.b16 %v415
    %v1061 = vunpack.c.l.b16 %v416
    %v1062 = vunpack.c.h.b16 %v416
    %v1063 = vunpack.c.l.b16 %v417
    %v1064 = vunpack.c.h.b16 %v417
    %v1065 = vunpack.c.l.b16 %v418
    %v1066 = vunpack.c.h.b16 %v418
    %v1067 = vunpack.c.l.b16 %v419
    %v1068 = vunpack.c.h.b16 %v419
    %v1069 = vunpack.c.l.b16 %v420
    %v1070 = vunpack.c.h.b16 %v420
    %v1071 = vunpack.c.l.b16 %v421
    %v1072 = vunpack.c.h.b16 %v421
    %v1073 = vunpack.c.l.b16 %v422
    %v1074 = vunpack.c.h.b16 %v422
    %v1075 = vunpack.c.l.b16 %v423
    %v1076 = vunpack.c.h.b16 %v423
    %v1077 = vunpack.c.l.b16 %v424
    %v1078 = vunpack.c.h.b16 %v424
    %v1079 = vunpack.c.l.b16 %v425
    %v1080 = vunpack.c.h.b16 %v425
    %v1081 = vunpack.c.l.b16 %v426
    %v1082 = vunpack.c.h.b16 %v426
    %v1083 = vunpack.c.l.b16 %v427
    %v1084 = vunpack.c.h.b16 %v427
    %v1085 = vunpack.c.l.b16 %v428
    %v1086 = vunpack.c.h.b16 %v428
    %v1087 = vunpack.c.l.b16 %v429
    %v1088 = vunpack.c.h.b16 %v429
    %v1089 = vunpack.c.l.b16 %v430
    %v1090 = vunpack.c.h.b16 %v430
    %v1091 = vunpack.c.l.b16 %v431
    %v1092 = vunpack.c.h.b16 %v431
    %v1093 = vunpack.c.l.b16 %v432
    %v1094 = vunpack.c.h.b16 %v432
    %v1095 = vunpack.c.l.b16 %v433
    %v1096 = vunpack.c.h.b16 %v433
    %v1097 = vunpack.c.l.b16 %v434
    %v1098 = vunpack.c.h.b16 %v434
    %v1099 = vunpack.c.l.b16 %v435
    %v1100 = vunpack.c.h.b16 %v435
    %v1101 = vunpack.c.l.b16 %v436
    %v1102 = vunpack.c.h.b16 %v436
    %v1103 = vunpack.c.l.b16 %v437
    %v1104 = vunpack.c.h.b16 %v437
    %v1105 = vunpack.c.l.b16 %v438
    %v1106 = vunpack.c.h.b16 %v438
    %v1107 = vunpack.c.l.b16 %v439
    %v1108 = vunpack.c.h.b16 %v439
    %v1109 = vunpack.c.l.b16 %v440
    %v1110 = vunpack.c.h.b16 %v440
    %v1111 = vunpack.c.l.b16 %v441
    %v1112 = vunpack.c.h.b16 %v441
    %v1113 = vunpack.c.l.b16 %v442
    %v1114 = vunpack.c.h.b16 %v442
    %v1115 = vunpack.c.l.b16 %v443
    %v1116 = vunpack.c.h.b16 %v443
    %v1117 = vunpack.c.l.b16 %v444
    %v1118 = vunpack.c.h.b16 %v444
    %v1119 = vunpack.c.l.b16 %v445
    %v1120 = vunpack.c.h.b16 %v445
    %v1121 = vunpack.c.l.b16 %v446
    %v1122 = vunpack.c.h.b16 %v446
    %v1123 = vunpack.c.l.b16 %v447
    %v1124 = vunpack.c.h.b16 %v447
    %v1125 = vunpack.c.l.b16 %v448
    %v1126 = vunpack.c.h.b16 %v448
    %v1127 = vunpack.c.l.b16 %v449
    %v1128 = vunpack.c.h.b16 %v449
    %v1129 = vunpack.c.l.b16 %v450
    %v1130 = vunpack.c.h.b16 %v450
    %v1131 = vunpack.c.l.b16 %v451
    %v1132 = vunpack.c.h.b16 %v451
    %v1133 = vunpack.c.l.b16 %v452
    %v1134 = vunpack.c.h.b16 %v452
    %v1135 = vunpack.c.l.b16 %v453
    %v1136 = vunpack.c.h.b16 %v453
    %v1137 = vunpack.c.l.b16 %v454
    %v1138 = vunpack.c.h.b16 %v454
    %v1139 = vunpack.c.l.b16 %v455
    %v1140 = vunpack.c.h.b16 %v455
    %v1141 = vunpack.c.l.b16 %v456
    %v1142 = vunpack.c.h.b16 %v456
    %v1143 = vunpack.c.l.b16 %v457
    %v1144 = vunpack.c.h.b16 %v457
    %v1145 = vunpack.c.l.b16 %v458
    %v1146 = vunpack.c.h.b16 %v458
    %v1147 = vunpack.c.l.b16 %v459
    %v1148 = vunpack.c.h.b16 %v459
    %v1149 = vunpack.c.l.b16 %v460
    %v1150 = vunpack.c.h.b16 %v460
    %v1151 = vunpack.c.l.b16 %v461
    %v1152 = vunpack.c.h.b16 %v461
    %v1153 = vunpack.c.l.b16 %v462
    %v1154 = vunpack.c.h.b16 %v462
    %v1155 = vunpack.c.l.b16 %v463
    %v1156 = vunpack.c.h.b16 %v463
    %v1157 = vunpack.c.l.b16 %v464
    %v1158 = vunpack.c.h.b16 %v464
    %v1159 = vunpack.c.l.b16 %v465
    %v1160 = vunpack.c.h.b16 %v465
    %v1161 = vunpack.c.l.b16 %v466
    %v1162 = vunpack.c.h.b16 %v466
    %v1163 = vunpack.c.l.b16 %v467
    %v1164 = vunpack.c.h.b16 %v467
    %v1165 = vunpack.c.l.b16 %v468
    %v1166 = vunpack.c.h.b16 %v468
    %v1167 = vunpack.c.l.b16 %v469
    %v1168 = vunpack.c.h.b16 %v469
    %v1169 = vunpack.c.l.b16 %v470
    %v1170 = vunpack.c.h.b16 %v470
    %v1171 = vunpack.c.l.b16 %v471
    %v1172 = vunpack.c.h.b16 %v471
    %v1173 = vunpack.c.l.b16 %v472
    %v1174 = vunpack.c.h.b16 %v472
    %v1175 = vunpack.c.l.b16 %v473
    %v1176 = vunpack.c.h.b16 %v473
    %v1177 = vunpack.c.l.b16 %v474
    %v1178 = vunpack.c.h.b16 %v474
    %v1179 = vunpack.c.l.b16 %v475
    %v1180 = vunpack.c.h.b16 %v475
    %v1181 = vunpack.c.l.b16 %v476
    %v1182 = vunpack.c.h.b16 %v476
    %v1183 = vunpack.c.l.b16 %v477
    %v1184 = vunpack.c.h.b16 %v477
    %v1185 = vunpack.c.l.b16 %v478
    %v1186 = vunpack.c.h.b16 %v478
    %v1187 = vunpack.c.l.b16 %v479
    %v1188 = vunpack.c.h.b16 %v479
    %v1189 = vunpack.c.l.b16 %v480
    %v1190 = vunpack.c.h.b16 %v480
    %v1191 = vunpack.c.l.b16 %v481
    %v1192 = vunpack.c.h.b16 %v481
    %v1193 = vunpack.c.l.b16 %v482
    %v1194 = vunpack.c.h.b16 %v482
    %v1195 = vunpack.c.l.b16 %v483
    %v1196 = vunpack.c.h.b16 %v483
    %v1197 = vunpack.c.l.b16 %v484
    %v1198 = vunpack.c.h.b16 %v484
    %v1199 = vunpack.c.l.b16 %v485
    %v1200 = vunpack.c.h.b16 %v485
    %v1201 = vunpack.c.l.b16 %v486
    %v1202 = vunpack.c.h.b16 %v486
    %v1203 = vunpack.c.l.b16 %v487
    %v1204 = vunpack.c.h.b16 %v487
    %v1205 = vunpack.c.l.b16 %v488
    %v1206 = vunpack.c.h.b16 %v488
    %v1207 = vunpack.c.l.b16 %v489
    %v1208 = vunpack.c.h.b16 %v489
    %v1209 = vunpack.c.l.b16 %v490
    %v1210 = vunpack.c.h.b16 %v490
    %v1211 = vunpack.c.l.b16 %v491
    %v1212 = vunpack.c.h.b16 %v491
    %v1213 = vunpack.c.l.b16 %v492
    %v1214 = vunpack.c.h.b16 %v492
    %v1215 = vunpack.c.l.b16 %v493
    %v1216 = vunpack.c.h.b16 %v493
    %v1217 = vunpack.c.l.b16 %v494
    %v1218 = vunpack.c.h.b16 %v494
    %v1219 = vunpack.c.l.b16 %v495
    %v1220 = vunpack.c.h.b16 %v495
    %v1221 = vunpack.c.l.b16 %v496
    %v1222 = vunpack.c.h.b16 %v496
    %v1223 = vunpack.c.l.b16 %v497
    %v1224 = vunpack.c.h.b16 %v497
    %v1225 = vunpack.c.l.b16 %v498
    %v1226 = vunpack.c.h.b16 %v498
    %v1227 = vunpack.c.l.b16 %v499
    %v1228 = vunpack.c.h.b16 %v499
    %v1229 = vunpack.c.l.b16 %v500
    %v1230 = vunpack.c.h.b16 %v500
    %v1231 = vunpack.c.l.b16 %v501
    %v1232 = vunpack.c.h.b16 %v501
    %v1233 = vunpack.c.l.b16 %v502
    %v1234 = vunpack.c.h.b16 %v502
    %v1235 = vunpack.c.l.b16 %v503
    %v1236 = vunpack.c.h.b16 %v503
    %v1237 = vunpack.c.l.b16 %v504
    %v1238 = vunpack.c.h.b16 %v504
    %v1239 = vunpack.c.l.b16 %v505
    %v1240 = vunpack.c.h.b16 %v505
    %v1241 = vunpack.c.l.b16 %v506
    %v1242 = vunpack.c.h.b16 %v506
    %v1243 = vunpack.c.l.b16 %v507
    %v1244 = vunpack.c.h.b16 %v507
    %v1245 = vunpack.c.l.b16 %v508
    %v1246 = vunpack.c.h.b16 %v508
    %v1247 = vunpack.c.l.b16 %v509
    %v1248 = vunpack.c.h.b16 %v509
    %v1249 = vunpack.c.l.b16 %v510
    %v1250 = vunpack.c.h.b16 %v510
    %v1251 = vunpack.c.l.b16 %v511
    %v1252 = vunpack.c.h.b16 %v511
    %v1253 = vunpack.c.l.b16 %v512
    %v1254 = vunpack.c.h.b16 %v512
    %v1255 = vunpack.c.l.b16 %v513
    %v1256 = vunpack.c.h.b16 %v513
    %v1257 = vunpack.c.l.b16 %v514
    %v1258 = vunpack.c.h.b16 %v514
    %v1259 = vunpack.c.l.b16 %v515
    %v1260 = vunpack.c.h.b16 %v515
    %v1261 = vunpack.c.l.b16 %v516
    %v1262 = vunpack.c.h.b16 %v516
    %v1263 = vunpack.c.l.b16 %v517
    %v1264 = vunpack.c.h.b16 %v517
    %v1265 = vunpack.c.l.b16 %v518
    %v1266 = vunpack.c.h.b16 %v518
    %v1267 = vunpack.c.l.b16 %v519
    %v1268 = vunpack.c.h.b16 %v519
    %v1269 = vunpack.c.l.b16 %v520
    %v1270 = vunpack.c.h.b16 %v520
    %v1271 = vunpack.c.l.b16 %v521
    %v1272 = vunpack.c.h.b16 %v521
    %v1273 = vunpack.c.l.b16 %v522
    %v1274 = vunpack.c.h.b16 %v522
    %v1275 = vunpack.c.l.b16 %v523
    %v1276 = vunpack.c.h.b16 %v523
    %v1277 = vunpack.c.l.b16 %v524
    %v1278 = vunpack.c.h.b16 %v524
    %v1279 = vunpack.c.l.b16 %v525
    %v1280 = vunpack.c.h.b16 %v525
    %v1281 = vunpack.c.l.b16 %v526
    %v1282 = vunpack.c.h.b16 %v526
    %v1283 = vunpack.c.l.b16 %v527
    %v1284 = vunpack.c.h.b16 %v527
    %v1285 = vunpack.c.l.b16 %v528
    %v1286 = vunpack.c.h.b16 %v528
    %v1287 = vunpack.c.l.b16 %v529
    %v1288 = vunpack.c.h.b16 %v529
    %v1289 = vunpack.c.l.b16 %v530
    %v1290 = vunpack.c.h.b16 %v530
    %v1291 = vunpack.c.l.b16 %v531
    %v1292 = vunpack.c.h.b16 %v531
    %v1293 = vunpack.c.l.b16 %v532
    %v1294 = vunpack.c.h.b16 %v532
    %v1295 = vunpack.c.l.b16 %v533
    %v1296 = vunpack.c.h.b16 %v533
    %v1297 = vunpack.c.l.b16 %v534
    %v1298 = vunpack.c.h.b16 %v534
    %v1299 = vunpack.c.l.b16 %v535
    %v1300 = vunpack.c.h.b16 %v535
    %v1301 = vunpack.c.l.b16 %v536
    %v1302 = vunpack.c.h.b16 %v536
    %v1303 = vunpack.c.l.b16 %v537
    %v1304 = vunpack.c.h.b16 %v537
    %v1305 = vunpack.c.l.b16 %v538
    %v1306 = vunpack.c.h.b16 %v538
    %v1307 = vunpack.c.l.b16 %v539
    %v1308 = vunpack.c.h.b16 %v539
    %v1309 = vunpack.c.l.b16 %v540
    %v1310 = vunpack.c.h.b16 %v540
    %v1311 = vunpack.c.l.b16 %v541
    %v1312 = vunpack.c.h.b16 %v541
    %v1313 = vunpack.c.l.b16 %v542
    %v1314 = vunpack.c.h.b16 %v542
    %v1315 = vunpack.c.l.b16 %v543
    %v1316 = vunpack.c.h.b16 %v543
    %v1317 = vunpack.c.l.b16 %v544
    %v1318 = vunpack.c.h.b16 %v544
    %v1319 = vunpack.c.l.b16 %v545
    %v1320 = vunpack.c.h.b16 %v545
    %v1321 = vunpack.c.l.b16 %v546
    %v1322 = vunpack.c.h.b16 %v546
    %v1323 = vunpack.c.l.b16 %v547
    %v1324 = vunpack.c.h.b16 %v547
    %v1325 = vunpack.c.l.b16 %v548
    %v1326 = vunpack.c.h.b16 %v548
    %v1327 = vunpack.c.l.b16 %v549
    %v1328 = vunpack.c.h.b16 %v549
    %v1329 = vunpack.c.l.b16 %v550
    %v1330 = vunpack.c.h.b16 %v550
    %v1331 = vunpack.c.l.b16 %v551
    %v1332 = vunpack.c.h.b16 %v551
    %v1333 = vunpack.c.l.b16 %v552
    %v1334 = vunpack.c.h.b16 %v552
    %v1335 = vunpack.c.l.b16 %v553
    %v1336 = vunpack.c.h.b16 %v553
    %v1337 = vunpack.c.l.b16 %v554
    %v1338 = vunpack.c.h.b16 %v554
    %v1339 = vunpack.c.l.b16 %v555
    %v1340 = vunpack.c.h.b16 %v555
    %v1341 = vunpack.c.l.b16 %v556
    %v1342 = vunpack.c.h.b16 %v556
    %v1343 = vunpack.c.l.b16 %v557
    %v1344 = vunpack.c.h.b16 %v557
    %v1345 = vunpack.c.l.b16 %v558
    %v1346 = vunpack.c.h.b16 %v558
    %v1347 = vunpack.c.l.b16 %v559
    %v1348 = vunpack.c.h.b16 %v559
    %v1349 = vunpack.c.l.b16 %v560
    %v1350 = vunpack.c.h.b16 %v560
    %v1351 = vunpack.c.l.b16 %v561
    %v1352 = vunpack.c.h.b16 %v561
    %v1353 = vunpack.c.l.b16 %v562
    %v1354 = vunpack.c.h.b16 %v562
    %v1355 = vunpack.c.l.b16 %v563
    %v1356 = vunpack.c.h.b16 %v563
    %v1357 = vunpack.c.l.b16 %v564
    %v1358 = vunpack.c.h.b16 %v564
    %v1359 = vunpack.c.l.b16 %v565
    %v1360 = vunpack.c.h.b16 %v565
    %v1361 = vunpack.c.l.b16 %v566
    %v1362 = vunpack.c.h.b16 %v566
    %v1363 = vunpack.c.l.b16 %v567
    %v1364 = vunpack.c.h.b16 %v567
    %v1365 = vunpack.c.l.b16 %v568
    %v1366 = vunpack.c.h.b16 %v568
    %v1367 = vunpack.c.l.b16 %v569
    %v1368 = vunpack.c.h.b16 %v569
    %v1369 = vunpack.c.l.b16 %v570
    %v1370 = vunpack.c.h.b16 %v570
    %v1371 = vunpack.c.l.b16 %v571
    %v1372 = vunpack.c.h.b16 %v571
    %v1373 = vunpack.c.l.b16 %v572
    %v1374 = vunpack.c.h.b16 %v572
    %v1375 = vunpack.c.l.b16 %v573
    %v1376 = vunpack.c.h.b16 %v573
    %v1377 = vunpack.c.l.b16 %v574
    %v1378 = vunpack.c.h.b16 %v574
    %v1379 = vunpack.c.l.b16 %v575
    %v1380 = vunpack.c.h.b16 %v575
    %v1381 = vunpack.c.l.b16 %v576
    %v1382 = vunpack.c.h.b16 %v576
    %v1383 = vunpack.c.l.b16 %v577
    %v1384 = vunpack.c.h.b16 %v577
    %v1385 = vunpack.c.l.b16 %v578
    %v1386 = vunpack.c.h.b16 %v578
    %v1387 = vunpack.c.l.b16 %v579
    %v1388 = vunpack.c.h.b16 %v579
    %v1389 = vunpack.c.l.b16 %v580
    %v1390 = vunpack.c.h.b16 %v580
    %v1391 = vpack.c.b16 %v887, %v879
    %v1392 = vpack.c.b16 %v888, %v880
    %v1393 = vpack.c.b16 %v889, %v881
    %v1394 = vpack.c.b16 %v890, %v882
    %v1395 = vpack.c.b16 %v891, %v883
    %v1396 = vpack.c.b16 %v892, %v884
    %v1397 = vpack.c.b16 %v893, %v885
    %v1398 = vpack.c.b16 %v894, %v886
    %v1399 = vpack.c.b16 %v903, %v895
    %v1400 = vpack.c.b16 %v904, %v896
    %v1401 = vpack.c.b16 %v905, %v897
    %v1402 = vpack.c.b16 %v906, %v898
    %v1403 = vpack.c.b16 %v907, %v899
    %v1404 = vpack.c.b16 %v908, %v900
    %v1405 = vpack.c.b16 %v909, %v901
    %v1406 = vpack.c.b16 %v910, %v902
    %v1407 = vpack.c.b16 %v919, %v911
    %v1408 = vpack.c.b16 %v920, %v912
    %v1409 = vpack.c.b16 %v921, %v913
    %v1410 = vpack.c.b16 %v922, %v914
    %v1411 = vpack.c.b16 %v923, %v915
    %v1412 = vpack.c.b16 %v924, %v916
    %v1413 = vpack.c.b16 %v925, %v917
    %v1414 = vpack.c.b16 %v926, %v918
    %v1415 = vpack.c.b16 %v935, %v927
    %v1416 = vpack.c.b16 %v936, %v928
    %v1417 = vpack.c.b16 %v937, %v929
    %v1418 = vpack.c.b16 %v938, %v930
    %v1419 = vpack.c.b16 %v939, %v931
    %v1420 = vpack.c.b16 %v940, %v932
    %v1421 = vpack.c.b16 %v941, %v933
    %v1422 = vpack.c.b16 %v942, %v934
    %v1423 = vpack.c.b16 %v951, %v943
    %v1424 = vpack.c.b16 %v952, %v944
    %v1425 = vpack.c.b16 %v953, %v945
    %v1426 = vpack.c.b16 %v954, %v946
    %v1427 = vpack.c.b16 %v955, %v947
    %v1428 = vpack.c.b16 %v956, %v948
    %v1429 = vpack.c.b16 %v957, %v949
    %v1430 = vpack.c.b16 %v958, %v950
    %v1431 = vpack.c.b16 %v967, %v959
    %v1432 = vpack.c.b16 %v968, %v960
    %v1433 = vpack.c.b16 %v969, %v961
    %v1434 = vpack.c.b16 %v970, %v962
    %v1435 = vpack.c.b16 %v971, %v963
    %v1436 = vpack.c.b16 %v972, %v964
    %v1437 = vpack.c.b16 %v973, %v965
    %v1438 = vpack.c.b16 %v974, %v966
    %v1439 = vpack.c.b16 %v983, %v975
    %v1440 = vpack.c.b16 %v984, %v976
    %v1441 = vpack.c.b16 %v985, %v977
    %v1442 = vpack.c.b16 %v986, %v978
    %v1443 = vpack.c.b16 %v987, %v979
    %v1444 = vpack.c.b16 %v988, %v980
    %v1445 = vpack.c.b16 %v989, %v981
    %v1446 = vpack.c.b16 %v990, %v982
    %v1447 = vpack.c.b16 %v999, %v991
    %v1448 = vpack.c.b16 %v1000, %v992
    %v1449 = vpack.c.b16 %v1001, %v993
    %v1450 = vpack.c.b16 %v1002, %v994
    %v1451 = vpack.c.b16 %v1003, %v995
    %v1452 = vpack.c.b16 %v1004, %v996
    %v1453 = vpack.c.b16 %v1005, %v997
    %v1454 = vpack.c.b16 %v1006, %v998
    %v1455 = vpack.c.b16 %v1015, %v1007
    %v1456 = vpack.c.b16 %v1016, %v1008
    %v1457 = vpack.c.b16 %v1017, %v1009
    %v1458 = vpack.c.b16 %v1018, %v1010
    %v1459 = vpack.c.b16 %v1019, %v1011
    %v1460 = vpack.c.b16 %v1020, %v1012
    %v1461 = vpack.c.b16 %v1021, %v1013
    %v1462 = vpack.c.b16 %v1022, %v1014
    %v1463 = vpack.c.b16 %v1031, %v1023
    %v1464 = vpack.c.b16 %v1032, %v1024
    %v1465 = vpack.c.b16 %v1033, %v1025
    %v1466 = vpack.c.b16 %v1034, %v1026
    %v1467 = vpack.c.b16 %v1035, %v1027
    %v1468 = vpack.c.b16 %v1036, %v1028
    %v1469 = vpack.c.b16 %v1037, %v1029
    %v1470 = vpack.c.b16 %v1038, %v1030
    %v1471 = vpack.c.b16 %v1047, %v1039
    %v1472 = vpack.c.b16 %v1048, %v1040
    %v1473 = vpack.c.b16 %v1049, %v1041
    %v1474 = vpack.c.b16 %v1050, %v1042
    %v1475 = vpack.c.b16 %v1051, %v1043
    %v1476 = vpack.c.b16 %v1052, %v1044
    %v1477 = vpack.c.b16 %v1053, %v1045
    %v1478 = vpack.c.b16 %v1054, %v1046
    %v1479 = vpack.c.b16 %v1063, %v1055
    %v1480 = vpack.c.b16 %v1064, %v1056
    %v1481 = vpack.c.b16 %v1065, %v1057
    %v1482 = vpack.c.b16 %v1066, %v1058
    %v1483 = vpack.c.b16 %v1067, %v1059
    %v1484 = vpack.c.b16 %v1068, %v1060
    %v1485 = vpack.c.b16 %v1069, %v1061
    %v1486 = vpack.c.b16 %v1070, %v1062
    %v1487 = vpack.c.b16 %v1079, %v1071
    %v1488 = vpack.c.b16 %v1080, %v1072
    %v1489 = vpack.c.b16 %v1081, %v1073
    %v1490 = vpack.c.b16 %v1082, %v1074
    %v1491 = vpack.c.b16 %v1083, %v1075
    %v1492 = vpack.c.b16 %v1084, %v1076
    %v1493 = vpack.c.b16 %v1085, %v1077
    %v1494 = vpack.c.b16 %v1086, %v1078
    %v1495 = vpack.c.b16 %v1095, %v1087
    %v1496 = vpack.c.b16 %v1096, %v1088
    %v1497 = vpack.c.b16 %v1097, %v1089
    %v1498 = vpack.c.b16 %v1098, %v1090
    %v1499 = vpack.c.b16 %v1099, %v1091
    %v1500 = vpack.c.b16 %v1100, %v1092
    %v1501 = vpack.c.b16 %v1101, %v1093
    %v1502 = vpack.c.b16 %v1102, %v1094
    %v1503 = vpack.c.b16 %v1111, %v1103
    %v1504 = vpack.c.b16 %v1112, %v1104
    %v1505 = vpack.c.b16 %v1113, %v1105
    %v1506 = vpack.c.b16 %v1114, %v1106
    %v1507 = vpack.c.b16 %v1115, %v1107
    %v1508 = vpack.c.b16 %v1116, %v1108
    %v1509 = vpack.c.b16 %v1117, %v1109
    %v1510 = vpack.c.b16 %v1118, %v1110
    %v1511 = vpack.c.b16 %v1127, %v1119
    %v1512 = vpack.c.b16 %v1128, %v1120
    %v1513 = vpack.c.b16 %v1129, %v1121
    %v1514 = vpack.c.b16 %v1130, %v1122
    %v1515 = vpack.c.b16 %v1131, %v1123
    %v1516 = vpack.c.b16 %v1132, %v1124
    %v1517 = vpack.c.b16 %v1133, %v1125
    %v1518 = vpack.c.b16 %v1134, %v1126
    %v1519 = vpack.c.b16 %v1143, %v1135
    %v1520 = vpack.c.b16 %v1144, %v1136
    %v1521 = vpack.c.b16 %v1145, %v1137
    %v1522 = vpack.c.b16 %v1146, %v1138
    %v1523 = vpack.c.b16 %v1147, %v1139
    %v1524 = vpack.c.b16 %v1148, %v1140
    %v1525 = vpack.c.b16 %v1149, %v1141
    %v1526 = vpack.c.b16 %v1150, %v1142
    %v1527 = vpack.c.b16 %v1159, %v1151
    %v1528 = vpack.c.b16 %v1160, %v1152
    %v1529 = vpack.c.b16 %v1161, %v1153
    %v1530 = vpack.c.b16 %v1162, %v1154
    %v1531 = vpack.c.b16 %v1163, %v1155
    %v1532 = vpack.c.b16 %v1164, %v1156
    %v1533 = vpack.c.b16 %v1165, %v1157
    %v1534 = vpack.c.b16 %v1166, %v1158
    %v1535 = vpack.c.b16 %v1175, %v1167
    %v1536 = vpack.c.b16 %v1176, %v1168
    %v1537 = vpack.c.b16 %v1177, %v1169
    %v1538 = vpack.c.b16 %v1178, %v1170
    %v1539 = vpack.c.b16 %v1179, %v1171
    %v1540 = vpack.c.b16 %v1180, %v1172
    %v1541 = vpack.c.b16 %v1181, %v1173
    %v1542 = vpack.c.b16 %v1182, %v1174
    %v1543 = vpack.c.b16 %v1191, %v1183
    %v1544 = vpack.c.b16 %v1192, %v1184
    %v1545 = vpack.c.b16 %v1193, %v1185
    %v1546 = vpack.c.b16 %v1194, %v1186
    %v1547 = vpack.c.b16 %v1195, %v1187
    %v1548 = vpack.c.b16 %v1196, %v1188
    %v1549 = vpack.c.b16 %v1197, %v1189
    %v1550 = vpack.c.b16 %v1198, %v1190
    %v1551 = vpack.c.b16 %v1207, %v1199
    %v1552 = vpack.c.b16 %v1208, %v1200
    %v1553 = vpack.c.b16 %v1209, %v1201
    %v1554 = vpack.c.b16 %v1210, %v1202
    %v1555 = vpack.c.b16 %v1211, %v1203
    %v1556 = vpack.c.b16 %v1212, %v1204
    %v1557 = vpack.c.b16 %v1213, %v1205
    %v1558 = vpack.c.b16 %v1214, %v1206
    %v1559 = vpack.c.b16 %v1223, %v1215
    %v1560 = vpack.c.b16 %v1224, %v1216
    %v1561 = vpack.c.b16 %v1225, %v1217
    %v1562 = vpack.c.b16 %v1226, %v1218
    %v1563 = vpack.c.b16 %v1227, %v1219
    %v1564 = vpack.c.b16 %v1228, %v1220
    %v1565 = vpack.c.b16 %v1229, %v1221
    %v1566 = vpack.c.b16 %v1230, %v1222
    %v1567 = vpack.c.b16 %v1239, %v1231
    %v1568 = vpack.c.b16 %v1240, %v1232
    %v1569 = vpack.c.b16 %v1241, %v1233
    %v1570 = vpack.c.b16 %v1242, %v1234
    %v1571 = vpack.c.b16 %v1243, %v1235
    %v1572 = vpack.c.b16 %v1244, %v1236
    %v1573 = vpack.c.b16 %v1245, %v1237
    %v1574 = vpack.c.b16 %v1246, %v1238
    %v1575 = vpack.c.b16 %v1255, %v1247
    %v1576 = vpack.c.b16 %v1256, %v1248
    %v1577 = vpack.c.b16 %v1257, %v1249
    %v1578 = vpack.c.b16 %v1258, %v1250
    %v1579 = vpack.c.b16 %v1259, %v1251
    %v1580 = vpack.c.b16 %v1260, %v1252
    %v1581 = vpack.c.b16 %v1261, %v1253
    %v1582 = vpack.c.b16 %v1262, %v1254
    %v1583 = vpack.c.b16 %v1271, %v1263
    %v1584 = vpack.c.b16 %v1272, %v1264
    %v1585 = vpack.c.b16 %v1273, %v1265
    %v1586 = vpack.c.b16 %v1274, %v1266
    %v1587 = vpack.c.b16 %v1275, %v1267
    %v1588 = vpack.c.b16 %v1276, %v1268
    %v1589 = vpack.c.b16 %v1277, %v1269
    %v1590 = vpack.c.b16 %v1278, %v1270
    %v1591 = vpack.c.b16 %v1287, %v1279
    %v1592 = vpack.c.b16 %v1288, %v1280
    %v1593 = vpack.c.b16 %v1289, %v1281
    %v1594 = vpack.c.b16 %v1290, %v1282
    %v1595 = vpack.c.b16 %v1291, %v1283
    %v1596 = vpack.c.b16 %v1292, %v1284
    %v1597 = vpack.c.b16 %v1293, %v1285
    %v1598 = vpack.c.b16 %v1294, %v1286
    %v1599 = vpack.c.b16 %v1303, %v1295
    %v1600 = vpack.c.b16 %v1304, %v1296
    %v1601 = vpack.c.b16 %v1305, %v1297
    %v1602 = vpack.c.b16 %v1306, %v1298
    %v1603 = vpack.c.b16 %v1307, %v1299
    %v1604 = vpack.c.b16 %v1308, %v1300
    %v1605 = vpack.c.b16 %v1309, %v1301
    %v1606 = vpack.c.b16 %v1310, %v1302
    %v1607 = vpack.c.b16 %v1319, %v1311
    %v1608 = vpack.c.b16 %v1320, %v1312
    %v1609 = vpack.c.b16 %v1321, %v1313
    %v1610 = vpack.c.b16 %v1322, %v1314
    %v1611 = vpack.c.b16 %v1323, %v1315
    %v1612 = vpack.c.b16 %v1324, %v1316
    %v1613 = vpack.c.b16 %v1325, %v1317
    %v1614 = vpack.c.b16 %v1326, %v1318
    %v1615 = vpack.c.b16 %v1335, %v1327
    %v1616 = vpack.c.b16 %v1336, %v1328
    %v1617 = vpack.c.b16 %v1337, %v1329
    %v1618 = vpack.c.b16 %v1338, %v1330
    %v1619 = vpack.c.b16 %v1339, %v1331
    %v1620 = vpack.c.b16 %v1340, %v1332
    %v1621 = vpack.c.b16 %v1341, %v1333
    %v1622 = vpack.c.b16 %v1342, %v1334
    %v1623 = vpack.c.b16 %v1351, %v1343
    %v1624 = vpack.c.b16 %v1352, %v1344
    %v1625 = vpack.c.b16 %v1353, %v1345
    %v1626 = vpack.c.b16 %v1354, %v1346
    %v1627 = vpack.c.b16 %v1355, %v1347
    %v1628 = vpack.c.b16 %v1356, %v1348
    %v1629 = vpack.c.b16 %v1357, %v1349
    %v1630 = vpack.c.b16 %v1358, %v1350
    %v1631 = vpack.c.b16 %v1367, %v1359
    %v1632 = vpack.c.b16 %v1368, %v1360
    %v1633 = vpack.c.b16 %v1369, %v1361
    %v1634 = vpack.c.b16 %v1370, %v1362
    %v1635 = vpack.c.b16 %v1371, %v1363
    %v1636 = vpack.c.b16 %v1372, %v1364
    %v1637 = vpack.c.b16 %v1373, %v1365
    %v1638 = vpack.c.b16 %v1374, %v1366
    %v1639 = vpack.c.b16 %v1383, %v1375
    %v1640 = vpack.c.b16 %v1384, %v1376
    %v1641 = vpack.c.b16 %v1385, %v1377
    %v1642 = vpack.c.b16 %v1386, %v1378
    %v1643 = vpack.c.b16 %v1387, %v1379
    %v1644 = vpack.c.b16 %v1388, %v1380
    %v1645 = vpack.c.b16 %v1389, %v1381
    %v1646 = vpack.c.b16 %v1390, %v1382
    %1903 = vmatprep.subr.bf16.mxu0 %v1448
    %1904 = vmatpush1.bf16.msra.mxu0 %v1447
    %1905 = vmatprep.subr.bf16.mxu0 %v1440
    %1906 = vmatpush1.bf16.msra.mxu0 %v1439
    %1907 = vmatprep.subr.bf16.mxu0 %v1432
    %1908 = vmatpush1.bf16.msra.mxu0 %v1431
    %1909 = vmatprep.subr.bf16.mxu0 %v1424
    %1910 = vmatpush1.bf16.msra.mxu0 %v1423
    %1911 = vmatprep.subr.bf16.mxu0 %v1416
    %1912 = vmatpush1.bf16.msra.mxu0 %v1415
    %1913 = vmatprep.subr.bf16.mxu0 %v1408
    %1914 = vmatpush1.bf16.msra.mxu0 %v1407
    %1915 = vmatprep.subr.bf16.mxu0 %v1400
    %1916 = vmatpush1.bf16.msra.mxu0 %v1399
    %1917 = vmatprep.subr.bf16.mxu0 %v1392
    %1918 = vmatpush1.bf16.msra.mxu0 %v1391
    %1919 = vmatprep.subr.bf16.mxu0 %v1512
    %1920 = vmatpush2.bf16.msra.mxu0 %v1511
    %1921 = vmatprep.subr.bf16.mxu0 %v1504
    %1922 = vmatpush2.bf16.msra.mxu0 %v1503
    %1923 = vmatprep.subr.bf16.mxu0 %v1496
    %1924 = vmatpush2.bf16.msra.mxu0 %v1495
    %1925 = vmatprep.subr.bf16.mxu0 %v1488
    %1926 = vmatpush2.bf16.msra.mxu0 %v1487
    %1927 = vmatprep.subr.bf16.mxu0 %v1480
    %1928 = vmatpush2.bf16.msra.mxu0 %v1479
    %1929 = vmatprep.subr.bf16.mxu0 %v1472
    %1930 = vmatpush2.bf16.msra.mxu0 %v1471
    %1931 = vmatprep.subr.bf16.mxu0 %v1464
    %1932 = vmatpush2.bf16.msra.mxu0 %v1463
    %1933 = vmatprep.subr.bf16.mxu0 %v1456
    %1934 = vmatpush2.bf16.msra.mxu0 %v1455
    %1935 = vmatprep.mubr.bf16.mxu0 %v322
    %1936 = vmatmul.mubr.bf16.gmra.mxu0 %v321
    %v1937 = vpop.f32.mrf.mxu0
    %v1938 = vadd.f32 %v586, %v1937
    %v1939 = vpop.f32.mrf.mxu0
    %v1940 = vadd.f32 %v590, %v1939
    %v1941 = vpop.f32.mrf.mxu0
    %v1942 = vpop.f32.mrf.mxu0
    %1943 = vdwg.mxu0
    %1944 = vmatprep.subr.bf16.mxu0 %v1576
    %1945 = vmatpush1.bf16.msra.mxu0 %v1575
    %1946 = vmatprep.subr.bf16.mxu0 %v1568
    %1947 = vmatpush1.bf16.msra.mxu0 %v1567
    %1948 = vmatprep.subr.bf16.mxu0 %v1560
    %1949 = vmatpush1.bf16.msra.mxu0 %v1559
    %1950 = vmatprep.subr.bf16.mxu0 %v1552
    %1951 = vmatpush1.bf16.msra.mxu0 %v1551
    %1952 = vmatprep.subr.bf16.mxu0 %v1544
    %1953 = vmatpush1.bf16.msra.mxu0 %v1543
    %1954 = vmatprep.subr.bf16.mxu0 %v1536
    %1955 = vmatpush1.bf16.msra.mxu0 %v1535
    %1956 = vmatprep.subr.bf16.mxu0 %v1528
    %1957 = vmatpush1.bf16.msra.mxu0 %v1527
    %1958 = vmatprep.subr.bf16.mxu0 %v1520
    %1959 = vmatpush1.bf16.msra.mxu0 %v1519
    %1960 = vmatprep.subr.bf16.mxu0 %v1640
    %1961 = vmatpush2.bf16.msra.mxu0 %v1639
    %1962 = vmatprep.subr.bf16.mxu0 %v1632
    %1963 = vmatpush2.bf16.msra.mxu0 %v1631
    %1964 = vmatprep.subr.bf16.mxu0 %v1624
    %1965 = vmatpush2.bf16.msra.mxu0 %v1623
    %1966 = vmatprep.subr.bf16.mxu0 %v1616
    %1967 = vmatpush2.bf16.msra.mxu0 %v1615
    %1968 = vmatprep.subr.bf16.mxu0 %v1608
    %1969 = vmatpush2.bf16.msra.mxu0 %v1607
    %1970 = vmatprep.subr.bf16.mxu0 %v1600
    %1971 = vmatpush2.bf16.msra.mxu0 %v1599
    %1972 = vmatprep.subr.bf16.mxu0 %v1592
    %1973 = vmatpush2.bf16.msra.mxu0 %v1591
    %1974 = vmatprep.subr.bf16.mxu0 %v1584
    %1975 = vmatpush2.bf16.msra.mxu0 %v1583
    %1976 = vmatprep.mubr.bf16.mxu0 %v324
    %1977 = vmatmul.mubr.bf16.gmra.mxu0 %v323
    %v1978 = vpop.f32.mrf.mxu0
    %v1979 = vadd.f32 %v1938, %v1978
    %v1980 = vpop.f32.mrf.mxu0
    %v1981 = vadd.f32 %v1940, %v1980
    %v1982 = vpop.f32.mrf.mxu0
    %v1983 = vpop.f32.mrf.mxu0
    %1984 = vdwg.mxu0
    %1985 = vmatprep.subr.bf16.mxu0 %v1450
    %1986 = vmatpush1.bf16.msra.mxu0 %v1449
    %1987 = vmatprep.subr.bf16.mxu0 %v1442
    %1988 = vmatpush1.bf16.msra.mxu0 %v1441
    %1989 = vmatprep.subr.bf16.mxu0 %v1434
    %1990 = vmatpush1.bf16.msra.mxu0 %v1433
    %1991 = vmatprep.subr.bf16.mxu0 %v1426
    %1992 = vmatpush1.bf16.msra.mxu0 %v1425
    %1993 = vmatprep.subr.bf16.mxu0 %v1418
    %1994 = vmatpush1.bf16.msra.mxu0 %v1417
    %1995 = vmatprep.subr.bf16.mxu0 %v1410
    %1996 = vmatpush1.bf16.msra.mxu0 %v1409
    %1997 = vmatprep.subr.bf16.mxu0 %v1402
    %1998 = vmatpush1.bf16.msra.mxu0 %v1401
    %1999 = vmatprep.subr.bf16.mxu0 %v1394
    %2000 = vmatpush1.bf16.msra.mxu0 %v1393
    %2001 = vmatprep.subr.bf16.mxu0 %v1514
    %2002 = vmatpush2.bf16.msra.mxu0 %v1513
    %2003 = vmatprep.subr.bf16.mxu0 %v1506
    %2004 = vmatpush2.bf16.msra.mxu0 %v1505
    %2005 = vmatprep.subr.bf16.mxu0 %v1498
    %2006 = vmatpush2.bf16.msra.mxu0 %v1497
    %2007 = vmatprep.subr.bf16.mxu0 %v1490
    %2008 = vmatpush2.bf16.msra.mxu0 %v1489
    %2009 = vmatprep.subr.bf16.mxu0 %v1482
    %2010 = vmatpush2.bf16.msra.mxu0 %v1481
    %2011 = vmatprep.subr.bf16.mxu0 %v1474
    %2012 = vmatpush2.bf16.msra.mxu0 %v1473
    %2013 = vmatprep.subr.bf16.mxu0 %v1466
    %2014 = vmatpush2.bf16.msra.mxu0 %v1465
    %2015 = vmatprep.subr.bf16.mxu0 %v1458
    %2016 = vmatpush2.bf16.msra.mxu0 %v1457
    %2017 = vmatprep.mubr.bf16.mxu0 %v322
    %2018 = vmatmul.mubr.bf16.gmra.mxu0 %v321
    %v2019 = vpop.f32.mrf.mxu0
    %v2020 = vadd.f32 %v594, %v2019
    %v2021 = vpop.f32.mrf.mxu0
    %v2022 = vadd.f32 %v598, %v2021
    %v2023 = vpop.f32.mrf.mxu0
    %v2024 = vpop.f32.mrf.mxu0
    %2025 = vdwg.mxu0
    %2026 = vmatprep.subr.bf16.mxu0 %v1578
    %2027 = vmatpush1.bf16.msra.mxu0 %v1577
    %2028 = vmatprep.subr.bf16.mxu0 %v1570
    %2029 = vmatpush1.bf16.msra.mxu0 %v1569
    %2030 = vmatprep.subr.bf16.mxu0 %v1562
    %2031 = vmatpush1.bf16.msra.mxu0 %v1561
    %2032 = vmatprep.subr.bf16.mxu0 %v1554
    %2033 = vmatpush1.bf16.msra.mxu0 %v1553
    %2034 = vmatprep.subr.bf16.mxu0 %v1546
    %2035 = vmatpush1.bf16.msra.mxu0 %v1545
    %2036 = vmatprep.subr.bf16.mxu0 %v1538
    %2037 = vmatpush1.bf16.msra.mxu0 %v1537
    %2038 = vmatprep.subr.bf16.mxu0 %v1530
    %2039 = vmatpush1.bf16.msra.mxu0 %v1529
    %2040 = vmatprep.subr.bf16.mxu0 %v1522
    %2041 = vmatpush1.bf16.msra.mxu0 %v1521
    %2042 = vmatprep.subr.bf16.mxu0 %v1642
    %2043 = vmatpush2.bf16.msra.mxu0 %v1641
    %2044 = vmatprep.subr.bf16.mxu0 %v1634
    %2045 = vmatpush2.bf16.msra.mxu0 %v1633
    %2046 = vmatprep.subr.bf16.mxu0 %v1626
    %2047 = vmatpush2.bf16.msra.mxu0 %v1625
    %2048 = vmatprep.subr.bf16.mxu0 %v1618
    %2049 = vmatpush2.bf16.msra.mxu0 %v1617
    %2050 = vmatprep.subr.bf16.mxu0 %v1610
    %2051 = vmatpush2.bf16.msra.mxu0 %v1609
    %2052 = vmatprep.subr.bf16.mxu0 %v1602
    %2053 = vmatpush2.bf16.msra.mxu0 %v1601
    %2054 = vmatprep.subr.bf16.mxu0 %v1594
    %2055 = vmatpush2.bf16.msra.mxu0 %v1593
    %2056 = vmatprep.subr.bf16.mxu0 %v1586
    %2057 = vmatpush2.bf16.msra.mxu0 %v1585
    %2058 = vmatprep.mubr.bf16.mxu0 %v324
    %2059 = vmatmul.mubr.bf16.gmra.mxu0 %v323
    %v2060 = vpop.f32.mrf.mxu0
    %v2061 = vadd.f32 %v2020, %v2060
    %v2062 = vpop.f32.mrf.mxu0
    %v2063 = vadd.f32 %v2022, %v2062
    %v2064 = vpop.f32.mrf.mxu0
    %v2065 = vpop.f32.mrf.mxu0
    %2066 = vdwg.mxu0
    %2067 = vmatprep.subr.bf16.mxu0 %v1452
    %2068 = vmatpush1.bf16.msra.mxu0 %v1451
    %2069 = vmatprep.subr.bf16.mxu0 %v1444
    %2070 = vmatpush1.bf16.msra.mxu0 %v1443
    %2071 = vmatprep.subr.bf16.mxu0 %v1436
    %2072 = vmatpush1.bf16.msra.mxu0 %v1435
    %2073 = vmatprep.subr.bf16.mxu0 %v1428
    %2074 = vmatpush1.bf16.msra.mxu0 %v1427
    %2075 = vmatprep.subr.bf16.mxu0 %v1420
    %2076 = vmatpush1.bf16.msra.mxu0 %v1419
    %2077 = vmatprep.subr.bf16.mxu0 %v1412
    %2078 = vmatpush1.bf16.msra.mxu0 %v1411
    %2079 = vmatprep.subr.bf16.mxu0 %v1404
    %2080 = vmatpush1.bf16.msra.mxu0 %v1403
    %2081 = vmatprep.subr.bf16.mxu0 %v1396
    %2082 = vmatpush1.bf16.msra.mxu0 %v1395
    %2083 = vmatprep.subr.bf16.mxu0 %v1516
    %2084 = vmatpush2.bf16.msra.mxu0 %v1515
    %2085 = vmatprep.subr.bf16.mxu0 %v1508
    %2086 = vmatpush2.bf16.msra.mxu0 %v1507
    %2087 = vmatprep.subr.bf16.mxu0 %v1500
    %2088 = vmatpush2.bf16.msra.mxu0 %v1499
    %2089 = vmatprep.subr.bf16.mxu0 %v1492
    %2090 = vmatpush2.bf16.msra.mxu0 %v1491
    %2091 = vmatprep.subr.bf16.mxu0 %v1484
    %2092 = vmatpush2.bf16.msra.mxu0 %v1483
    %2093 = vmatprep.subr.bf16.mxu0 %v1476
    %2094 = vmatpush2.bf16.msra.mxu0 %v1475
    %2095 = vmatprep.subr.bf16.mxu0 %v1468
    %2096 = vmatpush2.bf16.msra.mxu0 %v1467
    %2097 = vmatprep.subr.bf16.mxu0 %v1460
    %2098 = vmatpush2.bf16.msra.mxu0 %v1459
    %2099 = vmatprep.mubr.bf16.mxu0 %v322
    %2100 = vmatmul.mubr.bf16.gmra.mxu0 %v321
    %v2101 = vpop.f32.mrf.mxu0
    %v2102 = vadd.f32 %v602, %v2101
    %v2103 = vpop.f32.mrf.mxu0
    %v2104 = vadd.f32 %v606, %v2103
    %v2105 = vpop.f32.mrf.mxu0
    %v2106 = vpop.f32.mrf.mxu0
    %2107 = vdwg.mxu0
    %2108 = vmatprep.subr.bf16.mxu0 %v1580
    %2109 = vmatpush1.bf16.msra.mxu0 %v1579
    %2110 = vmatprep.subr.bf16.mxu0 %v1572
    %2111 = vmatpush1.bf16.msra.mxu0 %v1571
    %2112 = vmatprep.subr.bf16.mxu0 %v1564
    %2113 = vmatpush1.bf16.msra.mxu0 %v1563
    %2114 = vmatprep.subr.bf16.mxu0 %v1556
    %2115 = vmatpush1.bf16.msra.mxu0 %v1555
    %2116 = vmatprep.subr.bf16.mxu0 %v1548
    %2117 = vmatpush1.bf16.msra.mxu0 %v1547
    %2118 = vmatprep.subr.bf16.mxu0 %v1540
    %2119 = vmatpush1.bf16.msra.mxu0 %v1539
    %2120 = vmatprep.subr.bf16.mxu0 %v1532
    %2121 = vmatpush1.bf16.msra.mxu0 %v1531
    %2122 = vmatprep.subr.bf16.mxu0 %v1524
    %2123 = vmatpush1.bf16.msra.mxu0 %v1523
    %2124 = vmatprep.subr.bf16.mxu0 %v1644
    %2125 = vmatpush2.bf16.msra.mxu0 %v1643
    %2126 = vmatprep.subr.bf16.mxu0 %v1636
    %2127 = vmatpush2.bf16.msra.mxu0 %v1635
    %2128 = vmatprep.subr.bf16.mxu0 %v1628
    %2129 = vmatpush2.bf16.msra.mxu0 %v1627
    %2130 = vmatprep.subr.bf16.mxu0 %v1620
    %2131 = vmatpush2.bf16.msra.mxu0 %v1619
    %2132 = vmatprep.subr.bf16.mxu0 %v1612
    %2133 = vmatpush2.bf16.msra.mxu0 %v1611
    %2134 = vmatprep.subr.bf16.mxu0 %v1604
    %2135 = vmatpush2.bf16.msra.mxu0 %v1603
    %2136 = vmatprep.subr.bf16.mxu0 %v1596
    %2137 = vmatpush2.bf16.msra.mxu0 %v1595
    %2138 = vmatprep.subr.bf16.mxu0 %v1588
    %2139 = vmatpush2.bf16.msra.mxu0 %v1587
    %2140 = vmatprep.mubr.bf16.mxu0 %v324
    %2141 = vmatmul.mubr.bf16.gmra.mxu0 %v323
    %v2142 = vpop.f32.mrf.mxu0
    %v2143 = vadd.f32 %v2102, %v2142
    %v2144 = vpop.f32.mrf.mxu0
    %v2145 = vadd.f32 %v2104, %v2144
    %v2146 = vpop.f32.mrf.mxu0
    %v2147 = vpop.f32.mrf.mxu0
    %2148 = vdwg.mxu0
    %2149 = vmatprep.subr.bf16.mxu0 %v1454
    %2150 = vmatpush1.bf16.msra.mxu0 %v1453
    %2151 = vmatprep.subr.bf16.mxu0 %v1446
    %2152 = vmatpush1.bf16.msra.mxu0 %v1445
    %2153 = vmatprep.subr.bf16.mxu0 %v1438
    %2154 = vmatpush1.bf16.msra.mxu0 %v1437
    %2155 = vmatprep.subr.bf16.mxu0 %v1430
    %2156 = vmatpush1.bf16.msra.mxu0 %v1429
    %2157 = vmatprep.subr.bf16.mxu0 %v1422
    %2158 = vmatpush1.bf16.msra.mxu0 %v1421
    %2159 = vmatprep.subr.bf16.mxu0 %v1414
    %2160 = vmatpush1.bf16.msra.mxu0 %v1413
    %2161 = vmatprep.subr.bf16.mxu0 %v1406
    %2162 = vmatpush1.bf16.msra.mxu0 %v1405
    %2163 = vmatprep.subr.bf16.mxu0 %v1398
    %2164 = vmatpush1.bf16.msra.mxu0 %v1397
    %2165 = vmatprep.subr.bf16.mxu0 %v1518
    %2166 = vmatpush2.bf16.msra.mxu0 %v1517
    %2167 = vmatprep.subr.bf16.mxu0 %v1510
    %2168 = vmatpush2.bf16.msra.mxu0 %v1509
    %2169 = vmatprep.subr.bf16.mxu0 %v1502
    %2170 = vmatpush2.bf16.msra.mxu0 %v1501
    %2171 = vmatprep.subr.bf16.mxu0 %v1494
    %2172 = vmatpush2.bf16.msra.mxu0 %v1493
    %2173 = vmatprep.subr.bf16.mxu0 %v1486
    %2174 = vmatpush2.bf16.msra.mxu0 %v1485
    %2175 = vmatprep.subr.bf16.mxu0 %v1478
    %2176 = vmatpush2.bf16.msra.mxu0 %v1477
    %2177 = vmatprep.subr.bf16.mxu0 %v1470
    %2178 = vmatpush2.bf16.msra.mxu0 %v1469
    %2179 = vmatprep.subr.bf16.mxu0 %v1462
    %2180 = vmatpush2.bf16.msra.mxu0 %v1461
    %2181 = vmatprep.mubr.bf16.mxu0 %v322
    %2182 = vmatmul.mubr.bf16.gmra.mxu0 %v321
    %v2183 = vpop.f32.mrf.mxu0
    %v2184 = vadd.f32 %v610, %v2183
    %v2185 = vpop.f32.mrf.mxu0
    %v2186 = vadd.f32 %v614, %v2185
    %v2187 = vpop.f32.mrf.mxu0
    %v2188 = vpop.f32.mrf.mxu0
    %2189 = vdwg.mxu0
    %2190 = vmatprep.subr.bf16.mxu0 %v1582
    %2191 = vmatpush1.bf16.msra.mxu0 %v1581
    %2192 = vmatprep.subr.bf16.mxu0 %v1574
    %2193 = vmatpush1.bf16.msra.mxu0 %v1573
    %2194 = vmatprep.subr.bf16.mxu0 %v1566
    %2195 = vmatpush1.bf16.msra.mxu0 %v1565
    %2196 = vmatprep.subr.bf16.mxu0 %v1558
    %2197 = vmatpush1.bf16.msra.mxu0 %v1557
    %2198 = vmatprep.subr.bf16.mxu0 %v1550
    %2199 = vmatpush1.bf16.msra.mxu0 %v1549
    %2200 = vmatprep.subr.bf16.mxu0 %v1542
    %2201 = vmatpush1.bf16.msra.mxu0 %v1541
    %2202 = vmatprep.subr.bf16.mxu0 %v1534
    %2203 = vmatpush1.bf16.msra.mxu0 %v1533
    %2204 = vmatprep.subr.bf16.mxu0 %v1526
    %2205 = vmatpush1.bf16.msra.mxu0 %v1525
    %2206 = vmatprep.subr.bf16.mxu0 %v1646
    %2207 = vmatpush2.bf16.msra.mxu0 %v1645
    %2208 = vmatprep.subr.bf16.mxu0 %v1638
    %2209 = vmatpush2.bf16.msra.mxu0 %v1637
    %2210 = vmatprep.subr.bf16.mxu0 %v1630
    %2211 = vmatpush2.bf16.msra.mxu0 %v1629
    %2212 = vmatprep.subr.bf16.mxu0 %v1622
    %2213 = vmatpush2.bf16.msra.mxu0 %v1621
    %2214 = vmatprep.subr.bf16.mxu0 %v1614
    %2215 = vmatpush2.bf16.msra.mxu0 %v1613
    %2216 = vmatprep.subr.bf16.mxu0 %v1606
    %2217 = vmatpush2.bf16.msra.mxu0 %v1605
    %2218 = vmatprep.subr.bf16.mxu0 %v1598
    %2219 = vmatpush2.bf16.msra.mxu0 %v1597
    %2220 = vmatprep.subr.bf16.mxu0 %v1590
    %2221 = vmatpush2.bf16.msra.mxu0 %v1589
    %2222 = vmatprep.mubr.bf16.mxu0 %v324
    %2223 = vmatmul.mubr.bf16.gmra.mxu0 %v323
    %v2224 = vpop.f32.mrf.mxu0
    %v2225 = vadd.f32 %v2184, %v2224
    %v2226 = vpop.f32.mrf.mxu0
    %v2227 = vadd.f32 %v2186, %v2226
    %v2228 = vpop.f32.mrf.mxu0
    %v2229 = vpop.f32.mrf.mxu0
    %2230 = vdwg.mxu0
    %v2231 = vmax.f32 %v1979, 0.0
    %v2232 = vmax.f32 %v1981, 0.0
    %v2233 = vmax.f32 %v2061, 0.0
    %v2234 = vmax.f32 %v2063, 0.0
    %v2235 = vmax.f32 %v2143, 0.0
    %v2236 = vmax.f32 %v2145, 0.0
    %v2237 = vmax.f32 %v2225, 0.0
    %v2238 = vmax.f32 %v2227, 0.0
    %v2239 = vpack.c.bf16 %v2231, %v2231
    %v2240 = vpack.c.bf16 %v2232, %v2232
    %v2241 = vpack.c.bf16 %v2233, %v2233
    %v2242 = vpack.c.bf16 %v2234, %v2234
    %v2243 = vpack.c.bf16 %v2235, %v2235
    %v2244 = vpack.c.bf16 %v2236, %v2236
    %v2245 = vpack.c.bf16 %v2237, %v2237
    %v2246 = vpack.c.bf16 %v2238, %v2238
    %v2247 = vld [vmem:[#allocation10] sm:$0xf]
    %v2248 = vld [vmem:[#allocation10 + $0x4] sm:$0xf]
    %v2249 = vld [vmem:[#allocation10 + $0x8] sm:$0xf]
    %v2250 = vld [vmem:[#allocation10 + $0xc] sm:$0xf]
    %v2251 = vld [vmem:[#allocation10 + $0x10] sm:$0xf]
    %v2252 = vld [vmem:[#allocation10 + $0x14] sm:$0xf]
    %v2253 = vld [vmem:[#allocation10 + $0x18] sm:$0xf]
    %v2254 = vld [vmem:[#allocation10 + $0x1c] sm:$0xf]
    %v2255 = vld [vmem:[#allocation10 + $0x20] sm:$0xf]
    %v2256 = vld [vmem:[#allocation10 + $0x24] sm:$0xf]
    %v2257 = vld [vmem:[#allocation10 + $0x28] sm:$0xf]
    %v2258 = vld [vmem:[#allocation10 + $0x2c] sm:$0xf]
    %v2259 = vld [vmem:[#allocation10 + $0x30] sm:$0xf]
    %v2260 = vld [vmem:[#allocation10 + $0x34] sm:$0xf]
    %v2261 = vld [vmem:[#allocation10 + $0x38] sm:$0xf]
    %v2262 = vld [vmem:[#allocation10 + $0x3c] sm:$0xf]
    %v2263 = vld [vmem:[#allocation10 + $0x40] sm:$0xf]
    %v2264 = vld [vmem:[#allocation10 + $0x44] sm:$0xf]
    %v2265 = vld [vmem:[#allocation10 + $0x48] sm:$0xf]
    %v2266 = vld [vmem:[#allocation10 + $0x4c] sm:$0xf]
    %v2267 = vld [vmem:[#allocation10 + $0x50] sm:$0xf]
    %v2268 = vld [vmem:[#allocation10 + $0x54] sm:$0xf]
    %v2269 = vld [vmem:[#allocation10 + $0x58] sm:$0xf]
    %v2270 = vld [vmem:[#allocation10 + $0x5c] sm:$0xf]
    %v2271 = vld [vmem:[#allocation10 + $0x60] sm:$0xf]
    %v2272 = vld [vmem:[#allocation10 + $0x64] sm:$0xf]
    %v2273 = vld [vmem:[#allocation10 + $0x68] sm:$0xf]
    %v2274 = vld [vmem:[#allocation10 + $0x6c] sm:$0xf]
    %v2275 = vld [vmem:[#allocation10 + $0x70] sm:$0xf]
    %v2276 = vld [vmem:[#allocation10 + $0x74] sm:$0xf]
    %v2277 = vld [vmem:[#allocation10 + $0x78] sm:$0xf]
    %v2278 = vld [vmem:[#allocation10 + $0x7c] sm:$0xf]
    %v2279 = vld [vmem:[#allocation10 + $0x80] sm:$0xf]
    %v2280 = vld [vmem:[#allocation10 + $0x84] sm:$0xf]
    %v2281 = vld [vmem:[#allocation10 + $0x88] sm:$0xf]
    %v2282 = vld [vmem:[#allocation10 + $0x8c] sm:$0xf]
    %v2283 = vld [vmem:[#allocation10 + $0x90] sm:$0xf]
    %v2284 = vld [vmem:[#allocation10 + $0x94] sm:$0xf]
    %v2285 = vld [vmem:[#allocation10 + $0x98] sm:$0xf]
    %v2286 = vld [vmem:[#allocation10 + $0x9c] sm:$0xf]
    %v2287 = vld [vmem:[#allocation10 + $0xa0] sm:$0xf]
    %v2288 = vld [vmem:[#allocation10 + $0xa4] sm:$0xf]
    %v2289 = vld [vmem:[#allocation10 + $0xa8] sm:$0xf]
    %v2290 = vld [vmem:[#allocation10 + $0xac] sm:$0xf]
    %v2291 = vld [vmem:[#allocation10 + $0xb0] sm:$0xf]
    %v2292 = vld [vmem:[#allocation10 + $0xb4] sm:$0xf]
    %v2293 = vld [vmem:[#allocation10 + $0xb8] sm:$0xf]
    %v2294 = vld [vmem:[#allocation10 + $0xbc] sm:$0xf]
    %v2295 = vld [vmem:[#allocation10 + $0xc0] sm:$0xf]
    %v2296 = vld [vmem:[#allocation10 + $0xc4] sm:$0xf]
    %v2297 = vld [vmem:[#allocation10 + $0xc8] sm:$0xf]
    %v2298 = vld [vmem:[#allocation10 + $0xcc] sm:$0xf]
    %v2299 = vld [vmem:[#allocation10 + $0xd0] sm:$0xf]
    %v2300 = vld [vmem:[#allocation10 + $0xd4] sm:$0xf]
    %v2301 = vld [vmem:[#allocation10 + $0xd8] sm:$0xf]
    %v2302 = vld [vmem:[#allocation10 + $0xdc] sm:$0xf]
    %v2303 = vld [vmem:[#allocation10 + $0xe0] sm:$0xf]
    %v2304 = vld [vmem:[#allocation10 + $0xe4] sm:$0xf]
    %v2305 = vld [vmem:[#allocation10 + $0xe8] sm:$0xf]
    %v2306 = vld [vmem:[#allocation10 + $0xec] sm:$0xf]
    %v2307 = vld [vmem:[#allocation10 + $0xf0] sm:$0xf]
    %v2308 = vld [vmem:[#allocation10 + $0xf4] sm:$0xf]
    %v2309 = vld [vmem:[#allocation10 + $0xf8] sm:$0xf]
    %v2310 = vld [vmem:[#allocation10 + $0xfc] sm:$0xf]
    %v2311 = vld [vmem:[#allocation10 + $0x100] sm:$0xf]
    %v2312 = vld [vmem:[#allocation10 + $0x104] sm:$0xf]
    %v2313 = vld [vmem:[#allocation10 + $0x108] sm:$0xf]
    %v2314 = vld [vmem:[#allocation10 + $0x10c] sm:$0xf]
    %v2315 = vld [vmem:[#allocation10 + $0x110] sm:$0xf]
    %v2316 = vld [vmem:[#allocation10 + $0x114] sm:$0xf]
    %v2317 = vld [vmem:[#allocation10 + $0x118] sm:$0xf]
    %v2318 = vld [vmem:[#allocation10 + $0x11c] sm:$0xf]
    %v2319 = vld [vmem:[#allocation10 + $0x120] sm:$0xf]
    %v2320 = vld [vmem:[#allocation10 + $0x124] sm:$0xf]
    %v2321 = vld [vmem:[#allocation10 + $0x128] sm:$0xf]
    %v2322 = vld [vmem:[#allocation10 + $0x12c] sm:$0xf]
    %v2323 = vld [vmem:[#allocation10 + $0x130] sm:$0xf]
    %v2324 = vld [vmem:[#allocation10 + $0x134] sm:$0xf]
    %v2325 = vld [vmem:[#allocation10 + $0x138] sm:$0xf]
    %v2326 = vld [vmem:[#allocation10 + $0x13c] sm:$0xf]
    %v2327 = vld [vmem:[#allocation10 + $0x140] sm:$0xf]
    %v2328 = vld [vmem:[#allocation10 + $0x144] sm:$0xf]
    %v2329 = vld [vmem:[#allocation10 + $0x148] sm:$0xf]
    %v2330 = vld [vmem:[#allocation10 + $0x14c] sm:$0xf]
    %v2331 = vld [vmem:[#allocation10 + $0x150] sm:$0xf]
    %v2332 = vld [vmem:[#allocation10 + $0x154] sm:$0xf]
    %v2333 = vld [vmem:[#allocation10 + $0x158] sm:$0xf]
    %v2334 = vld [vmem:[#allocation10 + $0x15c] sm:$0xf]
    %v2335 = vld [vmem:[#allocation10 + $0x160] sm:$0xf]
    %v2336 = vld [vmem:[#allocation10 + $0x164] sm:$0xf]
    %v2337 = vld [vmem:[#allocation10 + $0x168] sm:$0xf]
    %v2338 = vld [vmem:[#allocation10 + $0x16c] sm:$0xf]
    %v2339 = vld [vmem:[#allocation10 + $0x170] sm:$0xf]
    %v2340 = vld [vmem:[#allocation10 + $0x174] sm:$0xf]
    %v2341 = vld [vmem:[#allocation10 + $0x178] sm:$0xf]
    %v2342 = vld [vmem:[#allocation10 + $0x17c] sm:$0xf]
    %v2343 = vld [vmem:[#allocation10 + $0x180] sm:$0xf]
    %v2344 = vld [vmem:[#allocation10 + $0x184] sm:$0xf]
    %v2345 = vld [vmem:[#allocation10 + $0x188] sm:$0xf]
    %v2346 = vld [vmem:[#allocation10 + $0x18c] sm:$0xf]
    %v2347 = vld [vmem:[#allocation10 + $0x190] sm:$0xf]
    %v2348 = vld [vmem:[#allocation10 + $0x194] sm:$0xf]
    %v2349 = vld [vmem:[#allocation10 + $0x198] sm:$0xf]
    %v2350 = vld [vmem:[#allocation10 + $0x19c] sm:$0xf]
    %v2351 = vld [vmem:[#allocation10 + $0x1a0] sm:$0xf]
    %v2352 = vld [vmem:[#allocation10 + $0x1a4] sm:$0xf]
    %v2353 = vld [vmem:[#allocation10 + $0x1a8] sm:$0xf]
    %v2354 = vld [vmem:[#allocation10 + $0x1ac] sm:$0xf]
    %v2355 = vld [vmem:[#allocation10 + $0x1b0] sm:$0xf]
    %v2356 = vld [vmem:[#allocation10 + $0x1b4] sm:$0xf]
    %v2357 = vld [vmem:[#allocation10 + $0x1b8] sm:$0xf]
    %v2358 = vld [vmem:[#allocation10 + $0x1bc] sm:$0xf]
    %v2359 = vld [vmem:[#allocation10 + $0x1c0] sm:$0xf]
    %v2360 = vld [vmem:[#allocation10 + $0x1c4] sm:$0xf]
    %v2361 = vld [vmem:[#allocation10 + $0x1c8] sm:$0xf]
    %v2362 = vld [vmem:[#allocation10 + $0x1cc] sm:$0xf]
    %v2363 = vld [vmem:[#allocation10 + $0x1d0] sm:$0xf]
    %v2364 = vld [vmem:[#allocation10 + $0x1d4] sm:$0xf]
    %v2365 = vld [vmem:[#allocation10 + $0x1d8] sm:$0xf]
    %v2366 = vld [vmem:[#allocation10 + $0x1dc] sm:$0xf]
    %v2367 = vld [vmem:[#allocation10 + $0x1e0] sm:$0xf]
    %v2368 = vld [vmem:[#allocation10 + $0x1e4] sm:$0xf]
    %v2369 = vld [vmem:[#allocation10 + $0x1e8] sm:$0xf]
    %v2370 = vld [vmem:[#allocation10 + $0x1ec] sm:$0xf]
    %v2371 = vld [vmem:[#allocation10 + $0x1f0] sm:$0xf]
    %v2372 = vld [vmem:[#allocation10 + $0x1f4] sm:$0xf]
    %v2373 = vld [vmem:[#allocation10 + $0x1f8] sm:$0xf]
    %v2374 = vld [vmem:[#allocation10 + $0x1fc] sm:$0xf]
    %v2375 = vld [vmem:[%s8] sm:$0x1]
    %v2377 = vlaneseq
    %v2378 = vshrl.u32 %v2377, 7
    %v2379 = vsub.s32 0, %v2378
    %v2380 = vrot.slane %v2375, %v2379
    %v2510 = vunpack.c.l.b16 %v2247
    %v2511 = vunpack.c.l.b16 %v2248
    %v2512 = vunpack.c.l.b16 %v2249
    %v2513 = vunpack.c.l.b16 %v2250
    %v2514 = vunpack.c.l.b16 %v2251
    %v2515 = vunpack.c.l.b16 %v2252
    %v2516 = vunpack.c.l.b16 %v2253
    %v2517 = vunpack.c.l.b16 %v2254
    %v2518 = vunpack.c.l.b16 %v2255
    %v2519 = vunpack.c.l.b16 %v2256
    %v2520 = vunpack.c.l.b16 %v2257
    %v2521 = vunpack.c.l.b16 %v2258
    %v2522 = vunpack.c.l.b16 %v2259
    %v2523 = vunpack.c.l.b16 %v2260
    %v2524 = vunpack.c.l.b16 %v2261
    %v2525 = vunpack.c.l.b16 %v2262
    %v2526 = vunpack.c.l.b16 %v2263
    %v2527 = vunpack.c.l.b16 %v2264
    %v2528 = vunpack.c.l.b16 %v2265
    %v2529 = vunpack.c.l.b16 %v2266
    %v2530 = vunpack.c.l.b16 %v2267
    %v2531 = vunpack.c.l.b16 %v2268
    %v2532 = vunpack.c.l.b16 %v2269
    %v2533 = vunpack.c.l.b16 %v2270
    %v2534 = vunpack.c.l.b16 %v2271
    %v2535 = vunpack.c.l.b16 %v2272
    %v2536 = vunpack.c.l.b16 %v2273
    %v2537 = vunpack.c.l.b16 %v2274
    %v2538 = vunpack.c.l.b16 %v2275
    %v2539 = vunpack.c.l.b16 %v2276
    %v2540 = vunpack.c.l.b16 %v2277
    %v2541 = vunpack.c.l.b16 %v2278
    %v2542 = vunpack.c.l.b16 %v2279
    %v2543 = vunpack.c.l.b16 %v2280
    %v2544 = vunpack.c.l.b16 %v2281
    %v2545 = vunpack.c.l.b16 %v2282
    %v2546 = vunpack.c.l.b16 %v2283
    %v2547 = vunpack.c.l.b16 %v2284
    %v2548 = vunpack.c.l.b16 %v2285
    %v2549 = vunpack.c.l.b16 %v2286
    %v2550 = vunpack.c.l.b16 %v2287
    %v2551 = vunpack.c.l.b16 %v2288
    %v2552 = vunpack.c.l.b16 %v2289
    %v2553 = vunpack.c.l.b16 %v2290
    %v2554 = vunpack.c.l.b16 %v2291
    %v2555 = vunpack.c.l.b16 %v2292
    %v2556 = vunpack.c.l.b16 %v2293
    %v2557 = vunpack.c.l.b16 %v2294
    %v2558 = vunpack.c.l.b16 %v2295
    %v2559 = vunpack.c.l.b16 %v2296
    %v2560 = vunpack.c.l.b16 %v2297
    %v2561 = vunpack.c.l.b16 %v2298
    %v2562 = vunpack.c.l.b16 %v2299
    %v2563 = vunpack.c.l.b16 %v2300
    %v2564 = vunpack.c.l.b16 %v2301
    %v2565 = vunpack.c.l.b16 %v2302
    %v2566 = vunpack.c.l.b16 %v2303
    %v2567 = vunpack.c.l.b16 %v2304
    %v2568 = vunpack.c.l.b16 %v2305
    %v2569 = vunpack.c.l.b16 %v2306
    %v2570 = vunpack.c.l.b16 %v2307
    %v2571 = vunpack.c.l.b16 %v2308
    %v2572 = vunpack.c.l.b16 %v2309
    %v2573 = vunpack.c.l.b16 %v2310
    %v2574 = vunpack.c.l.b16 %v2311
    %v2575 = vunpack.c.l.b16 %v2312
    %v2576 = vunpack.c.l.b16 %v2313
    %v2577 = vunpack.c.l.b16 %v2314
    %v2578 = vunpack.c.l.b16 %v2315
    %v2579 = vunpack.c.l.b16 %v2316
    %v2580 = vunpack.c.l.b16 %v2317
    %v2581 = vunpack.c.l.b16 %v2318
    %v2582 = vunpack.c.l.b16 %v2319
    %v2583 = vunpack.c.l.b16 %v2320
    %v2584 = vunpack.c.l.b16 %v2321
    %v2585 = vunpack.c.l.b16 %v2322
    %v2586 = vunpack.c.l.b16 %v2323
    %v2587 = vunpack.c.l.b16 %v2324
    %v2588 = vunpack.c.l.b16 %v2325
    %v2589 = vunpack.c.l.b16 %v2326
    %v2590 = vunpack.c.l.b16 %v2327
    %v2591 = vunpack.c.l.b16 %v2328
    %v2592 = vunpack.c.l.b16 %v2329
    %v2593 = vunpack.c.l.b16 %v2330
    %v2594 = vunpack.c.l.b16 %v2331
    %v2595 = vunpack.c.l.b16 %v2332
    %v2596 = vunpack.c.l.b16 %v2333
    %v2597 = vunpack.c.l.b16 %v2334
    %v2598 = vunpack.c.l.b16 %v2335
    %v2599 = vunpack.c.l.b16 %v2336
    %v2600 = vunpack.c.l.b16 %v2337
    %v2601 = vunpack.c.l.b16 %v2338
    %v2602 = vunpack.c.l.b16 %v2339
    %v2603 = vunpack.c.l.b16 %v2340
    %v2604 = vunpack.c.l.b16 %v2341
    %v2605 = vunpack.c.l.b16 %v2342
    %v2606 = vunpack.c.l.b16 %v2343
    %v2607 = vunpack.c.l.b16 %v2344
    %v2608 = vunpack.c.l.b16 %v2345
    %v2609 = vunpack.c.l.b16 %v2346
    %v2610 = vunpack.c.l.b16 %v2347
    %v2611 = vunpack.c.l.b16 %v2348
    %v2612 = vunpack.c.l.b16 %v2349
    %v2613 = vunpack.c.l.b16 %v2350
    %v2614 = vunpack.c.l.b16 %v2351
    %v2615 = vunpack.c.l.b16 %v2352
    %v2616 = vunpack.c.l.b16 %v2353
    %v2617 = vunpack.c.l.b16 %v2354
    %v2618 = vunpack.c.l.b16 %v2355
    %v2619 = vunpack.c.l.b16 %v2356
    %v2620 = vunpack.c.l.b16 %v2357
    %v2621 = vunpack.c.l.b16 %v2358
    %v2622 = vunpack.c.l.b16 %v2359
    %v2623 = vunpack.c.l.b16 %v2360
    %v2624 = vunpack.c.l.b16 %v2361
    %v2625 = vunpack.c.l.b16 %v2362
    %v2626 = vunpack.c.l.b16 %v2363
    %v2627 = vunpack.c.l.b16 %v2364
    %v2628 = vunpack.c.l.b16 %v2365
    %v2629 = vunpack.c.l.b16 %v2366
    %v2630 = vunpack.c.l.b16 %v2367
    %v2631 = vunpack.c.l.b16 %v2368
    %v2632 = vunpack.c.l.b16 %v2369
    %v2633 = vunpack.c.l.b16 %v2370
    %v2634 = vunpack.c.l.b16 %v2371
    %v2635 = vunpack.c.l.b16 %v2372
    %v2636 = vunpack.c.l.b16 %v2373
    %v2637 = vunpack.c.l.b16 %v2374
    %v2638 = vpack.c.b16 %v2511, %v2510
    %v2639 = vpack.c.b16 %v2513, %v2512
    %v2640 = vpack.c.b16 %v2515, %v2514
    %v2641 = vpack.c.b16 %v2517, %v2516
    %v2642 = vpack.c.b16 %v2519, %v2518
    %v2643 = vpack.c.b16 %v2521, %v2520
    %v2644 = vpack.c.b16 %v2523, %v2522
    %v2645 = vpack.c.b16 %v2525, %v2524
    %v2646 = vpack.c.b16 %v2527, %v2526
    %v2647 = vpack.c.b16 %v2529, %v2528
    %v2648 = vpack.c.b16 %v2531, %v2530
    %v2649 = vpack.c.b16 %v2533, %v2532
    %v2650 = vpack.c.b16 %v2535, %v2534
    %v2651 = vpack.c.b16 %v2537, %v2536
    %v2652 = vpack.c.b16 %v2539, %v2538
    %v2653 = vpack.c.b16 %v2541, %v2540
    %v2654 = vpack.c.b16 %v2543, %v2542
    %v2655 = vpack.c.b16 %v2545, %v2544
    %v2656 = vpack.c.b16 %v2547, %v2546
    %v2657 = vpack.c.b16 %v2549, %v2548
    %v2658 = vpack.c.b16 %v2551, %v2550
    %v2659 = vpack.c.b16 %v2553, %v2552
    %v2660 = vpack.c.b16 %v2555, %v2554
    %v2661 = vpack.c.b16 %v2557, %v2556
    %v2662 = vpack.c.b16 %v2559, %v2558
    %v2663 = vpack.c.b16 %v2561, %v2560
    %v2664 = vpack.c.b16 %v2563, %v2562
    %v2665 = vpack.c.b16 %v2565, %v2564
    %v2666 = vpack.c.b16 %v2567, %v2566
    %v2667 = vpack.c.b16 %v2569, %v2568
    %v2668 = vpack.c.b16 %v2571, %v2570
    %v2669 = vpack.c.b16 %v2573, %v2572
    %v2670 = vpack.c.b16 %v2575, %v2574
    %v2671 = vpack.c.b16 %v2577, %v2576
    %v2672 = vpack.c.b16 %v2579, %v2578
    %v2673 = vpack.c.b16 %v2581, %v2580
    %v2674 = vpack.c.b16 %v2583, %v2582
    %v2675 = vpack.c.b16 %v2585, %v2584
    %v2676 = vpack.c.b16 %v2587, %v2586
    %v2677 = vpack.c.b16 %v2589, %v2588
    %v2678 = vpack.c.b16 %v2591, %v2590
    %v2679 = vpack.c.b16 %v2593, %v2592
    %v2680 = vpack.c.b16 %v2595, %v2594
    %v2681 = vpack.c.b16 %v2597, %v2596
    %v2682 = vpack.c.b16 %v2599, %v2598
    %v2683 = vpack.c.b16 %v2601, %v2600
    %v2684 = vpack.c.b16 %v2603, %v2602
    %v2685 = vpack.c.b16 %v2605, %v2604
    %v2686 = vpack.c.b16 %v2607, %v2606
    %v2687 = vpack.c.b16 %v2609, %v2608
    %v2688 = vpack.c.b16 %v2611, %v2610
    %v2689 = vpack.c.b16 %v2613, %v2612
    %v2690 = vpack.c.b16 %v2615, %v2614
    %v2691 = vpack.c.b16 %v2617, %v2616
    %v2692 = vpack.c.b16 %v2619, %v2618
    %v2693 = vpack.c.b16 %v2621, %v2620
    %v2694 = vpack.c.b16 %v2623, %v2622
    %v2695 = vpack.c.b16 %v2625, %v2624
    %v2696 = vpack.c.b16 %v2627, %v2626
    %v2697 = vpack.c.b16 %v2629, %v2628
    %v2698 = vpack.c.b16 %v2631, %v2630
    %v2699 = vpack.c.b16 %v2633, %v2632
    %v2700 = vpack.c.b16 %v2635, %v2634
    %v2701 = vpack.c.b16 %v2637, %v2636
    %2766 = vmatprep.subr.bf16.mxu0 0
    %2767 = vmatpush1.bf16.msra.mxu0 %v2645
    %2768 = vmatprep.subr.bf16.mxu0 0
    %2769 = vmatpush1.bf16.msra.mxu0 %v2644
    %2770 = vmatprep.subr.bf16.mxu0 0
    %2771 = vmatpush1.bf16.msra.mxu0 %v2643
    %2772 = vmatprep.subr.bf16.mxu0 0
    %2773 = vmatpush1.bf16.msra.mxu0 %v2642
    %2774 = vmatprep.subr.bf16.mxu0 0
    %2775 = vmatpush1.bf16.msra.mxu0 %v2641
    %2776 = vmatprep.subr.bf16.mxu0 0
    %2777 = vmatpush1.bf16.msra.mxu0 %v2640
    %2778 = vmatprep.subr.bf16.mxu0 0
    %2779 = vmatpush1.bf16.msra.mxu0 %v2639
    %2780 = vmatprep.subr.bf16.mxu0 0
    %2781 = vmatpush1.bf16.msra.mxu0 %v2638
    %2782 = vmatprep.subr.bf16.mxu0 0
    %2783 = vmatpush2.bf16.msra.mxu0 %v2653
    %2784 = vmatprep.subr.bf16.mxu0 0
    %2785 = vmatpush2.bf16.msra.mxu0 %v2652
    %2786 = vmatprep.subr.bf16.mxu0 0
    %2787 = vmatpush2.bf16.msra.mxu0 %v2651
    %2788 = vmatprep.subr.bf16.mxu0 0
    %2789 = vmatpush2.bf16.msra.mxu0 %v2650
    %2790 = vmatprep.subr.bf16.mxu0 0
    %2791 = vmatpush2.bf16.msra.mxu0 %v2649
    %2792 = vmatprep.subr.bf16.mxu0 0
    %2793 = vmatpush2.bf16.msra.mxu0 %v2648
    %2794 = vmatprep.subr.bf16.mxu0 0
    %2795 = vmatpush2.bf16.msra.mxu0 %v2647
    %2796 = vmatprep.subr.bf16.mxu0 0
    %2797 = vmatpush2.bf16.msra.mxu0 %v2646
    %2798 = vmatprep.mubr.bf16.mxu0 %v2240
    %2799 = vmatmul.mubr.bf16.gmra.mxu0 %v2239
    %v2800 = vpop.f32.mrf.mxu0
    %v2801 = vadd.f32 %v2380, %v2800
    %v2802 = vpop.f32.mrf.mxu0
    %v2803 = vpop.f32.mrf.mxu0
    %v2804 = vpop.f32.mrf.mxu0
    %2805 = vdwg.mxu0
    %2806 = vmatprep.subr.bf16.mxu0 0
    %2807 = vmatpush1.bf16.msra.mxu0 %v2661
    %2808 = vmatprep.subr.bf16.mxu0 0
    %2809 = vmatpush1.bf16.msra.mxu0 %v2660
    %2810 = vmatprep.subr.bf16.mxu0 0
    %2811 = vmatpush1.bf16.msra.mxu0 %v2659
    %2812 = vmatprep.subr.bf16.mxu0 0
    %2813 = vmatpush1.bf16.msra.mxu0 %v2658
    %2814 = vmatprep.subr.bf16.mxu0 0
    %2815 = vmatpush1.bf16.msra.mxu0 %v2657
    %2816 = vmatprep.subr.bf16.mxu0 0
    %2817 = vmatpush1.bf16.msra.mxu0 %v2656
    %2818 = vmatprep.subr.bf16.mxu0 0
    %2819 = vmatpush1.bf16.msra.mxu0 %v2655
    %2820 = vmatprep.subr.bf16.mxu0 0
    %2821 = vmatpush1.bf16.msra.mxu0 %v2654
    %2822 = vmatprep.subr.bf16.mxu0 0
    %2823 = vmatpush2.bf16.msra.mxu0 %v2669
    %2824 = vmatprep.subr.bf16.mxu0 0
    %2825 = vmatpush2.bf16.msra.mxu0 %v2668
    %2826 = vmatprep.subr.bf16.mxu0 0
    %2827 = vmatpush2.bf16.msra.mxu0 %v2667
    %2828 = vmatprep.subr.bf16.mxu0 0
    %2829 = vmatpush2.bf16.msra.mxu0 %v2666
    %2830 = vmatprep.subr.bf16.mxu0 0
    %2831 = vmatpush2.bf16.msra.mxu0 %v2665
    %2832 = vmatprep.subr.bf16.mxu0 0
    %2833 = vmatpush2.bf16.msra.mxu0 %v2664
    %2834 = vmatprep.subr.bf16.mxu0 0
    %2835 = vmatpush2.bf16.msra.mxu0 %v2663
    %2836 = vmatprep.subr.bf16.mxu0 0
    %2837 = vmatpush2.bf16.msra.mxu0 %v2662
    %2838 = vmatprep.mubr.bf16.mxu0 %v2242
    %2839 = vmatmul.mubr.bf16.gmra.mxu0 %v2241
    %v2840 = vpop.f32.mrf.mxu0
    %v2841 = vadd.f32 %v2801, %v2840
    %v2842 = vpop.f32.mrf.mxu0
    %v2843 = vpop.f32.mrf.mxu0
    %v2844 = vpop.f32.mrf.mxu0
    %2845 = vdwg.mxu0
    %2846 = vmatprep.subr.bf16.mxu0 0
    %2847 = vmatpush1.bf16.msra.mxu0 %v2677
    %2848 = vmatprep.subr.bf16.mxu0 0
    %2849 = vmatpush1.bf16.msra.mxu0 %v2676
    %2850 = vmatprep.subr.bf16.mxu0 0
    %2851 = vmatpush1.bf16.msra.mxu0 %v2675
    %2852 = vmatprep.subr.bf16.mxu0 0
    %2853 = vmatpush1.bf16.msra.mxu0 %v2674
    %2854 = vmatprep.subr.bf16.mxu0 0
    %2855 = vmatpush1.bf16.msra.mxu0 %v2673
    %2856 = vmatprep.subr.bf16.mxu0 0
    %2857 = vmatpush1.bf16.msra.mxu0 %v2672
    %2858 = vmatprep.subr.bf16.mxu0 0
    %2859 = vmatpush1.bf16.msra.mxu0 %v2671
    %2860 = vmatprep.subr.bf16.mxu0 0
    %2861 = vmatpush1.bf16.msra.mxu0 %v2670
    %2862 = vmatprep.subr.bf16.mxu0 0
    %2863 = vmatpush2.bf16.msra.mxu0 %v2685
    %2864 = vmatprep.subr.bf16.mxu0 0
    %2865 = vmatpush2.bf16.msra.mxu0 %v2684
    %2866 = vmatprep.subr.bf16.mxu0 0
    %2867 = vmatpush2.bf16.msra.mxu0 %v2683
    %2868 = vmatprep.subr.bf16.mxu0 0
    %2869 = vmatpush2.bf16.msra.mxu0 %v2682
    %2870 = vmatprep.subr.bf16.mxu0 0
    %2871 = vmatpush2.bf16.msra.mxu0 %v2681
    %2872 = vmatprep.subr.bf16.mxu0 0
    %2873 = vmatpush2.bf16.msra.mxu0 %v2680
    %2874 = vmatprep.subr.bf16.mxu0 0
    %2875 = vmatpush2.bf16.msra.mxu0 %v2679
    %2876 = vmatprep.subr.bf16.mxu0 0
    %2877 = vmatpush2.bf16.msra.mxu0 %v2678
    %2878 = vmatprep.mubr.bf16.mxu0 %v2244
    %2879 = vmatmul.mubr.bf16.gmra.mxu0 %v2243
    %v2880 = vpop.f32.mrf.mxu0
    %v2881 = vadd.f32 %v2841, %v2880
    %v2882 = vpop.f32.mrf.mxu0
    %v2883 = vpop.f32.mrf.mxu0
    %v2884 = vpop.f32.mrf.mxu0
    %2885 = vdwg.mxu0
    %2886 = vmatprep.subr.bf16.mxu0 0
    %2887 = vmatpush1.bf16.msra.mxu0 %v2693
    %2888 = vmatprep.subr.bf16.mxu0 0
    %2889 = vmatpush1.bf16.msra.mxu0 %v2692
    %2890 = vmatprep.subr.bf16.mxu0 0
    %2891 = vmatpush1.bf16.msra.mxu0 %v2691
    %2892 = vmatprep.subr.bf16.mxu0 0
    %2893 = vmatpush1.bf16.msra.mxu0 %v2690
    %2894 = vmatprep.subr.bf16.mxu0 0
    %2895 = vmatpush1.bf16.msra.mxu0 %v2689
    %2896 = vmatprep.subr.bf16.mxu0 0
    %2897 = vmatpush1.bf16.msra.mxu0 %v2688
    %2898 = vmatprep.subr.bf16.mxu0 0
    %2899 = vmatpush1.bf16.msra.mxu0 %v2687
    %2900 = vmatprep.subr.bf16.mxu0 0
    %2901 = vmatpush1.bf16.msra.mxu0 %v2686
    %2902 = vmatprep.subr.bf16.mxu0 0
    %2903 = vmatpush2.bf16.msra.mxu0 %v2701
    %2904 = vmatprep.subr.bf16.mxu0 0
    %2905 = vmatpush2.bf16.msra.mxu0 %v2700
    %2906 = vmatprep.subr.bf16.mxu0 0
    %2907 = vmatpush2.bf16.msra.mxu0 %v2699
    %2908 = vmatprep.subr.bf16.mxu0 0
    %2909 = vmatpush2.bf16.msra.mxu0 %v2698
    %2910 = vmatprep.subr.bf16.mxu0 0
    %2911 = vmatpush2.bf16.msra.mxu0 %v2697
    %2912 = vmatprep.subr.bf16.mxu0 0
    %2913 = vmatpush2.bf16.msra.mxu0 %v2696
    %2914 = vmatprep.subr.bf16.mxu0 0
    %2915 = vmatpush2.bf16.msra.mxu0 %v2695
    %2916 = vmatprep.subr.bf16.mxu0 0
    %2917 = vmatpush2.bf16.msra.mxu0 %v2694
    %2918 = vmatprep.mubr.bf16.mxu0 %v2246
    %2919 = vmatmul.mubr.bf16.gmra.mxu0 %v2245
    %v2920 = vpop.f32.mrf.mxu0
    %v2921 = vadd.f32 %v2881, %v2920
    %v2922 = vpop.f32.mrf.mxu0
    %v2923 = vpop.f32.mrf.mxu0
    %v2924 = vpop.f32.mrf.mxu0
    %2925 = vdwg.mxu0
    %2926 = vst [vmem:[#allocation11] sm:$0xff] %v2921
    // Predicated region
    $region58: #{tpu_custom_call.1} parent=1 // pred_check
      _
    $region59: #{tpu_custom_call.1} parent=1 // pred_check_branch
      %2928 = sbr.rel (0) target = $region61
    $region60: #{tpu_custom_call.1} parent=1 // pred_region
      %s2930 = ssub.s32 128, 128
      %2931 = vsyncadd [#allocation4], %s2930
      %s2933 = sshll.u32 [#allocation11], 4
      %s2934 = int_to_ptr.vmem [resolvable:$true] %s2933
      %2936 = dma.vmem_to_hbm [thread:$0]  %s2934, 128, %s9, [#allocation4]
    $region61: #{tpu_custom_call.1} parent=1 // pred_fallthru
      _
    // Predicated region
    $region62: #{tpu_custom_call.1} parent=1 // pred_check
      _
    $region63: #{tpu_custom_call.1} parent=1 // pred_check_branch
      %2938 = sbr.rel (0) target = $region65
    $region64: #{tpu_custom_call.1} parent=1 // pred_region
      %2939 = dma.done [#allocation4], 128
    $region65: #{tpu_custom_call.1} parent=1 // pred_fallthru
      _
    %2940 = vsyncpa [#allocation3], 1
    %2941 = vsyncpa [#allocation6], 1
    %2942 = vsyncpa [#allocation9], 1
    %2943 = vsyncpa [#allocation4], 1

</llo_original>
